<compile_context>
chip_gen: v5e
topology: v5e:2x2
jax: 0.10.0
libtpu: 0.0.40
codegen_flags: <defaults>
</compile_context>

<pallas_src>
import math

import jax
import jax.numpy as jnp
from jax.experimental import pallas as pl
from jax.experimental.pallas import tpu as pltpu

# ----------------------------- config ---------------------------------------
EMBEDDING_SIZE = 32          # config.embedding_size
HIDDEN_SIZE = 32             # config.hidden_size
NUM_EDGE_TYPES = 3           # config.num_edge_types
VOCAB_SIZE = 50
NUM_NODES = 24
NUM_EDGES = 40
NODE_PAD = 32                # NUM_NODES zero-padded to a sublane-aligned 32
LN_EPS = 1e-5
INV_SQRT2 = 1.0 / math.sqrt(2.0)

# Per-layer input sizes of the 8 fused ResidualGNNLayers:
#   each concat block = 3 layers (Din=32) + 1 output layer on [x ; h] (Din=64)
LAYER_DINS = (32, 32, 32, 64, 32, 32, 32, 64)
PARAMS_PER_LAYER = 6         # wsrc, wtgt, gamma, beta, wout, bout


# ----------------------------- Pallas kernel --------------------------------
def encoder_kernel(*refs):
    """Fully fused ResidualGNNEncoder forward (both concat blocks, 8 layers)."""
    a3_ref, deg_ref, x0_ref = refs[0], refs[1], refs[2]
    out_ref = refs[-1]
    wrefs = refs[3:-1]                      # 8 layers x 6 parameter refs

    a3 = a3_ref[...]                        # [T*Np, Np]  vstack of A_t (tgt,src)
    deg = deg_ref[...]                      # [Np, T]     per-type in-degree
    x0 = x0_ref[...].astype(jnp.float32)    # [Np, E]

    T = NUM_EDGE_TYPES
    NP = NODE_PAD

    def gnn_layer(x, li):
        wsrc = wrefs[PARAMS_PER_LAYER * li + 0][...]    # [T*Din, Din]
        wtgt = wrefs[PARAMS_PER_LAYER * li + 1][...]    # [T*Din, Din]
        gamma = wrefs[PARAMS_PER_LAYER * li + 2][...]   # [1, Din]
        beta = wrefs[PARAMS_PER_LAYER * li + 3][...]    # [1, Din]
        wout = wrefs[PARAMS_PER_LAYER * li + 4][...]    # [Din, Dout]
        bout = wrefs[PARAMS_PER_LAYER * li + 5][...]    # [1, Dout]
        din = x.shape[1]

        # ---- message passing (scatter-add expressed as dense matmuls) ------
        # target-side term: [deg_1*x | ... | deg_T*x] @ vstack(Wtgt_t), K=T*Din
        deg_x = jnp.concatenate([deg[:, t:t + 1] * x for t in range(T)],
                                axis=1)                          # [Np, T*Din]
        msg = jnp.dot(deg_x, wtgt, preferred_element_type=jnp.float32)
        # source-side term: one wide gather matmul, then per-type weights
        ax = jnp.dot(a3, x, preferred_element_type=jnp.float32)  # [T*Np, Din]
        for t in range(T):
            msg = msg + jnp.dot(ax[t * NP:(t + 1) * NP, :],
                                wsrc[t * din:(t + 1) * din, :],
                                preferred_element_type=jnp.float32)

        # ---- state update: GELU -> LayerNorm -> Linear -> Tanh -------------
        g = 0.5 * msg * (1.0 + jax.lax.erf(msg * INV_SQRT2))     # exact GELU
        mu = jnp.mean(g, axis=-1, keepdims=True)
        var = jnp.mean((g - mu) * (g - mu), axis=-1, keepdims=True)
        h = (g - mu) * jax.lax.rsqrt(var + LN_EPS) * gamma + beta
        y = jnp.dot(h, wout, preferred_element_type=jnp.float32) + bout
        return jnp.tanh(y)                                       # dropout p=0

    x = x0
    li = 0
    for _block in range(2):                 # two ResidualGNNConcatLayers
        block_in = x
        h = block_in
        for _ in range(3):                  # num_layers - 1 inner GNN layers
            h = gnn_layer(h, li)
            li += 1
        # output_gnn on the residual concat [block_input ; hidden]
        x = gnn_layer(jnp.concatenate([block_in, h], axis=1), li)
        li += 1

    out_ref[...] = x.astype(out_ref.dtype)


def encoder_pallas_call(a3, deg, x0, flat_weights):
    n_in = 3 + len(flat_weights)
    in_specs = [pl.BlockSpec(memory_space=pltpu.MemorySpace.VMEM)
                for _ in range(n_in)]
    return pl.pallas_call(
        encoder_kernel,
        out_shape=jax.ShapeDtypeStruct((NODE_PAD, HIDDEN_SIZE), jnp.float32),
        in_specs=in_specs,
        out_specs=pl.BlockSpec(memory_space=pltpu.MemorySpace.VMEM),
    )(a3, deg, x0, *flat_weights)


# ----------------------------- glue (plain JAX) ------------------------------
def build_graph_operators(typed_edges, n_pad, num_types):
    """typed_edges [3, E] = (edge_type in 1..T, source, target).

    Returns
      a3  [T*n_pad, n_pad] : vstack over types of dense adjacency A_t[tgt,src]
                             (edge counts -> exact scatter_add semantics)
      deg [n_pad, T]       : per-type in-degree of each target node
    """
    et, src, tgt = typed_edges[0], typed_edges[1], typed_edges[2]
    type_oh = (et[None, :] == jnp.arange(1, num_types + 1)[:, None]
               ).astype(jnp.float32)                                  # [T, E]
    src_oh = jax.nn.one_hot(src, n_pad, dtype=jnp.float32)            # [E, Np]
    tgt_oh = jax.nn.one_hot(tgt, n_pad, dtype=jnp.float32)            # [E, Np]
    a = jnp.einsum("te,en,em->tnm", type_oh, tgt_oh, src_oh)          # [T,Np,Np]
    a3 = a.reshape(num_types * n_pad, n_pad)
    deg = jnp.einsum("te,en->nt", type_oh, tgt_oh)                    # [Np, T]
    return a3, deg


def init_gnn_layer_params(key, din, dout, num_types):
    k1, k2, k3, k4 = jax.random.split(key, 4)
    s_edge = 1.0 / math.sqrt(2 * din)        # torch Linear default (fan_in=2*din)
    s_out = math.sqrt(6.0 / (din + dout))    # xavier_uniform
    s_b = 1.0 / math.sqrt(din)
    return dict(
        wsrc=jax.random.uniform(k1, (num_types * din, din), jnp.float32,
                                -s_edge, s_edge),
        wtgt=jax.random.uniform(k2, (num_types * din, din), jnp.float32,
                                -s_edge, s_edge),
        gamma=jnp.ones((1, din), jnp.float32),
        beta=jnp.zeros((1, din), jnp.float32),
        wout=jax.random.uniform(k3, (din, dout), jnp.float32, -s_out, s_out),
        bout=jax.random.uniform(k4, (1, dout), jnp.float32, -s_b, s_b),
    )


def init_encoder_params(key):
    keys = jax.random.split(key, 1 + len(LAYER_DINS))
    emb = jax.random.normal(keys[0], (VOCAB_SIZE, EMBEDDING_SIZE),
                            jnp.float32) * 0.02
    layers = [init_gnn_layer_params(k, din, HIDDEN_SIZE, NUM_EDGE_TYPES)
              for k, din in zip(keys[1:], LAYER_DINS)]
    return dict(emb=emb, layers=layers)


@jax.jit
def encoder_forward(params, input_ids, typed_edges):
    # mirrors: input_ids.squeeze(0), typed_edges.squeeze(0)
    ids = input_ids[0]                        # [N]
    edges = typed_edges[0]                    # [3, E]
    n = ids.shape[0]
    input_embed = params["emb"][ids]          # [N, embedding_size]
    x0 = jnp.pad(input_embed, ((0, NODE_PAD - n), (0, 0)))        # [Np, E]
    a3, deg = build_graph_operators(edges, NODE_PAD, NUM_EDGE_TYPES)
    flat_w = [lp[k] for lp in params["layers"]
              for k in ("wsrc", "wtgt", "gamma", "beta", "wout", "bout")]
    hidden_pad = encoder_pallas_call(a3, deg, x0, flat_w)          # [Np, H]
    return hidden_pad[:n], input_embed


# ----------------------------- main ------------------------------------------
if __name__ == "__main__":
    key = jax.random.PRNGKey(0)
    k_param, k_ids, k_type, k_src, k_tgt = jax.random.split(key, 5)

    params = init_encoder_params(k_param)

    input_ids = jax.random.randint(k_ids, (1, NUM_NODES), 0, VOCAB_SIZE,
                                   dtype=jnp.int32)
    edge_types = jax.random.randint(k_type, (NUM_EDGES,), 1,
                                    NUM_EDGE_TYPES + 1, dtype=jnp.int32)
    src = jax.random.randint(k_src, (NUM_EDGES,), 0, NUM_NODES,
                             dtype=jnp.int32)
    tgt = jax.random.randint(k_tgt, (NUM_EDGES,), 0, NUM_NODES,
                             dtype=jnp.int32)
    typed_edges = jnp.stack([edge_types, src, tgt], axis=0)[None]  # [1, 3, E]

    hidden, input_embed = encoder_forward(params, input_ids, typed_edges)
    jax.block_until_ready((hidden, input_embed))

    assert hidden.shape == (NUM_NODES, HIDDEN_SIZE)
    assert input_embed.shape == (NUM_NODES, EMBEDDING_SIZE)
    assert bool(jnp.all(jnp.isfinite(hidden)))
    print("KERNEL_OK")
</pallas_src>

<mosaic_0001>
module attributes {stable_mosaic.version = 11 : i64} {
  func.func @encoder_kernel(%arg0: memref<96x32xf32, #tpu.memory_space<vmem>>, %arg1: memref<32x3xf32, #tpu.memory_space<vmem>>, %arg2: memref<32x32xf32, #tpu.memory_space<vmem>>, %arg3: memref<96x32xf32, #tpu.memory_space<vmem>>, %arg4: memref<96x32xf32, #tpu.memory_space<vmem>>, %arg5: memref<1x32xf32, #tpu.memory_space<vmem>>, %arg6: memref<1x32xf32, #tpu.memory_space<vmem>>, %arg7: memref<32x32xf32, #tpu.memory_space<vmem>>, %arg8: memref<1x32xf32, #tpu.memory_space<vmem>>, %arg9: memref<96x32xf32, #tpu.memory_space<vmem>>, %arg10: memref<96x32xf32, #tpu.memory_space<vmem>>, %arg11: memref<1x32xf32, #tpu.memory_space<vmem>>, %arg12: memref<1x32xf32, #tpu.memory_space<vmem>>, %arg13: memref<32x32xf32, #tpu.memory_space<vmem>>, %arg14: memref<1x32xf32, #tpu.memory_space<vmem>>, %arg15: memref<96x32xf32, #tpu.memory_space<vmem>>, %arg16: memref<96x32xf32, #tpu.memory_space<vmem>>, %arg17: memref<1x32xf32, #tpu.memory_space<vmem>>, %arg18: memref<1x32xf32, #tpu.memory_space<vmem>>, %arg19: memref<32x32xf32, #tpu.memory_space<vmem>>, %arg20: memref<1x32xf32, #tpu.memory_space<vmem>>, %arg21: memref<192x64xf32, #tpu.memory_space<vmem>>, %arg22: memref<192x64xf32, #tpu.memory_space<vmem>>, %arg23: memref<1x64xf32, #tpu.memory_space<vmem>>, %arg24: memref<1x64xf32, #tpu.memory_space<vmem>>, %arg25: memref<64x32xf32, #tpu.memory_space<vmem>>, %arg26: memref<1x32xf32, #tpu.memory_space<vmem>>, %arg27: memref<96x32xf32, #tpu.memory_space<vmem>>, %arg28: memref<96x32xf32, #tpu.memory_space<vmem>>, %arg29: memref<1x32xf32, #tpu.memory_space<vmem>>, %arg30: memref<1x32xf32, #tpu.memory_space<vmem>>, %arg31: memref<32x32xf32, #tpu.memory_space<vmem>>, %arg32: memref<1x32xf32, #tpu.memory_space<vmem>>, %arg33: memref<96x32xf32, #tpu.memory_space<vmem>>, %arg34: memref<96x32xf32, #tpu.memory_space<vmem>>, %arg35: memref<1x32xf32, #tpu.memory_space<vmem>>, %arg36: memref<1x32xf32, #tpu.memory_space<vmem>>, %arg37: memref<32x32xf32, #tpu.memory_space<vmem>>, %arg38: memref<1x32xf32, #tpu.memory_space<vmem>>, %arg39: memref<96x32xf32, #tpu.memory_space<vmem>>, %arg40: memref<96x32xf32, #tpu.memory_space<vmem>>, %arg41: memref<1x32xf32, #tpu.memory_space<vmem>>, %arg42: memref<1x32xf32, #tpu.memory_space<vmem>>, %arg43: memref<32x32xf32, #tpu.memory_space<vmem>>, %arg44: memref<1x32xf32, #tpu.memory_space<vmem>>, %arg45: memref<192x64xf32, #tpu.memory_space<vmem>>, %arg46: memref<192x64xf32, #tpu.memory_space<vmem>>, %arg47: memref<1x64xf32, #tpu.memory_space<vmem>>, %arg48: memref<1x64xf32, #tpu.memory_space<vmem>>, %arg49: memref<64x32xf32, #tpu.memory_space<vmem>>, %arg50: memref<1x32xf32, #tpu.memory_space<vmem>>, %arg51: memref<32x32xf32, #tpu.memory_space<vmem>>) attributes {dimension_semantics = [], scalar_prefetch = 0 : i64, scratch_operands = 0 : i64, tpu.core_type = #tpu.core_type<tc>} {
    %c0 = arith.constant 0 : index
    %c0_0 = arith.constant 0 : index
    %0 = vector.load %arg0[%c0, %c0_0] : memref<96x32xf32, #tpu.memory_space<vmem>>, vector<96x32xf32>
    %c0_1 = arith.constant 0 : index
    %c0_2 = arith.constant 0 : index
    %1 = vector.load %arg1[%c0_1, %c0_2] : memref<32x3xf32, #tpu.memory_space<vmem>>, vector<32x3xf32>
    %c0_3 = arith.constant 0 : index
    %c0_4 = arith.constant 0 : index
    %2 = vector.load %arg2[%c0_3, %c0_4] : memref<32x32xf32, #tpu.memory_space<vmem>>, vector<32x32xf32>
    %c0_5 = arith.constant 0 : index
    %c0_6 = arith.constant 0 : index
    %3 = vector.load %arg3[%c0_5, %c0_6] : memref<96x32xf32, #tpu.memory_space<vmem>>, vector<96x32xf32>
    %c0_7 = arith.constant 0 : index
    %c0_8 = arith.constant 0 : index
    %4 = vector.load %arg4[%c0_7, %c0_8] : memref<96x32xf32, #tpu.memory_space<vmem>>, vector<96x32xf32>
    %c0_9 = arith.constant 0 : index
    %c0_10 = arith.constant 0 : index
    %5 = vector.load %arg5[%c0_9, %c0_10] : memref<1x32xf32, #tpu.memory_space<vmem>>, vector<1x32xf32>
    %c0_11 = arith.constant 0 : index
    %c0_12 = arith.constant 0 : index
    %6 = vector.load %arg6[%c0_11, %c0_12] : memref<1x32xf32, #tpu.memory_space<vmem>>, vector<1x32xf32>
    %c0_13 = arith.constant 0 : index
    %c0_14 = arith.constant 0 : index
    %7 = vector.load %arg7[%c0_13, %c0_14] : memref<32x32xf32, #tpu.memory_space<vmem>>, vector<32x32xf32>
    %c0_15 = arith.constant 0 : index
    %c0_16 = arith.constant 0 : index
    %8 = vector.load %arg8[%c0_15, %c0_16] : memref<1x32xf32, #tpu.memory_space<vmem>>, vector<1x32xf32>
    %9 = vector.extract_strided_slice %1 {offsets = [0, 0], sizes = [32, 1], strides = [1, 1]} : vector<32x3xf32> to vector<32x1xf32>
    %10 = vector.broadcast %9 : vector<32x1xf32> to vector<32x32xf32>
    %11 = arith.mulf %10, %2 : vector<32x32xf32>
    %12 = vector.extract_strided_slice %1 {offsets = [0, 1], sizes = [32, 1], strides = [1, 1]} : vector<32x3xf32> to vector<32x1xf32>
    %13 = vector.broadcast %12 : vector<32x1xf32> to vector<32x32xf32>
    %14 = arith.mulf %13, %2 : vector<32x32xf32>
    %15 = vector.extract_strided_slice %1 {offsets = [0, 2], sizes = [32, 1], strides = [1, 1]} : vector<32x3xf32> to vector<32x1xf32>
    %16 = vector.broadcast %15 : vector<32x1xf32> to vector<32x32xf32>
    %17 = arith.mulf %16, %2 : vector<32x32xf32>
    %18 = tpu.concatenate %11, %14, %17 in 1 : vector<32x32xf32>, vector<32x32xf32>, vector<32x32xf32> -> vector<32x96xf32>
    %cst = arith.constant dense<0.000000e+00> : vector<32x32xf32>
    %19 = tpu.matmul %18, %4, %cst {dimension_numbers = #tpu.dot_dimension_numbers<[1], [0], [0], [1], [0, 0, 1, 1], [], []>} : vector<32x96xf32>, vector<96x32xf32>, vector<32x32xf32> -> vector<32x32xf32>
    %cst_17 = arith.constant dense<0.000000e+00> : vector<96x32xf32>
    %20 = tpu.matmul %0, %2, %cst_17 {dimension_numbers = #tpu.dot_dimension_numbers<[1], [0], [0], [1], [0, 0, 1, 1], [], []>} : vector<96x32xf32>, vector<32x32xf32>, vector<96x32xf32> -> vector<96x32xf32>
    %21 = vector.extract_strided_slice %20 {offsets = [0, 0], sizes = [32, 32], strides = [1, 1]} : vector<96x32xf32> to vector<32x32xf32>
    %22 = vector.extract_strided_slice %3 {offsets = [0, 0], sizes = [32, 32], strides = [1, 1]} : vector<96x32xf32> to vector<32x32xf32>
    %cst_18 = arith.constant dense<0.000000e+00> : vector<32x32xf32>
    %23 = tpu.matmul %21, %22, %cst_18 {dimension_numbers = #tpu.dot_dimension_numbers<[1], [0], [0], [1], [0, 0, 1, 1], [], []>} : vector<32x32xf32>, vector<32x32xf32>, vector<32x32xf32> -> vector<32x32xf32>
    %24 = arith.addf %19, %23 : vector<32x32xf32>
    %25 = vector.extract_strided_slice %20 {offsets = [32, 0], sizes = [32, 32], strides = [1, 1]} : vector<96x32xf32> to vector<32x32xf32>
    %26 = vector.extract_strided_slice %3 {offsets = [32, 0], sizes = [32, 32], strides = [1, 1]} : vector<96x32xf32> to vector<32x32xf32>
    %cst_19 = arith.constant dense<0.000000e+00> : vector<32x32xf32>
    %27 = tpu.matmul %25, %26, %cst_19 {dimension_numbers = #tpu.dot_dimension_numbers<[1], [0], [0], [1], [0, 0, 1, 1], [], []>} : vector<32x32xf32>, vector<32x32xf32>, vector<32x32xf32> -> vector<32x32xf32>
    %28 = arith.addf %24, %27 : vector<32x32xf32>
    %29 = vector.extract_strided_slice %20 {offsets = [64, 0], sizes = [32, 32], strides = [1, 1]} : vector<96x32xf32> to vector<32x32xf32>
    %30 = vector.extract_strided_slice %3 {offsets = [64, 0], sizes = [32, 32], strides = [1, 1]} : vector<96x32xf32> to vector<32x32xf32>
    %cst_20 = arith.constant dense<0.000000e+00> : vector<32x32xf32>
    %31 = tpu.matmul %29, %30, %cst_20 {dimension_numbers = #tpu.dot_dimension_numbers<[1], [0], [0], [1], [0, 0, 1, 1], [], []>} : vector<32x32xf32>, vector<32x32xf32>, vector<32x32xf32> -> vector<32x32xf32>
    %32 = arith.addf %28, %31 : vector<32x32xf32>
    %cst_21 = arith.constant 5.000000e-01 : f32
    %33 = vector.broadcast %cst_21 : f32 to vector<32x32xf32>
    %34 = arith.mulf %33, %32 : vector<32x32xf32>
    %cst_22 = arith.constant 0.707106769 : f32
    %35 = vector.broadcast %cst_22 : f32 to vector<32x32xf32>
    %36 = arith.mulf %32, %35 : vector<32x32xf32>
    %37 = math.erf %36 : vector<32x32xf32>
    %cst_23 = arith.constant 1.000000e+00 : f32
    %38 = vector.broadcast %cst_23 : f32 to vector<32x32xf32>
    %39 = arith.addf %38, %37 : vector<32x32xf32>
    %40 = arith.mulf %34, %39 : vector<32x32xf32>
    %cst_24 = arith.constant dense<0.000000e+00> : vector<32xf32>
    %41 = vector.multi_reduction <add>, %40, %cst_24 [1] : vector<32x32xf32> to vector<32xf32>
    %42 = vector.shape_cast %41 : vector<32xf32> to vector<32x1xf32>
    %cst_25 = arith.constant 3.200000e+01 : f32
    %43 = vector.broadcast %cst_25 : f32 to vector<32x1xf32>
    %44 = arith.divf %42, %43 : vector<32x1xf32>
    %45 = vector.broadcast %44 : vector<32x1xf32> to vector<32x32xf32>
    %46 = arith.subf %40, %45 : vector<32x32xf32>
    %47 = vector.broadcast %44 : vector<32x1xf32> to vector<32x32xf32>
    %48 = arith.subf %40, %47 : vector<32x32xf32>
    %49 = arith.mulf %46, %48 : vector<32x32xf32>
    %cst_26 = arith.constant dense<0.000000e+00> : vector<32xf32>
    %50 = vector.multi_reduction <add>, %49, %cst_26 [1] : vector<32x32xf32> to vector<32xf32>
    %51 = vector.shape_cast %50 : vector<32xf32> to vector<32x1xf32>
    %cst_27 = arith.constant 3.200000e+01 : f32
    %52 = vector.broadcast %cst_27 : f32 to vector<32x1xf32>
    %53 = arith.divf %51, %52 : vector<32x1xf32>
    %54 = vector.broadcast %44 : vector<32x1xf32> to vector<32x32xf32>
    %55 = arith.subf %40, %54 : vector<32x32xf32>
    %cst_28 = arith.constant 9.99999974E-6 : f32
    %56 = vector.broadcast %cst_28 : f32 to vector<32x1xf32>
    %57 = arith.addf %53, %56 : vector<32x1xf32>
    %58 = math.rsqrt %57 : vector<32x1xf32>
    %59 = vector.broadcast %58 : vector<32x1xf32> to vector<32x32xf32>
    %60 = arith.mulf %55, %59 : vector<32x32xf32>
    %61 = vector.broadcast %5 : vector<1x32xf32> to vector<32x32xf32>
    %62 = arith.mulf %60, %61 : vector<32x32xf32>
    %63 = vector.broadcast %6 : vector<1x32xf32> to vector<32x32xf32>
    %64 = arith.addf %62, %63 : vector<32x32xf32>
    %cst_29 = arith.constant dense<0.000000e+00> : vector<32x32xf32>
    %65 = tpu.matmul %64, %7, %cst_29 {dimension_numbers = #tpu.dot_dimension_numbers<[1], [0], [0], [1], [0, 0, 1, 1], [], []>} : vector<32x32xf32>, vector<32x32xf32>, vector<32x32xf32> -> vector<32x32xf32>
    %66 = vector.broadcast %8 : vector<1x32xf32> to vector<32x32xf32>
    %67 = arith.addf %65, %66 : vector<32x32xf32>
    %68 = math.tanh %67 : vector<32x32xf32>
    %c0_30 = arith.constant 0 : index
    %c0_31 = arith.constant 0 : index
    %69 = vector.load %arg9[%c0_30, %c0_31] : memref<96x32xf32, #tpu.memory_space<vmem>>, vector<96x32xf32>
    %c0_32 = arith.constant 0 : index
    %c0_33 = arith.constant 0 : index
    %70 = vector.load %arg10[%c0_32, %c0_33] : memref<96x32xf32, #tpu.memory_space<vmem>>, vector<96x32xf32>
    %c0_34 = arith.constant 0 : index
    %c0_35 = arith.constant 0 : index
    %71 = vector.load %arg11[%c0_34, %c0_35] : memref<1x32xf32, #tpu.memory_space<vmem>>, vector<1x32xf32>
    %c0_36 = arith.constant 0 : index
    %c0_37 = arith.constant 0 : index
    %72 = vector.load %arg12[%c0_36, %c0_37] : memref<1x32xf32, #tpu.memory_space<vmem>>, vector<1x32xf32>
    %c0_38 = arith.constant 0 : index
    %c0_39 = arith.constant 0 : index
    %73 = vector.load %arg13[%c0_38, %c0_39] : memref<32x32xf32, #tpu.memory_space<vmem>>, vector<32x32xf32>
    %c0_40 = arith.constant 0 : index
    %c0_41 = arith.constant 0 : index
    %74 = vector.load %arg14[%c0_40, %c0_41] : memref<1x32xf32, #tpu.memory_space<vmem>>, vector<1x32xf32>
    %75 = vector.extract_strided_slice %1 {offsets = [0, 0], sizes = [32, 1], strides = [1, 1]} : vector<32x3xf32> to vector<32x1xf32>
    %76 = vector.broadcast %75 : vector<32x1xf32> to vector<32x32xf32>
    %77 = arith.mulf %76, %68 : vector<32x32xf32>
    %78 = vector.extract_strided_slice %1 {offsets = [0, 1], sizes = [32, 1], strides = [1, 1]} : vector<32x3xf32> to vector<32x1xf32>
    %79 = vector.broadcast %78 : vector<32x1xf32> to vector<32x32xf32>
    %80 = arith.mulf %79, %68 : vector<32x32xf32>
    %81 = vector.extract_strided_slice %1 {offsets = [0, 2], sizes = [32, 1], strides = [1, 1]} : vector<32x3xf32> to vector<32x1xf32>
    %82 = vector.broadcast %81 : vector<32x1xf32> to vector<32x32xf32>
    %83 = arith.mulf %82, %68 : vector<32x32xf32>
    %84 = tpu.concatenate %77, %80, %83 in 1 : vector<32x32xf32>, vector<32x32xf32>, vector<32x32xf32> -> vector<32x96xf32>
    %cst_42 = arith.constant dense<0.000000e+00> : vector<32x32xf32>
    %85 = tpu.matmul %84, %70, %cst_42 {dimension_numbers = #tpu.dot_dimension_numbers<[1], [0], [0], [1], [0, 0, 1, 1], [], []>} : vector<32x96xf32>, vector<96x32xf32>, vector<32x32xf32> -> vector<32x32xf32>
    %cst_43 = arith.constant dense<0.000000e+00> : vector<96x32xf32>
    %86 = tpu.matmul %0, %68, %cst_43 {dimension_numbers = #tpu.dot_dimension_numbers<[1], [0], [0], [1], [0, 0, 1, 1], [], []>} : vector<96x32xf32>, vector<32x32xf32>, vector<96x32xf32> -> vector<96x32xf32>
    %87 = vector.extract_strided_slice %86 {offsets = [0, 0], sizes = [32, 32], strides = [1, 1]} : vector<96x32xf32> to vector<32x32xf32>
    %88 = vector.extract_strided_slice %69 {offsets = [0, 0], sizes = [32, 32], strides = [1, 1]} : vector<96x32xf32> to vector<32x32xf32>
    %cst_44 = arith.constant dense<0.000000e+00> : vector<32x32xf32>
    %89 = tpu.matmul %87, %88, %cst_44 {dimension_numbers = #tpu.dot_dimension_numbers<[1], [0], [0], [1], [0, 0, 1, 1], [], []>} : vector<32x32xf32>, vector<32x32xf32>, vector<32x32xf32> -> vector<32x32xf32>
    %90 = arith.addf %85, %89 : vector<32x32xf32>
    %91 = vector.extract_strided_slice %86 {offsets = [32, 0], sizes = [32, 32], strides = [1, 1]} : vector<96x32xf32> to vector<32x32xf32>
    %92 = vector.extract_strided_slice %69 {offsets = [32, 0], sizes = [32, 32], strides = [1, 1]} : vector<96x32xf32> to vector<32x32xf32>
    %cst_45 = arith.constant dense<0.000000e+00> : vector<32x32xf32>
    %93 = tpu.matmul %91, %92, %cst_45 {dimension_numbers = #tpu.dot_dimension_numbers<[1], [0], [0], [1], [0, 0, 1, 1], [], []>} : vector<32x32xf32>, vector<32x32xf32>, vector<32x32xf32> -> vector<32x32xf32>
    %94 = arith.addf %90, %93 : vector<32x32xf32>
    %95 = vector.extract_strided_slice %86 {offsets = [64, 0], sizes = [32, 32], strides = [1, 1]} : vector<96x32xf32> to vector<32x32xf32>
    %96 = vector.extract_strided_slice %69 {offsets = [64, 0], sizes = [32, 32], strides = [1, 1]} : vector<96x32xf32> to vector<32x32xf32>
    %cst_46 = arith.constant dense<0.000000e+00> : vector<32x32xf32>
    %97 = tpu.matmul %95, %96, %cst_46 {dimension_numbers = #tpu.dot_dimension_numbers<[1], [0], [0], [1], [0, 0, 1, 1], [], []>} : vector<32x32xf32>, vector<32x32xf32>, vector<32x32xf32> -> vector<32x32xf32>
    %98 = arith.addf %94, %97 : vector<32x32xf32>
    %cst_47 = arith.constant 5.000000e-01 : f32
    %99 = vector.broadcast %cst_47 : f32 to vector<32x32xf32>
    %100 = arith.mulf %99, %98 : vector<32x32xf32>
    %cst_48 = arith.constant 0.707106769 : f32
    %101 = vector.broadcast %cst_48 : f32 to vector<32x32xf32>
    %102 = arith.mulf %98, %101 : vector<32x32xf32>
    %103 = math.erf %102 : vector<32x32xf32>
    %cst_49 = arith.constant 1.000000e+00 : f32
    %104 = vector.broadcast %cst_49 : f32 to vector<32x32xf32>
    %105 = arith.addf %104, %103 : vector<32x32xf32>
    %106 = arith.mulf %100, %105 : vector<32x32xf32>
    %cst_50 = arith.constant dense<0.000000e+00> : vector<32xf32>
    %107 = vector.multi_reduction <add>, %106, %cst_50 [1] : vector<32x32xf32> to vector<32xf32>
    %108 = vector.shape_cast %107 : vector<32xf32> to vector<32x1xf32>
    %cst_51 = arith.constant 3.200000e+01 : f32
    %109 = vector.broadcast %cst_51 : f32 to vector<32x1xf32>
    %110 = arith.divf %108, %109 : vector<32x1xf32>
    %111 = vector.broadcast %110 : vector<32x1xf32> to vector<32x32xf32>
    %112 = arith.subf %106, %111 : vector<32x32xf32>
    %113 = vector.broadcast %110 : vector<32x1xf32> to vector<32x32xf32>
    %114 = arith.subf %106, %113 : vector<32x32xf32>
    %115 = arith.mulf %112, %114 : vector<32x32xf32>
    %cst_52 = arith.constant dense<0.000000e+00> : vector<32xf32>
    %116 = vector.multi_reduction <add>, %115, %cst_52 [1] : vector<32x32xf32> to vector<32xf32>
    %117 = vector.shape_cast %116 : vector<32xf32> to vector<32x1xf32>
    %cst_53 = arith.constant 3.200000e+01 : f32
    %118 = vector.broadcast %cst_53 : f32 to vector<32x1xf32>
    %119 = arith.divf %117, %118 : vector<32x1xf32>
    %120 = vector.broadcast %110 : vector<32x1xf32> to vector<32x32xf32>
    %121 = arith.subf %106, %120 : vector<32x32xf32>
    %cst_54 = arith.constant 9.99999974E-6 : f32
    %122 = vector.broadcast %cst_54 : f32 to vector<32x1xf32>
    %123 = arith.addf %119, %122 : vector<32x1xf32>
    %124 = math.rsqrt %123 : vector<32x1xf32>
    %125 = vector.broadcast %124 : vector<32x1xf32> to vector<32x32xf32>
    %126 = arith.mulf %121, %125 : vector<32x32xf32>
    %127 = vector.broadcast %71 : vector<1x32xf32> to vector<32x32xf32>
    %128 = arith.mulf %126, %127 : vector<32x32xf32>
    %129 = vector.broadcast %72 : vector<1x32xf32> to vector<32x32xf32>
    %130 = arith.addf %128, %129 : vector<32x32xf32>
    %cst_55 = arith.constant dense<0.000000e+00> : vector<32x32xf32>
    %131 = tpu.matmul %130, %73, %cst_55 {dimension_numbers = #tpu.dot_dimension_numbers<[1], [0], [0], [1], [0, 0, 1, 1], [], []>} : vector<32x32xf32>, vector<32x32xf32>, vector<32x32xf32> -> vector<32x32xf32>
    %132 = vector.broadcast %74 : vector<1x32xf32> to vector<32x32xf32>
    %133 = arith.addf %131, %132 : vector<32x32xf32>
    %134 = math.tanh %133 : vector<32x32xf32>
    %c0_56 = arith.constant 0 : index
    %c0_57 = arith.constant 0 : index
    %135 = vector.load %arg15[%c0_56, %c0_57] : memref<96x32xf32, #tpu.memory_space<vmem>>, vector<96x32xf32>
    %c0_58 = arith.constant 0 : index
    %c0_59 = arith.constant 0 : index
    %136 = vector.load %arg16[%c0_58, %c0_59] : memref<96x32xf32, #tpu.memory_space<vmem>>, vector<96x32xf32>
    %c0_60 = arith.constant 0 : index
    %c0_61 = arith.constant 0 : index
    %137 = vector.load %arg17[%c0_60, %c0_61] : memref<1x32xf32, #tpu.memory_space<vmem>>, vector<1x32xf32>
    %c0_62 = arith.constant 0 : index
    %c0_63 = arith.constant 0 : index
    %138 = vector.load %arg18[%c0_62, %c0_63] : memref<1x32xf32, #tpu.memory_space<vmem>>, vector<1x32xf32>
    %c0_64 = arith.constant 0 : index
    %c0_65 = arith.constant 0 : index
    %139 = vector.load %arg19[%c0_64, %c0_65] : memref<32x32xf32, #tpu.memory_space<vmem>>, vector<32x32xf32>
    %c0_66 = arith.constant 0 : index
    %c0_67 = arith.constant 0 : index
    %140 = vector.load %arg20[%c0_66, %c0_67] : memref<1x32xf32, #tpu.memory_space<vmem>>, vector<1x32xf32>
    %141 = vector.extract_strided_slice %1 {offsets = [0, 0], sizes = [32, 1], strides = [1, 1]} : vector<32x3xf32> to vector<32x1xf32>
    %142 = vector.broadcast %141 : vector<32x1xf32> to vector<32x32xf32>
    %143 = arith.mulf %142, %134 : vector<32x32xf32>
    %144 = vector.extract_strided_slice %1 {offsets = [0, 1], sizes = [32, 1], strides = [1, 1]} : vector<32x3xf32> to vector<32x1xf32>
    %145 = vector.broadcast %144 : vector<32x1xf32> to vector<32x32xf32>
    %146 = arith.mulf %145, %134 : vector<32x32xf32>
    %147 = vector.extract_strided_slice %1 {offsets = [0, 2], sizes = [32, 1], strides = [1, 1]} : vector<32x3xf32> to vector<32x1xf32>
    %148 = vector.broadcast %147 : vector<32x1xf32> to vector<32x32xf32>
    %149 = arith.mulf %148, %134 : vector<32x32xf32>
    %150 = tpu.concatenate %143, %146, %149 in 1 : vector<32x32xf32>, vector<32x32xf32>, vector<32x32xf32> -> vector<32x96xf32>
    %cst_68 = arith.constant dense<0.000000e+00> : vector<32x32xf32>
    %151 = tpu.matmul %150, %136, %cst_68 {dimension_numbers = #tpu.dot_dimension_numbers<[1], [0], [0], [1], [0, 0, 1, 1], [], []>} : vector<32x96xf32>, vector<96x32xf32>, vector<32x32xf32> -> vector<32x32xf32>
    %cst_69 = arith.constant dense<0.000000e+00> : vector<96x32xf32>
    %152 = tpu.matmul %0, %134, %cst_69 {dimension_numbers = #tpu.dot_dimension_numbers<[1], [0], [0], [1], [0, 0, 1, 1], [], []>} : vector<96x32xf32>, vector<32x32xf32>, vector<96x32xf32> -> vector<96x32xf32>
    %153 = vector.extract_strided_slice %152 {offsets = [0, 0], sizes = [32, 32], strides = [1, 1]} : vector<96x32xf32> to vector<32x32xf32>
    %154 = vector.extract_strided_slice %135 {offsets = [0, 0], sizes = [32, 32], strides = [1, 1]} : vector<96x32xf32> to vector<32x32xf32>
    %cst_70 = arith.constant dense<0.000000e+00> : vector<32x32xf32>
    %155 = tpu.matmul %153, %154, %cst_70 {dimension_numbers = #tpu.dot_dimension_numbers<[1], [0], [0], [1], [0, 0, 1, 1], [], []>} : vector<32x32xf32>, vector<32x32xf32>, vector<32x32xf32> -> vector<32x32xf32>
    %156 = arith.addf %151, %155 : vector<32x32xf32>
    %157 = vector.extract_strided_slice %152 {offsets = [32, 0], sizes = [32, 32], strides = [1, 1]} : vector<96x32xf32> to vector<32x32xf32>
    %158 = vector.extract_strided_slice %135 {offsets = [32, 0], sizes = [32, 32], strides = [1, 1]} : vector<96x32xf32> to vector<32x32xf32>
    %cst_71 = arith.constant dense<0.000000e+00> : vector<32x32xf32>
    %159 = tpu.matmul %157, %158, %cst_71 {dimension_numbers = #tpu.dot_dimension_numbers<[1], [0], [0], [1], [0, 0, 1, 1], [], []>} : vector<32x32xf32>, vector<32x32xf32>, vector<32x32xf32> -> vector<32x32xf32>
    %160 = arith.addf %156, %159 : vector<32x32xf32>
    %161 = vector.extract_strided_slice %152 {offsets = [64, 0], sizes = [32, 32], strides = [1, 1]} : vector<96x32xf32> to vector<32x32xf32>
    %162 = vector.extract_strided_slice %135 {offsets = [64, 0], sizes = [32, 32], strides = [1, 1]} : vector<96x32xf32> to vector<32x32xf32>
    %cst_72 = arith.constant dense<0.000000e+00> : vector<32x32xf32>
    %163 = tpu.matmul %161, %162, %cst_72 {dimension_numbers = #tpu.dot_dimension_numbers<[1], [0], [0], [1], [0, 0, 1, 1], [], []>} : vector<32x32xf32>, vector<32x32xf32>, vector<32x32xf32> -> vector<32x32xf32>
    %164 = arith.addf %160, %163 : vector<32x32xf32>
    %cst_73 = arith.constant 5.000000e-01 : f32
    %165 = vector.broadcast %cst_73 : f32 to vector<32x32xf32>
    %166 = arith.mulf %165, %164 : vector<32x32xf32>
    %cst_74 = arith.constant 0.707106769 : f32
    %167 = vector.broadcast %cst_74 : f32 to vector<32x32xf32>
    %168 = arith.mulf %164, %167 : vector<32x32xf32>
    %169 = math.erf %168 : vector<32x32xf32>
    %cst_75 = arith.constant 1.000000e+00 : f32
    %170 = vector.broadcast %cst_75 : f32 to vector<32x32xf32>
    %171 = arith.addf %170, %169 : vector<32x32xf32>
    %172 = arith.mulf %166, %171 : vector<32x32xf32>
    %cst_76 = arith.constant dense<0.000000e+00> : vector<32xf32>
    %173 = vector.multi_reduction <add>, %172, %cst_76 [1] : vector<32x32xf32> to vector<32xf32>
    %174 = vector.shape_cast %173 : vector<32xf32> to vector<32x1xf32>
    %cst_77 = arith.constant 3.200000e+01 : f32
    %175 = vector.broadcast %cst_77 : f32 to vector<32x1xf32>
    %176 = arith.divf %174, %175 : vector<32x1xf32>
    %177 = vector.broadcast %176 : vector<32x1xf32> to vector<32x32xf32>
    %178 = arith.subf %172, %177 : vector<32x32xf32>
    %179 = vector.broadcast %176 : vector<32x1xf32> to vector<32x32xf32>
    %180 = arith.subf %172, %179 : vector<32x32xf32>
    %181 = arith.mulf %178, %180 : vector<32x32xf32>
    %cst_78 = arith.constant dense<0.000000e+00> : vector<32xf32>
    %182 = vector.multi_reduction <add>, %181, %cst_78 [1] : vector<32x32xf32> to vector<32xf32>
    %183 = vector.shape_cast %182 : vector<32xf32> to vector<32x1xf32>
    %cst_79 = arith.constant 3.200000e+01 : f32
    %184 = vector.broadcast %cst_79 : f32 to vector<32x1xf32>
    %185 = arith.divf %183, %184 : vector<32x1xf32>
    %186 = vector.broadcast %176 : vector<32x1xf32> to vector<32x32xf32>
    %187 = arith.subf %172, %186 : vector<32x32xf32>
    %cst_80 = arith.constant 9.99999974E-6 : f32
    %188 = vector.broadcast %cst_80 : f32 to vector<32x1xf32>
    %189 = arith.addf %185, %188 : vector<32x1xf32>
    %190 = math.rsqrt %189 : vector<32x1xf32>
    %191 = vector.broadcast %190 : vector<32x1xf32> to vector<32x32xf32>
    %192 = arith.mulf %187, %191 : vector<32x32xf32>
    %193 = vector.broadcast %137 : vector<1x32xf32> to vector<32x32xf32>
    %194 = arith.mulf %192, %193 : vector<32x32xf32>
    %195 = vector.broadcast %138 : vector<1x32xf32> to vector<32x32xf32>
    %196 = arith.addf %194, %195 : vector<32x32xf32>
    %cst_81 = arith.constant dense<0.000000e+00> : vector<32x32xf32>
    %197 = tpu.matmul %196, %139, %cst_81 {dimension_numbers = #tpu.dot_dimension_numbers<[1], [0], [0], [1], [0, 0, 1, 1], [], []>} : vector<32x32xf32>, vector<32x32xf32>, vector<32x32xf32> -> vector<32x32xf32>
    %198 = vector.broadcast %140 : vector<1x32xf32> to vector<32x32xf32>
    %199 = arith.addf %197, %198 : vector<32x32xf32>
    %200 = math.tanh %199 : vector<32x32xf32>
    %201 = tpu.concatenate %2, %200 in 1 : vector<32x32xf32>, vector<32x32xf32> -> vector<32x64xf32>
    %c0_82 = arith.constant 0 : index
    %c0_83 = arith.constant 0 : index
    %202 = vector.load %arg21[%c0_82, %c0_83] : memref<192x64xf32, #tpu.memory_space<vmem>>, vector<192x64xf32>
    %c0_84 = arith.constant 0 : index
    %c0_85 = arith.constant 0 : index
    %203 = vector.load %arg22[%c0_84, %c0_85] : memref<192x64xf32, #tpu.memory_space<vmem>>, vector<192x64xf32>
    %c0_86 = arith.constant 0 : index
    %c0_87 = arith.constant 0 : index
    %204 = vector.load %arg23[%c0_86, %c0_87] : memref<1x64xf32, #tpu.memory_space<vmem>>, vector<1x64xf32>
    %c0_88 = arith.constant 0 : index
    %c0_89 = arith.constant 0 : index
    %205 = vector.load %arg24[%c0_88, %c0_89] : memref<1x64xf32, #tpu.memory_space<vmem>>, vector<1x64xf32>
    %c0_90 = arith.constant 0 : index
    %c0_91 = arith.constant 0 : index
    %206 = vector.load %arg25[%c0_90, %c0_91] : memref<64x32xf32, #tpu.memory_space<vmem>>, vector<64x32xf32>
    %c0_92 = arith.constant 0 : index
    %c0_93 = arith.constant 0 : index
    %207 = vector.load %arg26[%c0_92, %c0_93] : memref<1x32xf32, #tpu.memory_space<vmem>>, vector<1x32xf32>
    %208 = vector.extract_strided_slice %1 {offsets = [0, 0], sizes = [32, 1], strides = [1, 1]} : vector<32x3xf32> to vector<32x1xf32>
    %209 = vector.broadcast %208 : vector<32x1xf32> to vector<32x64xf32>
    %210 = arith.mulf %209, %201 : vector<32x64xf32>
    %211 = vector.extract_strided_slice %1 {offsets = [0, 1], sizes = [32, 1], strides = [1, 1]} : vector<32x3xf32> to vector<32x1xf32>
    %212 = vector.broadcast %211 : vector<32x1xf32> to vector<32x64xf32>
    %213 = arith.mulf %212, %201 : vector<32x64xf32>
    %214 = vector.extract_strided_slice %1 {offsets = [0, 2], sizes = [32, 1], strides = [1, 1]} : vector<32x3xf32> to vector<32x1xf32>
    %215 = vector.broadcast %214 : vector<32x1xf32> to vector<32x64xf32>
    %216 = arith.mulf %215, %201 : vector<32x64xf32>
    %217 = tpu.concatenate %210, %213, %216 in 1 : vector<32x64xf32>, vector<32x64xf32>, vector<32x64xf32> -> vector<32x192xf32>
    %cst_94 = arith.constant dense<0.000000e+00> : vector<32x64xf32>
    %218 = tpu.matmul %217, %203, %cst_94 {dimension_numbers = #tpu.dot_dimension_numbers<[1], [0], [0], [1], [0, 0, 1, 1], [], []>} : vector<32x192xf32>, vector<192x64xf32>, vector<32x64xf32> -> vector<32x64xf32>
    %cst_95 = arith.constant dense<0.000000e+00> : vector<96x64xf32>
    %219 = tpu.matmul %0, %201, %cst_95 {dimension_numbers = #tpu.dot_dimension_numbers<[1], [0], [0], [1], [0, 0, 1, 1], [], []>} : vector<96x32xf32>, vector<32x64xf32>, vector<96x64xf32> -> vector<96x64xf32>
    %220 = vector.extract_strided_slice %219 {offsets = [0, 0], sizes = [32, 64], strides = [1, 1]} : vector<96x64xf32> to vector<32x64xf32>
    %221 = vector.extract_strided_slice %202 {offsets = [0, 0], sizes = [64, 64], strides = [1, 1]} : vector<192x64xf32> to vector<64x64xf32>
    %cst_96 = arith.constant dense<0.000000e+00> : vector<32x64xf32>
    %222 = tpu.matmul %220, %221, %cst_96 {dimension_numbers = #tpu.dot_dimension_numbers<[1], [0], [0], [1], [0, 0, 1, 1], [], []>} : vector<32x64xf32>, vector<64x64xf32>, vector<32x64xf32> -> vector<32x64xf32>
    %223 = arith.addf %218, %222 : vector<32x64xf32>
    %224 = vector.extract_strided_slice %219 {offsets = [32, 0], sizes = [32, 64], strides = [1, 1]} : vector<96x64xf32> to vector<32x64xf32>
    %225 = vector.extract_strided_slice %202 {offsets = [64, 0], sizes = [64, 64], strides = [1, 1]} : vector<192x64xf32> to vector<64x64xf32>
    %cst_97 = arith.constant dense<0.000000e+00> : vector<32x64xf32>
    %226 = tpu.matmul %224, %225, %cst_97 {dimension_numbers = #tpu.dot_dimension_numbers<[1], [0], [0], [1], [0, 0, 1, 1], [], []>} : vector<32x64xf32>, vector<64x64xf32>, vector<32x64xf32> -> vector<32x64xf32>
    %227 = arith.addf %223, %226 : vector<32x64xf32>
    %228 = vector.extract_strided_slice %219 {offsets = [64, 0], sizes = [32, 64], strides = [1, 1]} : vector<96x64xf32> to vector<32x64xf32>
    %229 = vector.extract_strided_slice %202 {offsets = [128, 0], sizes = [64, 64], strides = [1, 1]} : vector<192x64xf32> to vector<64x64xf32>
    %cst_98 = arith.constant dense<0.000000e+00> : vector<32x64xf32>
    %230 = tpu.matmul %228, %229, %cst_98 {dimension_numbers = #tpu.dot_dimension_numbers<[1], [0], [0], [1], [0, 0, 1, 1], [], []>} : vector<32x64xf32>, vector<64x64xf32>, vector<32x64xf32> -> vector<32x64xf32>
    %231 = arith.addf %227, %230 : vector<32x64xf32>
    %cst_99 = arith.constant 5.000000e-01 : f32
    %232 = vector.broadcast %cst_99 : f32 to vector<32x64xf32>
    %233 = arith.mulf %232, %231 : vector<32x64xf32>
    %cst_100 = arith.constant 0.707106769 : f32
    %234 = vector.broadcast %cst_100 : f32 to vector<32x64xf32>
    %235 = arith.mulf %231, %234 : vector<32x64xf32>
    %236 = math.erf %235 : vector<32x64xf32>
    %cst_101 = arith.constant 1.000000e+00 : f32
    %237 = vector.broadcast %cst_101 : f32 to vector<32x64xf32>
    %238 = arith.addf %237, %236 : vector<32x64xf32>
    %239 = arith.mulf %233, %238 : vector<32x64xf32>
    %cst_102 = arith.constant dense<0.000000e+00> : vector<32xf32>
    %240 = vector.multi_reduction <add>, %239, %cst_102 [1] : vector<32x64xf32> to vector<32xf32>
    %241 = vector.shape_cast %240 : vector<32xf32> to vector<32x1xf32>
    %cst_103 = arith.constant 6.400000e+01 : f32
    %242 = vector.broadcast %cst_103 : f32 to vector<32x1xf32>
    %243 = arith.divf %241, %242 : vector<32x1xf32>
    %244 = vector.broadcast %243 : vector<32x1xf32> to vector<32x64xf32>
    %245 = arith.subf %239, %244 : vector<32x64xf32>
    %246 = vector.broadcast %243 : vector<32x1xf32> to vector<32x64xf32>
    %247 = arith.subf %239, %246 : vector<32x64xf32>
    %248 = arith.mulf %245, %247 : vector<32x64xf32>
    %cst_104 = arith.constant dense<0.000000e+00> : vector<32xf32>
    %249 = vector.multi_reduction <add>, %248, %cst_104 [1] : vector<32x64xf32> to vector<32xf32>
    %250 = vector.shape_cast %249 : vector<32xf32> to vector<32x1xf32>
    %cst_105 = arith.constant 6.400000e+01 : f32
    %251 = vector.broadcast %cst_105 : f32 to vector<32x1xf32>
    %252 = arith.divf %250, %251 : vector<32x1xf32>
    %253 = vector.broadcast %243 : vector<32x1xf32> to vector<32x64xf32>
    %254 = arith.subf %239, %253 : vector<32x64xf32>
    %cst_106 = arith.constant 9.99999974E-6 : f32
    %255 = vector.broadcast %cst_106 : f32 to vector<32x1xf32>
    %256 = arith.addf %252, %255 : vector<32x1xf32>
    %257 = math.rsqrt %256 : vector<32x1xf32>
    %258 = vector.broadcast %257 : vector<32x1xf32> to vector<32x64xf32>
    %259 = arith.mulf %254, %258 : vector<32x64xf32>
    %260 = vector.broadcast %204 : vector<1x64xf32> to vector<32x64xf32>
    %261 = arith.mulf %259, %260 : vector<32x64xf32>
    %262 = vector.broadcast %205 : vector<1x64xf32> to vector<32x64xf32>
    %263 = arith.addf %261, %262 : vector<32x64xf32>
    %cst_107 = arith.constant dense<0.000000e+00> : vector<32x32xf32>
    %264 = tpu.matmul %263, %206, %cst_107 {dimension_numbers = #tpu.dot_dimension_numbers<[1], [0], [0], [1], [0, 0, 1, 1], [], []>} : vector<32x64xf32>, vector<64x32xf32>, vector<32x32xf32> -> vector<32x32xf32>
    %265 = vector.broadcast %207 : vector<1x32xf32> to vector<32x32xf32>
    %266 = arith.addf %264, %265 : vector<32x32xf32>
    %267 = math.tanh %266 : vector<32x32xf32>
    %c0_108 = arith.constant 0 : index
    %c0_109 = arith.constant 0 : index
    %268 = vector.load %arg27[%c0_108, %c0_109] : memref<96x32xf32, #tpu.memory_space<vmem>>, vector<96x32xf32>
    %c0_110 = arith.constant 0 : index
    %c0_111 = arith.constant 0 : index
    %269 = vector.load %arg28[%c0_110, %c0_111] : memref<96x32xf32, #tpu.memory_space<vmem>>, vector<96x32xf32>
    %c0_112 = arith.constant 0 : index
    %c0_113 = arith.constant 0 : index
    %270 = vector.load %arg29[%c0_112, %c0_113] : memref<1x32xf32, #tpu.memory_space<vmem>>, vector<1x32xf32>
    %c0_114 = arith.constant 0 : index
    %c0_115 = arith.constant 0 : index
    %271 = vector.load %arg30[%c0_114, %c0_115] : memref<1x32xf32, #tpu.memory_space<vmem>>, vector<1x32xf32>
    %c0_116 = arith.constant 0 : index
    %c0_117 = arith.constant 0 : index
    %272 = vector.load %arg31[%c0_116, %c0_117] : memref<32x32xf32, #tpu.memory_space<vmem>>, vector<32x32xf32>
    %c0_118 = arith.constant 0 : index
    %c0_119 = arith.constant 0 : index
    %273 = vector.load %arg32[%c0_118, %c0_119] : memref<1x32xf32, #tpu.memory_space<vmem>>, vector<1x32xf32>
    %274 = vector.extract_strided_slice %1 {offsets = [0, 0], sizes = [32, 1], strides = [1, 1]} : vector<32x3xf32> to vector<32x1xf32>
    %275 = vector.broadcast %274 : vector<32x1xf32> to vector<32x32xf32>
    %276 = arith.mulf %275, %267 : vector<32x32xf32>
    %277 = vector.extract_strided_slice %1 {offsets = [0, 1], sizes = [32, 1], strides = [1, 1]} : vector<32x3xf32> to vector<32x1xf32>
    %278 = vector.broadcast %277 : vector<32x1xf32> to vector<32x32xf32>
    %279 = arith.mulf %278, %267 : vector<32x32xf32>
    %280 = vector.extract_strided_slice %1 {offsets = [0, 2], sizes = [32, 1], strides = [1, 1]} : vector<32x3xf32> to vector<32x1xf32>
    %281 = vector.broadcast %280 : vector<32x1xf32> to vector<32x32xf32>
    %282 = arith.mulf %281, %267 : vector<32x32xf32>
    %283 = tpu.concatenate %276, %279, %282 in 1 : vector<32x32xf32>, vector<32x32xf32>, vector<32x32xf32> -> vector<32x96xf32>
    %cst_120 = arith.constant dense<0.000000e+00> : vector<32x32xf32>
    %284 = tpu.matmul %283, %269, %cst_120 {dimension_numbers = #tpu.dot_dimension_numbers<[1], [0], [0], [1], [0, 0, 1, 1], [], []>} : vector<32x96xf32>, vector<96x32xf32>, vector<32x32xf32> -> vector<32x32xf32>
    %cst_121 = arith.constant dense<0.000000e+00> : vector<96x32xf32>
    %285 = tpu.matmul %0, %267, %cst_121 {dimension_numbers = #tpu.dot_dimension_numbers<[1], [0], [0], [1], [0, 0, 1, 1], [], []>} : vector<96x32xf32>, vector<32x32xf32>, vector<96x32xf32> -> vector<96x32xf32>
    %286 = vector.extract_strided_slice %285 {offsets = [0, 0], sizes = [32, 32], strides = [1, 1]} : vector<96x32xf32> to vector<32x32xf32>
    %287 = vector.extract_strided_slice %268 {offsets = [0, 0], sizes = [32, 32], strides = [1, 1]} : vector<96x32xf32> to vector<32x32xf32>
    %cst_122 = arith.constant dense<0.000000e+00> : vector<32x32xf32>
    %288 = tpu.matmul %286, %287, %cst_122 {dimension_numbers = #tpu.dot_dimension_numbers<[1], [0], [0], [1], [0, 0, 1, 1], [], []>} : vector<32x32xf32>, vector<32x32xf32>, vector<32x32xf32> -> vector<32x32xf32>
    %289 = arith.addf %284, %288 : vector<32x32xf32>
    %290 = vector.extract_strided_slice %285 {offsets = [32, 0], sizes = [32, 32], strides = [1, 1]} : vector<96x32xf32> to vector<32x32xf32>
    %291 = vector.extract_strided_slice %268 {offsets = [32, 0], sizes = [32, 32], strides = [1, 1]} : vector<96x32xf32> to vector<32x32xf32>
    %cst_123 = arith.constant dense<0.000000e+00> : vector<32x32xf32>
    %292 = tpu.matmul %290, %291, %cst_123 {dimension_numbers = #tpu.dot_dimension_numbers<[1], [0], [0], [1], [0, 0, 1, 1], [], []>} : vector<32x32xf32>, vector<32x32xf32>, vector<32x32xf32> -> vector<32x32xf32>
    %293 = arith.addf %289, %292 : vector<32x32xf32>
    %294 = vector.extract_strided_slice %285 {offsets = [64, 0], sizes = [32, 32], strides = [1, 1]} : vector<96x32xf32> to vector<32x32xf32>
    %295 = vector.extract_strided_slice %268 {offsets = [64, 0], sizes = [32, 32], strides = [1, 1]} : vector<96x32xf32> to vector<32x32xf32>
    %cst_124 = arith.constant dense<0.000000e+00> : vector<32x32xf32>
    %296 = tpu.matmul %294, %295, %cst_124 {dimension_numbers = #tpu.dot_dimension_numbers<[1], [0], [0], [1], [0, 0, 1, 1], [], []>} : vector<32x32xf32>, vector<32x32xf32>, vector<32x32xf32> -> vector<32x32xf32>
    %297 = arith.addf %293, %296 : vector<32x32xf32>
    %cst_125 = arith.constant 5.000000e-01 : f32
    %298 = vector.broadcast %cst_125 : f32 to vector<32x32xf32>
    %299 = arith.mulf %298, %297 : vector<32x32xf32>
    %cst_126 = arith.constant 0.707106769 : f32
    %300 = vector.broadcast %cst_126 : f32 to vector<32x32xf32>
    %301 = arith.mulf %297, %300 : vector<32x32xf32>
    %302 = math.erf %301 : vector<32x32xf32>
    %cst_127 = arith.constant 1.000000e+00 : f32
    %303 = vector.broadcast %cst_127 : f32 to vector<32x32xf32>
    %304 = arith.addf %303, %302 : vector<32x32xf32>
    %305 = arith.mulf %299, %304 : vector<32x32xf32>
    %cst_128 = arith.constant dense<0.000000e+00> : vector<32xf32>
    %306 = vector.multi_reduction <add>, %305, %cst_128 [1] : vector<32x32xf32> to vector<32xf32>
    %307 = vector.shape_cast %306 : vector<32xf32> to vector<32x1xf32>
    %cst_129 = arith.constant 3.200000e+01 : f32
    %308 = vector.broadcast %cst_129 : f32 to vector<32x1xf32>
    %309 = arith.divf %307, %308 : vector<32x1xf32>
    %310 = vector.broadcast %309 : vector<32x1xf32> to vector<32x32xf32>
    %311 = arith.subf %305, %310 : vector<32x32xf32>
    %312 = vector.broadcast %309 : vector<32x1xf32> to vector<32x32xf32>
    %313 = arith.subf %305, %312 : vector<32x32xf32>
    %314 = arith.mulf %311, %313 : vector<32x32xf32>
    %cst_130 = arith.constant dense<0.000000e+00> : vector<32xf32>
    %315 = vector.multi_reduction <add>, %314, %cst_130 [1] : vector<32x32xf32> to vector<32xf32>
    %316 = vector.shape_cast %315 : vector<32xf32> to vector<32x1xf32>
    %cst_131 = arith.constant 3.200000e+01 : f32
    %317 = vector.broadcast %cst_131 : f32 to vector<32x1xf32>
    %318 = arith.divf %316, %317 : vector<32x1xf32>
    %319 = vector.broadcast %309 : vector<32x1xf32> to vector<32x32xf32>
    %320 = arith.subf %305, %319 : vector<32x32xf32>
    %cst_132 = arith.constant 9.99999974E-6 : f32
    %321 = vector.broadcast %cst_132 : f32 to vector<32x1xf32>
    %322 = arith.addf %318, %321 : vector<32x1xf32>
    %323 = math.rsqrt %322 : vector<32x1xf32>
    %324 = vector.broadcast %323 : vector<32x1xf32> to vector<32x32xf32>
    %325 = arith.mulf %320, %324 : vector<32x32xf32>
    %326 = vector.broadcast %270 : vector<1x32xf32> to vector<32x32xf32>
    %327 = arith.mulf %325, %326 : vector<32x32xf32>
    %328 = vector.broadcast %271 : vector<1x32xf32> to vector<32x32xf32>
    %329 = arith.addf %327, %328 : vector<32x32xf32>
    %cst_133 = arith.constant dense<0.000000e+00> : vector<32x32xf32>
    %330 = tpu.matmul %329, %272, %cst_133 {dimension_numbers = #tpu.dot_dimension_numbers<[1], [0], [0], [1], [0, 0, 1, 1], [], []>} : vector<32x32xf32>, vector<32x32xf32>, vector<32x32xf32> -> vector<32x32xf32>
    %331 = vector.broadcast %273 : vector<1x32xf32> to vector<32x32xf32>
    %332 = arith.addf %330, %331 : vector<32x32xf32>
    %333 = math.tanh %332 : vector<32x32xf32>
    %c0_134 = arith.constant 0 : index
    %c0_135 = arith.constant 0 : index
    %334 = vector.load %arg33[%c0_134, %c0_135] : memref<96x32xf32, #tpu.memory_space<vmem>>, vector<96x32xf32>
    %c0_136 = arith.constant 0 : index
    %c0_137 = arith.constant 0 : index
    %335 = vector.load %arg34[%c0_136, %c0_137] : memref<96x32xf32, #tpu.memory_space<vmem>>, vector<96x32xf32>
    %c0_138 = arith.constant 0 : index
    %c0_139 = arith.constant 0 : index
    %336 = vector.load %arg35[%c0_138, %c0_139] : memref<1x32xf32, #tpu.memory_space<vmem>>, vector<1x32xf32>
    %c0_140 = arith.constant 0 : index
    %c0_141 = arith.constant 0 : index
    %337 = vector.load %arg36[%c0_140, %c0_141] : memref<1x32xf32, #tpu.memory_space<vmem>>, vector<1x32xf32>
    %c0_142 = arith.constant 0 : index
    %c0_143 = arith.constant 0 : index
    %338 = vector.load %arg37[%c0_142, %c0_143] : memref<32x32xf32, #tpu.memory_space<vmem>>, vector<32x32xf32>
    %c0_144 = arith.constant 0 : index
    %c0_145 = arith.constant 0 : index
    %339 = vector.load %arg38[%c0_144, %c0_145] : memref<1x32xf32, #tpu.memory_space<vmem>>, vector<1x32xf32>
    %340 = vector.extract_strided_slice %1 {offsets = [0, 0], sizes = [32, 1], strides = [1, 1]} : vector<32x3xf32> to vector<32x1xf32>
    %341 = vector.broadcast %340 : vector<32x1xf32> to vector<32x32xf32>
    %342 = arith.mulf %341, %333 : vector<32x32xf32>
    %343 = vector.extract_strided_slice %1 {offsets = [0, 1], sizes = [32, 1], strides = [1, 1]} : vector<32x3xf32> to vector<32x1xf32>
    %344 = vector.broadcast %343 : vector<32x1xf32> to vector<32x32xf32>
    %345 = arith.mulf %344, %333 : vector<32x32xf32>
    %346 = vector.extract_strided_slice %1 {offsets = [0, 2], sizes = [32, 1], strides = [1, 1]} : vector<32x3xf32> to vector<32x1xf32>
    %347 = vector.broadcast %346 : vector<32x1xf32> to vector<32x32xf32>
    %348 = arith.mulf %347, %333 : vector<32x32xf32>
    %349 = tpu.concatenate %342, %345, %348 in 1 : vector<32x32xf32>, vector<32x32xf32>, vector<32x32xf32> -> vector<32x96xf32>
    %cst_146 = arith.constant dense<0.000000e+00> : vector<32x32xf32>
    %350 = tpu.matmul %349, %335, %cst_146 {dimension_numbers = #tpu.dot_dimension_numbers<[1], [0], [0], [1], [0, 0, 1, 1], [], []>} : vector<32x96xf32>, vector<96x32xf32>, vector<32x32xf32> -> vector<32x32xf32>
    %cst_147 = arith.constant dense<0.000000e+00> : vector<96x32xf32>
    %351 = tpu.matmul %0, %333, %cst_147 {dimension_numbers = #tpu.dot_dimension_numbers<[1], [0], [0], [1], [0, 0, 1, 1], [], []>} : vector<96x32xf32>, vector<32x32xf32>, vector<96x32xf32> -> vector<96x32xf32>
    %352 = vector.extract_strided_slice %351 {offsets = [0, 0], sizes = [32, 32], strides = [1, 1]} : vector<96x32xf32> to vector<32x32xf32>
    %353 = vector.extract_strided_slice %334 {offsets = [0, 0], sizes = [32, 32], strides = [1, 1]} : vector<96x32xf32> to vector<32x32xf32>
    %cst_148 = arith.constant dense<0.000000e+00> : vector<32x32xf32>
    %354 = tpu.matmul %352, %353, %cst_148 {dimension_numbers = #tpu.dot_dimension_numbers<[1], [0], [0], [1], [0, 0, 1, 1], [], []>} : vector<32x32xf32>, vector<32x32xf32>, vector<32x32xf32> -> vector<32x32xf32>
    %355 = arith.addf %350, %354 : vector<32x32xf32>
    %356 = vector.extract_strided_slice %351 {offsets = [32, 0], sizes = [32, 32], strides = [1, 1]} : vector<96x32xf32> to vector<32x32xf32>
    %357 = vector.extract_strided_slice %334 {offsets = [32, 0], sizes = [32, 32], strides = [1, 1]} : vector<96x32xf32> to vector<32x32xf32>
    %cst_149 = arith.constant dense<0.000000e+00> : vector<32x32xf32>
    %358 = tpu.matmul %356, %357, %cst_149 {dimension_numbers = #tpu.dot_dimension_numbers<[1], [0], [0], [1], [0, 0, 1, 1], [], []>} : vector<32x32xf32>, vector<32x32xf32>, vector<32x32xf32> -> vector<32x32xf32>
    %359 = arith.addf %355, %358 : vector<32x32xf32>
    %360 = vector.extract_strided_slice %351 {offsets = [64, 0], sizes = [32, 32], strides = [1, 1]} : vector<96x32xf32> to vector<32x32xf32>
    %361 = vector.extract_strided_slice %334 {offsets = [64, 0], sizes = [32, 32], strides = [1, 1]} : vector<96x32xf32> to vector<32x32xf32>
    %cst_150 = arith.constant dense<0.000000e+00> : vector<32x32xf32>
    %362 = tpu.matmul %360, %361, %cst_150 {dimension_numbers = #tpu.dot_dimension_numbers<[1], [0], [0], [1], [0, 0, 1, 1], [], []>} : vector<32x32xf32>, vector<32x32xf32>, vector<32x32xf32> -> vector<32x32xf32>
    %363 = arith.addf %359, %362 : vector<32x32xf32>
    %cst_151 = arith.constant 5.000000e-01 : f32
    %364 = vector.broadcast %cst_151 : f32 to vector<32x32xf32>
    %365 = arith.mulf %364, %363 : vector<32x32xf32>
    %cst_152 = arith.constant 0.707106769 : f32
    %366 = vector.broadcast %cst_152 : f32 to vector<32x32xf32>
    %367 = arith.mulf %363, %366 : vector<32x32xf32>
    %368 = math.erf %367 : vector<32x32xf32>
    %cst_153 = arith.constant 1.000000e+00 : f32
    %369 = vector.broadcast %cst_153 : f32 to vector<32x32xf32>
    %370 = arith.addf %369, %368 : vector<32x32xf32>
    %371 = arith.mulf %365, %370 : vector<32x32xf32>
    %cst_154 = arith.constant dense<0.000000e+00> : vector<32xf32>
    %372 = vector.multi_reduction <add>, %371, %cst_154 [1] : vector<32x32xf32> to vector<32xf32>
    %373 = vector.shape_cast %372 : vector<32xf32> to vector<32x1xf32>
    %cst_155 = arith.constant 3.200000e+01 : f32
    %374 = vector.broadcast %cst_155 : f32 to vector<32x1xf32>
    %375 = arith.divf %373, %374 : vector<32x1xf32>
    %376 = vector.broadcast %375 : vector<32x1xf32> to vector<32x32xf32>
    %377 = arith.subf %371, %376 : vector<32x32xf32>
    %378 = vector.broadcast %375 : vector<32x1xf32> to vector<32x32xf32>
    %379 = arith.subf %371, %378 : vector<32x32xf32>
    %380 = arith.mulf %377, %379 : vector<32x32xf32>
    %cst_156 = arith.constant dense<0.000000e+00> : vector<32xf32>
    %381 = vector.multi_reduction <add>, %380, %cst_156 [1] : vector<32x32xf32> to vector<32xf32>
    %382 = vector.shape_cast %381 : vector<32xf32> to vector<32x1xf32>
    %cst_157 = arith.constant 3.200000e+01 : f32
    %383 = vector.broadcast %cst_157 : f32 to vector<32x1xf32>
    %384 = arith.divf %382, %383 : vector<32x1xf32>
    %385 = vector.broadcast %375 : vector<32x1xf32> to vector<32x32xf32>
    %386 = arith.subf %371, %385 : vector<32x32xf32>
    %cst_158 = arith.constant 9.99999974E-6 : f32
    %387 = vector.broadcast %cst_158 : f32 to vector<32x1xf32>
    %388 = arith.addf %384, %387 : vector<32x1xf32>
    %389 = math.rsqrt %388 : vector<32x1xf32>
    %390 = vector.broadcast %389 : vector<32x1xf32> to vector<32x32xf32>
    %391 = arith.mulf %386, %390 : vector<32x32xf32>
    %392 = vector.broadcast %336 : vector<1x32xf32> to vector<32x32xf32>
    %393 = arith.mulf %391, %392 : vector<32x32xf32>
    %394 = vector.broadcast %337 : vector<1x32xf32> to vector<32x32xf32>
    %395 = arith.addf %393, %394 : vector<32x32xf32>
    %cst_159 = arith.constant dense<0.000000e+00> : vector<32x32xf32>
    %396 = tpu.matmul %395, %338, %cst_159 {dimension_numbers = #tpu.dot_dimension_numbers<[1], [0], [0], [1], [0, 0, 1, 1], [], []>} : vector<32x32xf32>, vector<32x32xf32>, vector<32x32xf32> -> vector<32x32xf32>
    %397 = vector.broadcast %339 : vector<1x32xf32> to vector<32x32xf32>
    %398 = arith.addf %396, %397 : vector<32x32xf32>
    %399 = math.tanh %398 : vector<32x32xf32>
    %c0_160 = arith.constant 0 : index
    %c0_161 = arith.constant 0 : index
    %400 = vector.load %arg39[%c0_160, %c0_161] : memref<96x32xf32, #tpu.memory_space<vmem>>, vector<96x32xf32>
    %c0_162 = arith.constant 0 : index
    %c0_163 = arith.constant 0 : index
    %401 = vector.load %arg40[%c0_162, %c0_163] : memref<96x32xf32, #tpu.memory_space<vmem>>, vector<96x32xf32>
    %c0_164 = arith.constant 0 : index
    %c0_165 = arith.constant 0 : index
    %402 = vector.load %arg41[%c0_164, %c0_165] : memref<1x32xf32, #tpu.memory_space<vmem>>, vector<1x32xf32>
    %c0_166 = arith.constant 0 : index
    %c0_167 = arith.constant 0 : index
    %403 = vector.load %arg42[%c0_166, %c0_167] : memref<1x32xf32, #tpu.memory_space<vmem>>, vector<1x32xf32>
    %c0_168 = arith.constant 0 : index
    %c0_169 = arith.constant 0 : index
    %404 = vector.load %arg43[%c0_168, %c0_169] : memref<32x32xf32, #tpu.memory_space<vmem>>, vector<32x32xf32>
    %c0_170 = arith.constant 0 : index
    %c0_171 = arith.constant 0 : index
    %405 = vector.load %arg44[%c0_170, %c0_171] : memref<1x32xf32, #tpu.memory_space<vmem>>, vector<1x32xf32>
    %406 = vector.extract_strided_slice %1 {offsets = [0, 0], sizes = [32, 1], strides = [1, 1]} : vector<32x3xf32> to vector<32x1xf32>
    %407 = vector.broadcast %406 : vector<32x1xf32> to vector<32x32xf32>
    %408 = arith.mulf %407, %399 : vector<32x32xf32>
    %409 = vector.extract_strided_slice %1 {offsets = [0, 1], sizes = [32, 1], strides = [1, 1]} : vector<32x3xf32> to vector<32x1xf32>
    %410 = vector.broadcast %409 : vector<32x1xf32> to vector<32x32xf32>
    %411 = arith.mulf %410, %399 : vector<32x32xf32>
    %412 = vector.extract_strided_slice %1 {offsets = [0, 2], sizes = [32, 1], strides = [1, 1]} : vector<32x3xf32> to vector<32x1xf32>
    %413 = vector.broadcast %412 : vector<32x1xf32> to vector<32x32xf32>
    %414 = arith.mulf %413, %399 : vector<32x32xf32>
    %415 = tpu.concatenate %408, %411, %414 in 1 : vector<32x32xf32>, vector<32x32xf32>, vector<32x32xf32> -> vector<32x96xf32>
    %cst_172 = arith.constant dense<0.000000e+00> : vector<32x32xf32>
    %416 = tpu.matmul %415, %401, %cst_172 {dimension_numbers = #tpu.dot_dimension_numbers<[1], [0], [0], [1], [0, 0, 1, 1], [], []>} : vector<32x96xf32>, vector<96x32xf32>, vector<32x32xf32> -> vector<32x32xf32>
    %cst_173 = arith.constant dense<0.000000e+00> : vector<96x32xf32>
    %417 = tpu.matmul %0, %399, %cst_173 {dimension_numbers = #tpu.dot_dimension_numbers<[1], [0], [0], [1], [0, 0, 1, 1], [], []>} : vector<96x32xf32>, vector<32x32xf32>, vector<96x32xf32> -> vector<96x32xf32>
    %418 = vector.extract_strided_slice %417 {offsets = [0, 0], sizes = [32, 32], strides = [1, 1]} : vector<96x32xf32> to vector<32x32xf32>
    %419 = vector.extract_strided_slice %400 {offsets = [0, 0], sizes = [32, 32], strides = [1, 1]} : vector<96x32xf32> to vector<32x32xf32>
    %cst_174 = arith.constant dense<0.000000e+00> : vector<32x32xf32>
    %420 = tpu.matmul %418, %419, %cst_174 {dimension_numbers = #tpu.dot_dimension_numbers<[1], [0], [0], [1], [0, 0, 1, 1], [], []>} : vector<32x32xf32>, vector<32x32xf32>, vector<32x32xf32> -> vector<32x32xf32>
    %421 = arith.addf %416, %420 : vector<32x32xf32>
    %422 = vector.extract_strided_slice %417 {offsets = [32, 0], sizes = [32, 32], strides = [1, 1]} : vector<96x32xf32> to vector<32x32xf32>
    %423 = vector.extract_strided_slice %400 {offsets = [32, 0], sizes = [32, 32], strides = [1, 1]} : vector<96x32xf32> to vector<32x32xf32>
    %cst_175 = arith.constant dense<0.000000e+00> : vector<32x32xf32>
    %424 = tpu.matmul %422, %423, %cst_175 {dimension_numbers = #tpu.dot_dimension_numbers<[1], [0], [0], [1], [0, 0, 1, 1], [], []>} : vector<32x32xf32>, vector<32x32xf32>, vector<32x32xf32> -> vector<32x32xf32>
    %425 = arith.addf %421, %424 : vector<32x32xf32>
    %426 = vector.extract_strided_slice %417 {offsets = [64, 0], sizes = [32, 32], strides = [1, 1]} : vector<96x32xf32> to vector<32x32xf32>
    %427 = vector.extract_strided_slice %400 {offsets = [64, 0], sizes = [32, 32], strides = [1, 1]} : vector<96x32xf32> to vector<32x32xf32>
    %cst_176 = arith.constant dense<0.000000e+00> : vector<32x32xf32>
    %428 = tpu.matmul %426, %427, %cst_176 {dimension_numbers = #tpu.dot_dimension_numbers<[1], [0], [0], [1], [0, 0, 1, 1], [], []>} : vector<32x32xf32>, vector<32x32xf32>, vector<32x32xf32> -> vector<32x32xf32>
    %429 = arith.addf %425, %428 : vector<32x32xf32>
    %cst_177 = arith.constant 5.000000e-01 : f32
    %430 = vector.broadcast %cst_177 : f32 to vector<32x32xf32>
    %431 = arith.mulf %430, %429 : vector<32x32xf32>
    %cst_178 = arith.constant 0.707106769 : f32
    %432 = vector.broadcast %cst_178 : f32 to vector<32x32xf32>
    %433 = arith.mulf %429, %432 : vector<32x32xf32>
    %434 = math.erf %433 : vector<32x32xf32>
    %cst_179 = arith.constant 1.000000e+00 : f32
    %435 = vector.broadcast %cst_179 : f32 to vector<32x32xf32>
    %436 = arith.addf %435, %434 : vector<32x32xf32>
    %437 = arith.mulf %431, %436 : vector<32x32xf32>
    %cst_180 = arith.constant dense<0.000000e+00> : vector<32xf32>
    %438 = vector.multi_reduction <add>, %437, %cst_180 [1] : vector<32x32xf32> to vector<32xf32>
    %439 = vector.shape_cast %438 : vector<32xf32> to vector<32x1xf32>
    %cst_181 = arith.constant 3.200000e+01 : f32
    %440 = vector.broadcast %cst_181 : f32 to vector<32x1xf32>
    %441 = arith.divf %439, %440 : vector<32x1xf32>
    %442 = vector.broadcast %441 : vector<32x1xf32> to vector<32x32xf32>
    %443 = arith.subf %437, %442 : vector<32x32xf32>
    %444 = vector.broadcast %441 : vector<32x1xf32> to vector<32x32xf32>
    %445 = arith.subf %437, %444 : vector<32x32xf32>
    %446 = arith.mulf %443, %445 : vector<32x32xf32>
    %cst_182 = arith.constant dense<0.000000e+00> : vector<32xf32>
    %447 = vector.multi_reduction <add>, %446, %cst_182 [1] : vector<32x32xf32> to vector<32xf32>
    %448 = vector.shape_cast %447 : vector<32xf32> to vector<32x1xf32>
    %cst_183 = arith.constant 3.200000e+01 : f32
    %449 = vector.broadcast %cst_183 : f32 to vector<32x1xf32>
    %450 = arith.divf %448, %449 : vector<32x1xf32>
    %451 = vector.broadcast %441 : vector<32x1xf32> to vector<32x32xf32>
    %452 = arith.subf %437, %451 : vector<32x32xf32>
    %cst_184 = arith.constant 9.99999974E-6 : f32
    %453 = vector.broadcast %cst_184 : f32 to vector<32x1xf32>
    %454 = arith.addf %450, %453 : vector<32x1xf32>
    %455 = math.rsqrt %454 : vector<32x1xf32>
    %456 = vector.broadcast %455 : vector<32x1xf32> to vector<32x32xf32>
    %457 = arith.mulf %452, %456 : vector<32x32xf32>
    %458 = vector.broadcast %402 : vector<1x32xf32> to vector<32x32xf32>
    %459 = arith.mulf %457, %458 : vector<32x32xf32>
    %460 = vector.broadcast %403 : vector<1x32xf32> to vector<32x32xf32>
    %461 = arith.addf %459, %460 : vector<32x32xf32>
    %cst_185 = arith.constant dense<0.000000e+00> : vector<32x32xf32>
    %462 = tpu.matmul %461, %404, %cst_185 {dimension_numbers = #tpu.dot_dimension_numbers<[1], [0], [0], [1], [0, 0, 1, 1], [], []>} : vector<32x32xf32>, vector<32x32xf32>, vector<32x32xf32> -> vector<32x32xf32>
    %463 = vector.broadcast %405 : vector<1x32xf32> to vector<32x32xf32>
    %464 = arith.addf %462, %463 : vector<32x32xf32>
    %465 = math.tanh %464 : vector<32x32xf32>
    %466 = tpu.concatenate %267, %465 in 1 : vector<32x32xf32>, vector<32x32xf32> -> vector<32x64xf32>
    %c0_186 = arith.constant 0 : index
    %c0_187 = arith.constant 0 : index
    %467 = vector.load %arg45[%c0_186, %c0_187] : memref<192x64xf32, #tpu.memory_space<vmem>>, vector<192x64xf32>
    %c0_188 = arith.constant 0 : index
    %c0_189 = arith.constant 0 : index
    %468 = vector.load %arg46[%c0_188, %c0_189] : memref<192x64xf32, #tpu.memory_space<vmem>>, vector<192x64xf32>
    %c0_190 = arith.constant 0 : index
    %c0_191 = arith.constant 0 : index
    %469 = vector.load %arg47[%c0_190, %c0_191] : memref<1x64xf32, #tpu.memory_space<vmem>>, vector<1x64xf32>
    %c0_192 = arith.constant 0 : index
    %c0_193 = arith.constant 0 : index
    %470 = vector.load %arg48[%c0_192, %c0_193] : memref<1x64xf32, #tpu.memory_space<vmem>>, vector<1x64xf32>
    %c0_194 = arith.constant 0 : index
    %c0_195 = arith.constant 0 : index
    %471 = vector.load %arg49[%c0_194, %c0_195] : memref<64x32xf32, #tpu.memory_space<vmem>>, vector<64x32xf32>
    %c0_196 = arith.constant 0 : index
    %c0_197 = arith.constant 0 : index
    %472 = vector.load %arg50[%c0_196, %c0_197] : memref<1x32xf32, #tpu.memory_space<vmem>>, vector<1x32xf32>
    %473 = vector.extract_strided_slice %1 {offsets = [0, 0], sizes = [32, 1], strides = [1, 1]} : vector<32x3xf32> to vector<32x1xf32>
    %474 = vector.broadcast %473 : vector<32x1xf32> to vector<32x64xf32>
    %475 = arith.mulf %474, %466 : vector<32x64xf32>
    %476 = vector.extract_strided_slice %1 {offsets = [0, 1], sizes = [32, 1], strides = [1, 1]} : vector<32x3xf32> to vector<32x1xf32>
    %477 = vector.broadcast %476 : vector<32x1xf32> to vector<32x64xf32>
    %478 = arith.mulf %477, %466 : vector<32x64xf32>
    %479 = vector.extract_strided_slice %1 {offsets = [0, 2], sizes = [32, 1], strides = [1, 1]} : vector<32x3xf32> to vector<32x1xf32>
    %480 = vector.broadcast %479 : vector<32x1xf32> to vector<32x64xf32>
    %481 = arith.mulf %480, %466 : vector<32x64xf32>
    %482 = tpu.concatenate %475, %478, %481 in 1 : vector<32x64xf32>, vector<32x64xf32>, vector<32x64xf32> -> vector<32x192xf32>
    %cst_198 = arith.constant dense<0.000000e+00> : vector<32x64xf32>
    %483 = tpu.matmul %482, %468, %cst_198 {dimension_numbers = #tpu.dot_dimension_numbers<[1], [0], [0], [1], [0, 0, 1, 1], [], []>} : vector<32x192xf32>, vector<192x64xf32>, vector<32x64xf32> -> vector<32x64xf32>
    %cst_199 = arith.constant dense<0.000000e+00> : vector<96x64xf32>
    %484 = tpu.matmul %0, %466, %cst_199 {dimension_numbers = #tpu.dot_dimension_numbers<[1], [0], [0], [1], [0, 0, 1, 1], [], []>} : vector<96x32xf32>, vector<32x64xf32>, vector<96x64xf32> -> vector<96x64xf32>
    %485 = vector.extract_strided_slice %484 {offsets = [0, 0], sizes = [32, 64], strides = [1, 1]} : vector<96x64xf32> to vector<32x64xf32>
    %486 = vector.extract_strided_slice %467 {offsets = [0, 0], sizes = [64, 64], strides = [1, 1]} : vector<192x64xf32> to vector<64x64xf32>
    %cst_200 = arith.constant dense<0.000000e+00> : vector<32x64xf32>
    %487 = tpu.matmul %485, %486, %cst_200 {dimension_numbers = #tpu.dot_dimension_numbers<[1], [0], [0], [1], [0, 0, 1, 1], [], []>} : vector<32x64xf32>, vector<64x64xf32>, vector<32x64xf32> -> vector<32x64xf32>
    %488 = arith.addf %483, %487 : vector<32x64xf32>
    %489 = vector.extract_strided_slice %484 {offsets = [32, 0], sizes = [32, 64], strides = [1, 1]} : vector<96x64xf32> to vector<32x64xf32>
    %490 = vector.extract_strided_slice %467 {offsets = [64, 0], sizes = [64, 64], strides = [1, 1]} : vector<192x64xf32> to vector<64x64xf32>
    %cst_201 = arith.constant dense<0.000000e+00> : vector<32x64xf32>
    %491 = tpu.matmul %489, %490, %cst_201 {dimension_numbers = #tpu.dot_dimension_numbers<[1], [0], [0], [1], [0, 0, 1, 1], [], []>} : vector<32x64xf32>, vector<64x64xf32>, vector<32x64xf32> -> vector<32x64xf32>
    %492 = arith.addf %488, %491 : vector<32x64xf32>
    %493 = vector.extract_strided_slice %484 {offsets = [64, 0], sizes = [32, 64], strides = [1, 1]} : vector<96x64xf32> to vector<32x64xf32>
    %494 = vector.extract_strided_slice %467 {offsets = [128, 0], sizes = [64, 64], strides = [1, 1]} : vector<192x64xf32> to vector<64x64xf32>
    %cst_202 = arith.constant dense<0.000000e+00> : vector<32x64xf32>
    %495 = tpu.matmul %493, %494, %cst_202 {dimension_numbers = #tpu.dot_dimension_numbers<[1], [0], [0], [1], [0, 0, 1, 1], [], []>} : vector<32x64xf32>, vector<64x64xf32>, vector<32x64xf32> -> vector<32x64xf32>
    %496 = arith.addf %492, %495 : vector<32x64xf32>
    %cst_203 = arith.constant 5.000000e-01 : f32
    %497 = vector.broadcast %cst_203 : f32 to vector<32x64xf32>
    %498 = arith.mulf %497, %496 : vector<32x64xf32>
    %cst_204 = arith.constant 0.707106769 : f32
    %499 = vector.broadcast %cst_204 : f32 to vector<32x64xf32>
    %500 = arith.mulf %496, %499 : vector<32x64xf32>
    %501 = math.erf %500 : vector<32x64xf32>
    %cst_205 = arith.constant 1.000000e+00 : f32
    %502 = vector.broadcast %cst_205 : f32 to vector<32x64xf32>
    %503 = arith.addf %502, %501 : vector<32x64xf32>
    %504 = arith.mulf %498, %503 : vector<32x64xf32>
    %cst_206 = arith.constant dense<0.000000e+00> : vector<32xf32>
    %505 = vector.multi_reduction <add>, %504, %cst_206 [1] : vector<32x64xf32> to vector<32xf32>
    %506 = vector.shape_cast %505 : vector<32xf32> to vector<32x1xf32>
    %cst_207 = arith.constant 6.400000e+01 : f32
    %507 = vector.broadcast %cst_207 : f32 to vector<32x1xf32>
    %508 = arith.divf %506, %507 : vector<32x1xf32>
    %509 = vector.broadcast %508 : vector<32x1xf32> to vector<32x64xf32>
    %510 = arith.subf %504, %509 : vector<32x64xf32>
    %511 = vector.broadcast %508 : vector<32x1xf32> to vector<32x64xf32>
    %512 = arith.subf %504, %511 : vector<32x64xf32>
    %513 = arith.mulf %510, %512 : vector<32x64xf32>
    %cst_208 = arith.constant dense<0.000000e+00> : vector<32xf32>
    %514 = vector.multi_reduction <add>, %513, %cst_208 [1] : vector<32x64xf32> to vector<32xf32>
    %515 = vector.shape_cast %514 : vector<32xf32> to vector<32x1xf32>
    %cst_209 = arith.constant 6.400000e+01 : f32
    %516 = vector.broadcast %cst_209 : f32 to vector<32x1xf32>
    %517 = arith.divf %515, %516 : vector<32x1xf32>
    %518 = vector.broadcast %508 : vector<32x1xf32> to vector<32x64xf32>
    %519 = arith.subf %504, %518 : vector<32x64xf32>
    %cst_210 = arith.constant 9.99999974E-6 : f32
    %520 = vector.broadcast %cst_210 : f32 to vector<32x1xf32>
    %521 = arith.addf %517, %520 : vector<32x1xf32>
    %522 = math.rsqrt %521 : vector<32x1xf32>
    %523 = vector.broadcast %522 : vector<32x1xf32> to vector<32x64xf32>
    %524 = arith.mulf %519, %523 : vector<32x64xf32>
    %525 = vector.broadcast %469 : vector<1x64xf32> to vector<32x64xf32>
    %526 = arith.mulf %524, %525 : vector<32x64xf32>
    %527 = vector.broadcast %470 : vector<1x64xf32> to vector<32x64xf32>
    %528 = arith.addf %526, %527 : vector<32x64xf32>
    %cst_211 = arith.constant dense<0.000000e+00> : vector<32x32xf32>
    %529 = tpu.matmul %528, %471, %cst_211 {dimension_numbers = #tpu.dot_dimension_numbers<[1], [0], [0], [1], [0, 0, 1, 1], [], []>} : vector<32x64xf32>, vector<64x32xf32>, vector<32x32xf32> -> vector<32x32xf32>
    %530 = vector.broadcast %472 : vector<1x32xf32> to vector<32x32xf32>
    %531 = arith.addf %529, %530 : vector<32x32xf32>
    %532 = math.tanh %531 : vector<32x32xf32>
    %c0_212 = arith.constant 0 : index
    %c0_213 = arith.constant 0 : index
    %533 = vector.load %arg51[%c0_212, %c0_213] : memref<32x32xf32, #tpu.memory_space<vmem>>, vector<32x32xf32>
    tpu.vector_store %arg51[%c0_212, %c0_213], %532 {strides = array<i32>} : memref<32x32xf32, #tpu.memory_space<vmem>>, vector<32x32xf32>,
    return
  }
}

</mosaic_0001>

<llo_original>
// kernel: encoder_forward.1
$region0: #{encoder_forward.1}
  #allocation0 [shape = 'u32[]', space=smem, size = 0x4, offset = 0x4, fixed_abs, tag = 'smem constant byte address 0x4 - core index']
  #allocation1 [shape = 'u32[72,128]{1,0:T(1,128)}', space=vmem, size = 0x9000, scoped, tag = 'internal scratch']
  %s0 = inlined_call_operand.smem [shape: u32[52], index: -1, kind: input, shape index: {}]
  %s1 = sld [smem:[%s0]]
  %s2 = scalar_lea.smem %s0, 1
  %s3 = sld [smem:[%s2]]
  %s4 = scalar_lea.smem %s0, 2
  %s5 = sld [smem:[%s4]]
  %s6 = scalar_lea.smem %s0, 3
  %s7 = sld [smem:[%s6]]
  %s8 = scalar_lea.smem %s0, 4
  %s9 = sld [smem:[%s8]]
  %s10 = scalar_lea.smem %s0, 5
  %s11 = sld [smem:[%s10]]
  %s12 = scalar_lea.smem %s0, 6
  %s13 = sld [smem:[%s12]]
  %s14 = scalar_lea.smem %s0, 7
  %s15 = sld [smem:[%s14]]
  %s16 = scalar_lea.smem %s0, 8
  %s17 = sld [smem:[%s16]]
  %s18 = scalar_lea.smem %s0, 9
  %s19 = sld [smem:[%s18]]
  %s20 = scalar_lea.smem %s0, 10
  %s21 = sld [smem:[%s20]]
  %s22 = scalar_lea.smem %s0, 11
  %s23 = sld [smem:[%s22]]
  %s24 = scalar_lea.smem %s0, 12
  %s25 = sld [smem:[%s24]]
  %s26 = scalar_lea.smem %s0, 13
  %s27 = sld [smem:[%s26]]
  %s28 = scalar_lea.smem %s0, 14
  %s29 = sld [smem:[%s28]]
  %s30 = scalar_lea.smem %s0, 15
  %s31 = sld [smem:[%s30]]
  %s32 = scalar_lea.smem %s0, 16
  %s33 = sld [smem:[%s32]]
  %s34 = scalar_lea.smem %s0, 17
  %s35 = sld [smem:[%s34]]
  %s36 = scalar_lea.smem %s0, 18
  %s37 = sld [smem:[%s36]]
  %s38 = scalar_lea.smem %s0, 19
  %s39 = sld [smem:[%s38]]
  %s40 = scalar_lea.smem %s0, 20
  %s41 = sld [smem:[%s40]]
  %s42 = scalar_lea.smem %s0, 21
  %s43 = sld [smem:[%s42]]
  %s44 = scalar_lea.smem %s0, 22
  %s45 = sld [smem:[%s44]]
  %s46 = scalar_lea.smem %s0, 23
  %s47 = sld [smem:[%s46]]
  %s48 = scalar_lea.smem %s0, 24
  %s49 = sld [smem:[%s48]]
  %s50 = scalar_lea.smem %s0, 25
  %s51 = sld [smem:[%s50]]
  %s52 = scalar_lea.smem %s0, 26
  %s53 = sld [smem:[%s52]]
  %s54 = scalar_lea.smem %s0, 27
  %s55 = sld [smem:[%s54]]
  %s56 = scalar_lea.smem %s0, 28
  %s57 = sld [smem:[%s56]]
  %s58 = scalar_lea.smem %s0, 29
  %s59 = sld [smem:[%s58]]
  %s60 = scalar_lea.smem %s0, 30
  %s61 = sld [smem:[%s60]]
  %s62 = scalar_lea.smem %s0, 31
  %s63 = sld [smem:[%s62]]
  %s64 = scalar_lea.smem %s0, 32
  %s65 = sld [smem:[%s64]]
  %s66 = scalar_lea.smem %s0, 33
  %s67 = sld [smem:[%s66]]
  %s68 = scalar_lea.smem %s0, 34
  %s69 = sld [smem:[%s68]]
  %s70 = scalar_lea.smem %s0, 35
  %s71 = sld [smem:[%s70]]
  %s72 = scalar_lea.smem %s0, 36
  %s73 = sld [smem:[%s72]]
  %s74 = scalar_lea.smem %s0, 37
  %s75 = sld [smem:[%s74]]
  %s76 = scalar_lea.smem %s0, 38
  %s77 = sld [smem:[%s76]]
  %s78 = scalar_lea.smem %s0, 39
  %s79 = sld [smem:[%s78]]
  %s80 = scalar_lea.smem %s0, 40
  %s81 = sld [smem:[%s80]]
  %s82 = scalar_lea.smem %s0, 41
  %s83 = sld [smem:[%s82]]
  %s84 = scalar_lea.smem %s0, 42
  %s85 = sld [smem:[%s84]]
  %s86 = scalar_lea.smem %s0, 43
  %s87 = sld [smem:[%s86]]
  %s88 = scalar_lea.smem %s0, 44
  %s89 = sld [smem:[%s88]]
  %s90 = scalar_lea.smem %s0, 45
  %s91 = sld [smem:[%s90]]
  %s92 = scalar_lea.smem %s0, 46
  %s93 = sld [smem:[%s92]]
  %s94 = scalar_lea.smem %s0, 47
  %s95 = sld [smem:[%s94]]
  %s96 = scalar_lea.smem %s0, 48
  %s97 = sld [smem:[%s96]]
  %s98 = scalar_lea.smem %s0, 49
  %s99 = sld [smem:[%s98]]
  %s100 = scalar_lea.smem %s0, 50
  %s101 = sld [smem:[%s100]]
  %s102 = scalar_lea.smem %s0, 51
  %s103 = sld [smem:[%s102]]
  %s104 = sld [smem:[#allocation0]]
  $region214: #{encoder_forward.1} parent=0
    _
  %s106 = ssub.s32 1, %s104
  %s107 = scalar_select 0, %s106, %s104
  // Predicated region
  $region2: #{encoder_forward.1} parent=0 // pred_check
    _
  $region3: #{encoder_forward.1} parent=0 // pred_check_branch
    %109 = sbr.rel (0) target = $region5
  $region4: #{encoder_forward.1} parent=0 // pred_region
    _
  $region5: #{encoder_forward.1} parent=0 // pred_fallthru
    _
  // Predicated region
  $region6: #{encoder_forward.1} parent=0 // pred_check
    _
  $region7: #{encoder_forward.1} parent=0 // pred_check_branch
    %111 = sbr.rel (0) target = $region9
  $region8: #{encoder_forward.1} parent=0 // pred_region
    _
  $region9: #{encoder_forward.1} parent=0 // pred_fallthru
    _
  // Predicated region
  $region10: #{encoder_forward.1} parent=0 // pred_check
    _
  $region11: #{encoder_forward.1} parent=0 // pred_check_branch
    %113 = sbr.rel (0) target = $region13
  $region12: #{encoder_forward.1} parent=0 // pred_region
    _
  $region13: #{encoder_forward.1} parent=0 // pred_fallthru
    _
  // Predicated region
  $region14: #{encoder_forward.1} parent=0 // pred_check
    _
  $region15: #{encoder_forward.1} parent=0 // pred_check_branch
    %115 = sbr.rel (0) target = $region17
  $region16: #{encoder_forward.1} parent=0 // pred_region
    _
  $region17: #{encoder_forward.1} parent=0 // pred_fallthru
    _
  // Predicated region
  $region18: #{encoder_forward.1} parent=0 // pred_check
    _
  $region19: #{encoder_forward.1} parent=0 // pred_check_branch
    %117 = sbr.rel (0) target = $region21
  $region20: #{encoder_forward.1} parent=0 // pred_region
    _
  $region21: #{encoder_forward.1} parent=0 // pred_fallthru
    _
  // Predicated region
  $region22: #{encoder_forward.1} parent=0 // pred_check
    _
  $region23: #{encoder_forward.1} parent=0 // pred_check_branch
    %119 = sbr.rel (0) target = $region25
  $region24: #{encoder_forward.1} parent=0 // pred_region
    _
  $region25: #{encoder_forward.1} parent=0 // pred_fallthru
    _
  // Predicated region
  $region26: #{encoder_forward.1} parent=0 // pred_check
    _
  $region27: #{encoder_forward.1} parent=0 // pred_check_branch
    %121 = sbr.rel (0) target = $region29
  $region28: #{encoder_forward.1} parent=0 // pred_region
    _
  $region29: #{encoder_forward.1} parent=0 // pred_fallthru
    _
  // Predicated region
  $region30: #{encoder_forward.1} parent=0 // pred_check
    _
  $region31: #{encoder_forward.1} parent=0 // pred_check_branch
    %123 = sbr.rel (0) target = $region33
  $region32: #{encoder_forward.1} parent=0 // pred_region
    _
  $region33: #{encoder_forward.1} parent=0 // pred_fallthru
    _
  // Predicated region
  $region34: #{encoder_forward.1} parent=0 // pred_check
    _
  $region35: #{encoder_forward.1} parent=0 // pred_check_branch
    %125 = sbr.rel (0) target = $region37
  $region36: #{encoder_forward.1} parent=0 // pred_region
    _
  $region37: #{encoder_forward.1} parent=0 // pred_fallthru
    _
  // Predicated region
  $region38: #{encoder_forward.1} parent=0 // pred_check
    _
  $region39: #{encoder_forward.1} parent=0 // pred_check_branch
    %127 = sbr.rel (0) target = $region41
  $region40: #{encoder_forward.1} parent=0 // pred_region
    _
  $region41: #{encoder_forward.1} parent=0 // pred_fallthru
    _
  // Predicated region
  $region42: #{encoder_forward.1} parent=0 // pred_check
    _
  $region43: #{encoder_forward.1} parent=0 // pred_check_branch
    %129 = sbr.rel (0) target = $region45
  $region44: #{encoder_forward.1} parent=0 // pred_region
    _
  $region45: #{encoder_forward.1} parent=0 // pred_fallthru
    _
  // Predicated region
  $region46: #{encoder_forward.1} parent=0 // pred_check
    _
  $region47: #{encoder_forward.1} parent=0 // pred_check_branch
    %131 = sbr.rel (0) target = $region49
  $region48: #{encoder_forward.1} parent=0 // pred_region
    _
  $region49: #{encoder_forward.1} parent=0 // pred_fallthru
    _
  // Predicated region
  $region50: #{encoder_forward.1} parent=0 // pred_check
    _
  $region51: #{encoder_forward.1} parent=0 // pred_check_branch
    %133 = sbr.rel (0) target = $region53
  $region52: #{encoder_forward.1} parent=0 // pred_region
    _
  $region53: #{encoder_forward.1} parent=0 // pred_fallthru
    _
  // Predicated region
  $region54: #{encoder_forward.1} parent=0 // pred_check
    _
  $region55: #{encoder_forward.1} parent=0 // pred_check_branch
    %135 = sbr.rel (0) target = $region57
  $region56: #{encoder_forward.1} parent=0 // pred_region
    _
  $region57: #{encoder_forward.1} parent=0 // pred_fallthru
    _
  // Predicated region
  $region58: #{encoder_forward.1} parent=0 // pred_check
    _
  $region59: #{encoder_forward.1} parent=0 // pred_check_branch
    %137 = sbr.rel (0) target = $region61
  $region60: #{encoder_forward.1} parent=0 // pred_region
    _
  $region61: #{encoder_forward.1} parent=0 // pred_fallthru
    _
  // Predicated region
  $region62: #{encoder_forward.1} parent=0 // pred_check
    _
  $region63: #{encoder_forward.1} parent=0 // pred_check_branch
    %139 = sbr.rel (0) target = $region65
  $region64: #{encoder_forward.1} parent=0 // pred_region
    _
  $region65: #{encoder_forward.1} parent=0 // pred_fallthru
    _
  // Predicated region
  $region66: #{encoder_forward.1} parent=0 // pred_check
    _
  $region67: #{encoder_forward.1} parent=0 // pred_check_branch
    %141 = sbr.rel (0) target = $region69
  $region68: #{encoder_forward.1} parent=0 // pred_region
    _
  $region69: #{encoder_forward.1} parent=0 // pred_fallthru
    _
  // Predicated region
  $region70: #{encoder_forward.1} parent=0 // pred_check
    _
  $region71: #{encoder_forward.1} parent=0 // pred_check_branch
    %143 = sbr.rel (0) target = $region73
  $region72: #{encoder_forward.1} parent=0 // pred_region
    _
  $region73: #{encoder_forward.1} parent=0 // pred_fallthru
    _
  // Predicated region
  $region74: #{encoder_forward.1} parent=0 // pred_check
    _
  $region75: #{encoder_forward.1} parent=0 // pred_check_branch
    %145 = sbr.rel (0) target = $region77
  $region76: #{encoder_forward.1} parent=0 // pred_region
    _
  $region77: #{encoder_forward.1} parent=0 // pred_fallthru
    _
  // Predicated region
  $region78: #{encoder_forward.1} parent=0 // pred_check
    _
  $region79: #{encoder_forward.1} parent=0 // pred_check_branch
    %147 = sbr.rel (0) target = $region81
  $region80: #{encoder_forward.1} parent=0 // pred_region
    _
  $region81: #{encoder_forward.1} parent=0 // pred_fallthru
    _
  // Predicated region
  $region82: #{encoder_forward.1} parent=0 // pred_check
    _
  $region83: #{encoder_forward.1} parent=0 // pred_check_branch
    %149 = sbr.rel (0) target = $region85
  $region84: #{encoder_forward.1} parent=0 // pred_region
    _
  $region85: #{encoder_forward.1} parent=0 // pred_fallthru
    _
  // Predicated region
  $region86: #{encoder_forward.1} parent=0 // pred_check
    _
  $region87: #{encoder_forward.1} parent=0 // pred_check_branch
    %151 = sbr.rel (0) target = $region89
  $region88: #{encoder_forward.1} parent=0 // pred_region
    _
  $region89: #{encoder_forward.1} parent=0 // pred_fallthru
    _
  // Predicated region
  $region90: #{encoder_forward.1} parent=0 // pred_check
    _
  $region91: #{encoder_forward.1} parent=0 // pred_check_branch
    %153 = sbr.rel (0) target = $region93
  $region92: #{encoder_forward.1} parent=0 // pred_region
    _
  $region93: #{encoder_forward.1} parent=0 // pred_fallthru
    _
  // Predicated region
  $region94: #{encoder_forward.1} parent=0 // pred_check
    _
  $region95: #{encoder_forward.1} parent=0 // pred_check_branch
    %155 = sbr.rel (0) target = $region97
  $region96: #{encoder_forward.1} parent=0 // pred_region
    _
  $region97: #{encoder_forward.1} parent=0 // pred_fallthru
    _
  // Predicated region
  $region98: #{encoder_forward.1} parent=0 // pred_check
    _
  $region99: #{encoder_forward.1} parent=0 // pred_check_branch
    %157 = sbr.rel (0) target = $region101
  $region100: #{encoder_forward.1} parent=0 // pred_region
    _
  $region101: #{encoder_forward.1} parent=0 // pred_fallthru
    _
  // Predicated region
  $region102: #{encoder_forward.1} parent=0 // pred_check
    _
  $region103: #{encoder_forward.1} parent=0 // pred_check_branch
    %159 = sbr.rel (0) target = $region105
  $region104: #{encoder_forward.1} parent=0 // pred_region
    _
  $region105: #{encoder_forward.1} parent=0 // pred_fallthru
    _
  // Predicated region
  $region106: #{encoder_forward.1} parent=0 // pred_check
    _
  $region107: #{encoder_forward.1} parent=0 // pred_check_branch
    %161 = sbr.rel (0) target = $region109
  $region108: #{encoder_forward.1} parent=0 // pred_region
    _
  $region109: #{encoder_forward.1} parent=0 // pred_fallthru
    _
  // Predicated region
  $region110: #{encoder_forward.1} parent=0 // pred_check
    _
  $region111: #{encoder_forward.1} parent=0 // pred_check_branch
    %163 = sbr.rel (0) target = $region113
  $region112: #{encoder_forward.1} parent=0 // pred_region
    _
  $region113: #{encoder_forward.1} parent=0 // pred_fallthru
    _
  // Predicated region
  $region114: #{encoder_forward.1} parent=0 // pred_check
    _
  $region115: #{encoder_forward.1} parent=0 // pred_check_branch
    %165 = sbr.rel (0) target = $region117
  $region116: #{encoder_forward.1} parent=0 // pred_region
    _
  $region117: #{encoder_forward.1} parent=0 // pred_fallthru
    _
  // Predicated region
  $region118: #{encoder_forward.1} parent=0 // pred_check
    _
  $region119: #{encoder_forward.1} parent=0 // pred_check_branch
    %167 = sbr.rel (0) target = $region121
  $region120: #{encoder_forward.1} parent=0 // pred_region
    _
  $region121: #{encoder_forward.1} parent=0 // pred_fallthru
    _
  // Predicated region
  $region122: #{encoder_forward.1} parent=0 // pred_check
    _
  $region123: #{encoder_forward.1} parent=0 // pred_check_branch
    %169 = sbr.rel (0) target = $region125
  $region124: #{encoder_forward.1} parent=0 // pred_region
    _
  $region125: #{encoder_forward.1} parent=0 // pred_fallthru
    _
  // Predicated region
  $region126: #{encoder_forward.1} parent=0 // pred_check
    _
  $region127: #{encoder_forward.1} parent=0 // pred_check_branch
    %171 = sbr.rel (0) target = $region129
  $region128: #{encoder_forward.1} parent=0 // pred_region
    _
  $region129: #{encoder_forward.1} parent=0 // pred_fallthru
    _
  // Predicated region
  $region130: #{encoder_forward.1} parent=0 // pred_check
    _
  $region131: #{encoder_forward.1} parent=0 // pred_check_branch
    %173 = sbr.rel (0) target = $region133
  $region132: #{encoder_forward.1} parent=0 // pred_region
    _
  $region133: #{encoder_forward.1} parent=0 // pred_fallthru
    _
  // Predicated region
  $region134: #{encoder_forward.1} parent=0 // pred_check
    _
  $region135: #{encoder_forward.1} parent=0 // pred_check_branch
    %175 = sbr.rel (0) target = $region137
  $region136: #{encoder_forward.1} parent=0 // pred_region
    _
  $region137: #{encoder_forward.1} parent=0 // pred_fallthru
    _
  // Predicated region
  $region138: #{encoder_forward.1} parent=0 // pred_check
    _
  $region139: #{encoder_forward.1} parent=0 // pred_check_branch
    %177 = sbr.rel (0) target = $region141
  $region140: #{encoder_forward.1} parent=0 // pred_region
    _
  $region141: #{encoder_forward.1} parent=0 // pred_fallthru
    _
  // Predicated region
  $region142: #{encoder_forward.1} parent=0 // pred_check
    _
  $region143: #{encoder_forward.1} parent=0 // pred_check_branch
    %179 = sbr.rel (0) target = $region145
  $region144: #{encoder_forward.1} parent=0 // pred_region
    _
  $region145: #{encoder_forward.1} parent=0 // pred_fallthru
    _
  // Predicated region
  $region146: #{encoder_forward.1} parent=0 // pred_check
    _
  $region147: #{encoder_forward.1} parent=0 // pred_check_branch
    %181 = sbr.rel (0) target = $region149
  $region148: #{encoder_forward.1} parent=0 // pred_region
    _
  $region149: #{encoder_forward.1} parent=0 // pred_fallthru
    _
  // Predicated region
  $region150: #{encoder_forward.1} parent=0 // pred_check
    _
  $region151: #{encoder_forward.1} parent=0 // pred_check_branch
    %183 = sbr.rel (0) target = $region153
  $region152: #{encoder_forward.1} parent=0 // pred_region
    _
  $region153: #{encoder_forward.1} parent=0 // pred_fallthru
    _
  // Predicated region
  $region154: #{encoder_forward.1} parent=0 // pred_check
    _
  $region155: #{encoder_forward.1} parent=0 // pred_check_branch
    %185 = sbr.rel (0) target = $region157
  $region156: #{encoder_forward.1} parent=0 // pred_region
    _
  $region157: #{encoder_forward.1} parent=0 // pred_fallthru
    _
  // Predicated region
  $region158: #{encoder_forward.1} parent=0 // pred_check
    _
  $region159: #{encoder_forward.1} parent=0 // pred_check_branch
    %187 = sbr.rel (0) target = $region161
  $region160: #{encoder_forward.1} parent=0 // pred_region
    _
  $region161: #{encoder_forward.1} parent=0 // pred_fallthru
    _
  // Predicated region
  $region162: #{encoder_forward.1} parent=0 // pred_check
    _
  $region163: #{encoder_forward.1} parent=0 // pred_check_branch
    %189 = sbr.rel (0) target = $region165
  $region164: #{encoder_forward.1} parent=0 // pred_region
    _
  $region165: #{encoder_forward.1} parent=0 // pred_fallthru
    _
  // Predicated region
  $region166: #{encoder_forward.1} parent=0 // pred_check
    _
  $region167: #{encoder_forward.1} parent=0 // pred_check_branch
    %191 = sbr.rel (0) target = $region169
  $region168: #{encoder_forward.1} parent=0 // pred_region
    _
  $region169: #{encoder_forward.1} parent=0 // pred_fallthru
    _
  // Predicated region
  $region170: #{encoder_forward.1} parent=0 // pred_check
    _
  $region171: #{encoder_forward.1} parent=0 // pred_check_branch
    %193 = sbr.rel (0) target = $region173
  $region172: #{encoder_forward.1} parent=0 // pred_region
    _
  $region173: #{encoder_forward.1} parent=0 // pred_fallthru
    _
  // Predicated region
  $region174: #{encoder_forward.1} parent=0 // pred_check
    _
  $region175: #{encoder_forward.1} parent=0 // pred_check_branch
    %195 = sbr.rel (0) target = $region177
  $region176: #{encoder_forward.1} parent=0 // pred_region
    _
  $region177: #{encoder_forward.1} parent=0 // pred_fallthru
    _
  // Predicated region
  $region178: #{encoder_forward.1} parent=0 // pred_check
    _
  $region179: #{encoder_forward.1} parent=0 // pred_check_branch
    %197 = sbr.rel (0) target = $region181
  $region180: #{encoder_forward.1} parent=0 // pred_region
    _
  $region181: #{encoder_forward.1} parent=0 // pred_fallthru
    _
  // Predicated region
  $region182: #{encoder_forward.1} parent=0 // pred_check
    _
  $region183: #{encoder_forward.1} parent=0 // pred_check_branch
    %199 = sbr.rel (0) target = $region185
  $region184: #{encoder_forward.1} parent=0 // pred_region
    _
  $region185: #{encoder_forward.1} parent=0 // pred_fallthru
    _
  // Predicated region
  $region186: #{encoder_forward.1} parent=0 // pred_check
    _
  $region187: #{encoder_forward.1} parent=0 // pred_check_branch
    %201 = sbr.rel (0) target = $region189
  $region188: #{encoder_forward.1} parent=0 // pred_region
    _
  $region189: #{encoder_forward.1} parent=0 // pred_fallthru
    _
  // Predicated region
  $region190: #{encoder_forward.1} parent=0 // pred_check
    _
  $region191: #{encoder_forward.1} parent=0 // pred_check_branch
    %203 = sbr.rel (0) target = $region193
  $region192: #{encoder_forward.1} parent=0 // pred_region
    _
  $region193: #{encoder_forward.1} parent=0 // pred_fallthru
    _
  // Predicated region
  $region194: #{encoder_forward.1} parent=0 // pred_check
    _
  $region195: #{encoder_forward.1} parent=0 // pred_check_branch
    %205 = sbr.rel (0) target = $region197
  $region196: #{encoder_forward.1} parent=0 // pred_region
    _
  $region197: #{encoder_forward.1} parent=0 // pred_fallthru
    _
  // Predicated region
  $region198: #{encoder_forward.1} parent=0 // pred_check
    _
  $region199: #{encoder_forward.1} parent=0 // pred_check_branch
    %207 = sbr.rel (0) target = $region201
  $region200: #{encoder_forward.1} parent=0 // pred_region
    _
  $region201: #{encoder_forward.1} parent=0 // pred_fallthru
    _
  // Predicated region
  $region202: #{encoder_forward.1} parent=0 // pred_check
    _
  $region203: #{encoder_forward.1} parent=0 // pred_check_branch
    %209 = sbr.rel (0) target = $region205
  $region204: #{encoder_forward.1} parent=0 // pred_region
    _
  $region205: #{encoder_forward.1} parent=0 // pred_fallthru
    _
  %v210 = vld [vmem:[%s1] sm:$0xff]
  %v211 = vld [vmem:[%s1 + $0x8] sm:$0xff]
  %v212 = vld [vmem:[%s1 + $0x10] sm:$0xff]
  %v213 = vld [vmem:[%s1 + $0x18] sm:$0xff]
  %v214 = vld [vmem:[%s1 + $0x20] sm:$0xff]
  %v215 = vld [vmem:[%s1 + $0x28] sm:$0xff]
  %v216 = vld [vmem:[%s1 + $0x30] sm:$0xff]
  %v217 = vld [vmem:[%s1 + $0x38] sm:$0xff]
  %v218 = vld [vmem:[%s1 + $0x40] sm:$0xff]
  %v219 = vld [vmem:[%s1 + $0x48] sm:$0xff]
  %v220 = vld [vmem:[%s1 + $0x50] sm:$0xff]
  %v221 = vld [vmem:[%s1 + $0x58] sm:$0xff]
  %v222 = vld [vmem:[%s3] sm:$0xff]
  %v223 = vld [vmem:[%s3 + $0x8] sm:$0xff]
  %v224 = vld [vmem:[%s3 + $0x10] sm:$0xff]
  %v225 = vld [vmem:[%s3 + $0x18] sm:$0xff]
  %v226 = vld [vmem:[%s5] sm:$0xff]
  %v227 = vld [vmem:[%s5 + $0x8] sm:$0xff]
  %v228 = vld [vmem:[%s5 + $0x10] sm:$0xff]
  %v229 = vld [vmem:[%s5 + $0x18] sm:$0xff]
  %v230 = vld [vmem:[%s7] sm:$0xff]
  %v231 = vld [vmem:[%s7 + $0x8] sm:$0xff]
  %v232 = vld [vmem:[%s7 + $0x10] sm:$0xff]
  %v233 = vld [vmem:[%s7 + $0x18] sm:$0xff]
  %v234 = vld [vmem:[%s7 + $0x20] sm:$0xff]
  %v235 = vld [vmem:[%s7 + $0x28] sm:$0xff]
  %v236 = vld [vmem:[%s7 + $0x30] sm:$0xff]
  %v237 = vld [vmem:[%s7 + $0x38] sm:$0xff]
  %v238 = vld [vmem:[%s7 + $0x40] sm:$0xff]
  %v239 = vld [vmem:[%s7 + $0x48] sm:$0xff]
  %v240 = vld [vmem:[%s7 + $0x50] sm:$0xff]
  %v241 = vld [vmem:[%s7 + $0x58] sm:$0xff]
  %v242 = vld [vmem:[%s9] sm:$0xff]
  %v243 = vld [vmem:[%s9 + $0x8] sm:$0xff]
  %v244 = vld [vmem:[%s9 + $0x10] sm:$0xff]
  %v245 = vld [vmem:[%s9 + $0x18] sm:$0xff]
  %v246 = vld [vmem:[%s9 + $0x20] sm:$0xff]
  %v247 = vld [vmem:[%s9 + $0x28] sm:$0xff]
  %v248 = vld [vmem:[%s9 + $0x30] sm:$0xff]
  %v249 = vld [vmem:[%s9 + $0x38] sm:$0xff]
  %v250 = vld [vmem:[%s9 + $0x40] sm:$0xff]
  %v251 = vld [vmem:[%s9 + $0x48] sm:$0xff]
  %v252 = vld [vmem:[%s9 + $0x50] sm:$0xff]
  %v253 = vld [vmem:[%s9 + $0x58] sm:$0xff]
  %v254 = vld [vmem:[%s11] sm:$0x1]
  %v255 = vld [vmem:[%s13] sm:$0x1]
  %v256 = vld [vmem:[%s15] sm:$0xff]
  %v257 = vld [vmem:[%s15 + $0x8] sm:$0xff]
  %v258 = vld [vmem:[%s15 + $0x10] sm:$0xff]
  %v259 = vld [vmem:[%s15 + $0x18] sm:$0xff]
  %v260 = vld [vmem:[%s17] sm:$0x1]
  %262 = vset.pattern.permute.xlu0 0
  %263 = vperm.xlu0 %262, %v222
  %v264 = vpop.permute.xlu0 %263
  %267 = vset.pattern.permute.xlu0 0
  %268 = vperm.xlu0 %267, %v223
  %v269 = vpop.permute.xlu0 %268
  %272 = vset.pattern.permute.xlu0 0
  %273 = vperm.xlu0 %272, %v224
  %v274 = vpop.permute.xlu0 %273
  %277 = vset.pattern.permute.xlu0 0
  %278 = vperm.xlu0 %277, %v225
  %v279 = vpop.permute.xlu0 %278
  %v281 = vmul.f32 %v264, %v226
  %v282 = vmul.f32 %v269, %v227
  %v283 = vmul.f32 %v274, %v228
  %v284 = vmul.f32 %v279, %v229
  %285 = vset.pattern.permute.xlu0 1
  %286 = vperm.xlu0 %285, %v222
  %v287 = vpop.permute.xlu0 %286
  %289 = vset.pattern.permute.xlu0 1
  %290 = vperm.xlu0 %289, %v223
  %v291 = vpop.permute.xlu0 %290
  %293 = vset.pattern.permute.xlu0 1
  %294 = vperm.xlu0 %293, %v224
  %v295 = vpop.permute.xlu0 %294
  %297 = vset.pattern.permute.xlu0 1
  %298 = vperm.xlu0 %297, %v225
  %v299 = vpop.permute.xlu0 %298
  %v301 = vmul.f32 %v287, %v226
  %v302 = vmul.f32 %v291, %v227
  %v303 = vmul.f32 %v295, %v228
  %v304 = vmul.f32 %v299, %v229
  %305 = vset.pattern.permute.xlu0 2
  %306 = vperm.xlu0 %305, %v222
  %v307 = vpop.permute.xlu0 %306
  %309 = vset.pattern.permute.xlu0 2
  %310 = vperm.xlu0 %309, %v223
  %v311 = vpop.permute.xlu0 %310
  %313 = vset.pattern.permute.xlu0 2
  %314 = vperm.xlu0 %313, %v224
  %v315 = vpop.permute.xlu0 %314
  %317 = vset.pattern.permute.xlu0 2
  %318 = vperm.xlu0 %317, %v225
  %v319 = vpop.permute.xlu0 %318
  %v321 = vmul.f32 %v307, %v226
  %v322 = vmul.f32 %v311, %v227
  %v323 = vmul.f32 %v315, %v228
  %v324 = vmul.f32 %v319, %v229
  %329 = vrot.lane.b32.xlu0 %v301, 32
  %v330 = vpop.permute.xlu0 %329
  %331 = vrot.lane.b32.xlu0 %v302, 32
  %v332 = vpop.permute.xlu0 %331
  %333 = vrot.lane.b32.xlu0 %v303, 32
  %v334 = vpop.permute.xlu0 %333
  %335 = vrot.lane.b32.xlu0 %v304, 32
  %v336 = vpop.permute.xlu0 %335
  %345 = vrot.lane.b32.xlu0 %v321, 64
  %v346 = vpop.permute.xlu0 %345
  %347 = vrot.lane.b32.xlu0 %v322, 64
  %v348 = vpop.permute.xlu0 %347
  %349 = vrot.lane.b32.xlu0 %v323, 64
  %v350 = vpop.permute.xlu0 %349
  %351 = vrot.lane.b32.xlu0 %v324, 64
  %v352 = vpop.permute.xlu0 %351
  %vm357 = vcmask 261120
  %v358 = vsel %vm357, %v281, %v330
  %v359 = vsel %vm357, %v282, %v332
  %v360 = vsel %vm357, %v283, %v334
  %v361 = vsel %vm357, %v284, %v336
  %vm362 = vcmask 523264
  %v363 = vsel %vm362, %v358, %v346
  %v364 = vsel %vm362, %v359, %v348
  %v365 = vsel %vm362, %v360, %v350
  %v366 = vsel %vm362, %v361, %v352
  %v368 = vsel %vm357, %v210, 0
  %v371 = vsel %vm357, %v211, 0
  %v374 = vsel %vm357, %v212, 0
  %v377 = vsel %vm357, %v213, 0
  %v380 = vsel %vm357, %v214, 0
  %v383 = vsel %vm357, %v215, 0
  %v386 = vsel %vm357, %v216, 0
  %v389 = vsel %vm357, %v217, 0
  %v392 = vsel %vm357, %v218, 0
  %v395 = vsel %vm357, %v219, 0
  %v398 = vsel %vm357, %v220, 0
  %v401 = vsel %vm357, %v221, 0
  %403 = vmatpush.msra.mxu0 0.0
  %404 = vmatpush.msra.mxu0 0.0
  %405 = vmatpush.msra.mxu0 0.0
  %406 = vmatpush.msra.mxu0 0.0
  %407 = vmatpush.msra.mxu0 0.0
  %408 = vmatpush.msra.mxu0 0.0
  %409 = vmatpush.msra.mxu0 0.0
  %410 = vmatpush.msra.mxu0 0.0
  %411 = vmatpush.msra.mxu0 0.0
  %412 = vmatpush.msra.mxu0 0.0
  %413 = vmatpush.msra.mxu0 0.0
  %414 = vmatpush.msra.mxu0 0.0
  %415 = vmatpush.msra.mxu0 %v229
  %416 = vmatpush.msra.mxu0 %v228
  %417 = vmatpush.msra.mxu0 %v227
  %418 = vmatpush.msra.mxu0 %v226
  %419 = vmatmul.f32.gmra.mxu0 %v368
  %v420 = vpop.f32.mrf.mxu0
  %v421 = vadd.f32 0.0, %v420
  %422 = vmatmul.f32.gmra.mxu0 %v371
  %v423 = vpop.f32.mrf.mxu0
  %v424 = vadd.f32 0.0, %v423
  %425 = vmatmul.f32.gmra.mxu0 %v374
  %v426 = vpop.f32.mrf.mxu0
  %v427 = vadd.f32 0.0, %v426
  %428 = vmatmul.f32.gmra.mxu0 %v377
  %v429 = vpop.f32.mrf.mxu0
  %v430 = vadd.f32 0.0, %v429
  %431 = vmatmul.f32.gmra.mxu0 %v380
  %v432 = vpop.f32.mrf.mxu0
  %v433 = vadd.f32 0.0, %v432
  %434 = vmatmul.f32.gmra.mxu0 %v383
  %v435 = vpop.f32.mrf.mxu0
  %v436 = vadd.f32 0.0, %v435
  %437 = vmatmul.f32.gmra.mxu0 %v386
  %v438 = vpop.f32.mrf.mxu0
  %v439 = vadd.f32 0.0, %v438
  %440 = vmatmul.f32.gmra.mxu0 %v389
  %v441 = vpop.f32.mrf.mxu0
  %v442 = vadd.f32 0.0, %v441
  %443 = vmatmul.f32.gmra.mxu0 %v392
  %v444 = vpop.f32.mrf.mxu0
  %v445 = vadd.f32 0.0, %v444
  %446 = vmatmul.f32.gmra.mxu0 %v395
  %v447 = vpop.f32.mrf.mxu0
  %v448 = vadd.f32 0.0, %v447
  %449 = vmatmul.f32.gmra.mxu0 %v398
  %v450 = vpop.f32.mrf.mxu0
  %v451 = vadd.f32 0.0, %v450
  %452 = vmatmul.f32.gmra.mxu0 %v401
  %v453 = vpop.f32.mrf.mxu0
  %v454 = vadd.f32 0.0, %v453
  %455 = vdwg.mxu0
  %v457 = vsel %vm357, %v421, 0
  %v460 = vsel %vm357, %v424, 0
  %v463 = vsel %vm357, %v427, 0
  %v466 = vsel %vm357, %v430, 0
  %468 = vmatpush.msra.mxu0 0.0
  %469 = vmatpush.msra.mxu0 0.0
  %470 = vmatpush.msra.mxu0 0.0
  %471 = vmatpush.msra.mxu0 0.0
  %472 = vmatpush.msra.mxu0 0.0
  %473 = vmatpush.msra.mxu0 0.0
  %474 = vmatpush.msra.mxu0 0.0
  %475 = vmatpush.msra.mxu0 0.0
  %476 = vmatpush.msra.mxu0 0.0
  %477 = vmatpush.msra.mxu0 0.0
  %478 = vmatpush.msra.mxu0 0.0
  %479 = vmatpush.msra.mxu0 0.0
  %480 = vmatpush.msra.mxu0 %v233
  %481 = vmatpush.msra.mxu0 %v232
  %482 = vmatpush.msra.mxu0 %v231
  %483 = vmatpush.msra.mxu0 %v230
  %484 = vmatmul.f32.gmra.mxu0 %v457
  %v485 = vpop.f32.mrf.mxu0
  %v486 = vadd.f32 0.0, %v485
  %487 = vmatmul.f32.gmra.mxu0 %v460
  %v488 = vpop.f32.mrf.mxu0
  %v489 = vadd.f32 0.0, %v488
  %490 = vmatmul.f32.gmra.mxu0 %v463
  %v491 = vpop.f32.mrf.mxu0
  %v492 = vadd.f32 0.0, %v491
  %493 = vmatmul.f32.gmra.mxu0 %v466
  %v494 = vpop.f32.mrf.mxu0
  %v495 = vadd.f32 0.0, %v494
  %496 = vdwg.mxu0
  %vm497 = vcmask 785408
  %v499 = vsel %vm497, %v363, 0
  %v502 = vsel %vm497, %v364, 0
  %v505 = vsel %vm497, %v365, 0
  %v508 = vsel %vm497, %v366, 0
  %510 = vmatpush.msra.mxu0 0.0
  %511 = vmatpush.msra.mxu0 0.0
  %512 = vmatpush.msra.mxu0 0.0
  %513 = vmatpush.msra.mxu0 0.0
  %514 = vmatpush.msra.mxu0 %v253
  %515 = vmatpush.msra.mxu0 %v252
  %516 = vmatpush.msra.mxu0 %v251
  %517 = vmatpush.msra.mxu0 %v250
  %518 = vmatpush.msra.mxu0 %v249
  %519 = vmatpush.msra.mxu0 %v248
  %520 = vmatpush.msra.mxu0 %v247
  %521 = vmatpush.msra.mxu0 %v246
  %522 = vmatpush.msra.mxu0 %v245
  %523 = vmatpush.msra.mxu0 %v244
  %524 = vmatpush.msra.mxu0 %v243
  %525 = vmatpush.msra.mxu0 %v242
  %526 = vmatmul.f32.gmra.mxu0 %v499
  %v527 = vpop.f32.mrf.mxu0
  %v528 = vadd.f32 %v486, %v527
  %529 = vmatmul.f32.gmra.mxu0 %v502
  %v530 = vpop.f32.mrf.mxu0
  %v531 = vadd.f32 %v489, %v530
  %532 = vmatmul.f32.gmra.mxu0 %v505
  %v533 = vpop.f32.mrf.mxu0
  %v534 = vadd.f32 %v492, %v533
  %535 = vmatmul.f32.gmra.mxu0 %v508
  %v536 = vpop.f32.mrf.mxu0
  %v537 = vadd.f32 %v495, %v536
  %538 = vdwg.mxu0
  %v540 = vsel %vm357, %v433, 0
  %v543 = vsel %vm357, %v436, 0
  %v546 = vsel %vm357, %v439, 0
  %v549 = vsel %vm357, %v442, 0
  %551 = vmatpush.msra.mxu0 0.0
  %552 = vmatpush.msra.mxu0 0.0
  %553 = vmatpush.msra.mxu0 0.0
  %554 = vmatpush.msra.mxu0 0.0
  %555 = vmatpush.msra.mxu0 0.0
  %556 = vmatpush.msra.mxu0 0.0
  %557 = vmatpush.msra.mxu0 0.0
  %558 = vmatpush.msra.mxu0 0.0
  %559 = vmatpush.msra.mxu0 0.0
  %560 = vmatpush.msra.mxu0 0.0
  %561 = vmatpush.msra.mxu0 0.0
  %562 = vmatpush.msra.mxu0 0.0
  %563 = vmatpush.msra.mxu0 %v237
  %564 = vmatpush.msra.mxu0 %v236
  %565 = vmatpush.msra.mxu0 %v235
  %566 = vmatpush.msra.mxu0 %v234
  %567 = vmatmul.f32.gmra.mxu0 %v540
  %v568 = vpop.f32.mrf.mxu0
  %v569 = vadd.f32 0.0, %v568
  %570 = vmatmul.f32.gmra.mxu0 %v543
  %v571 = vpop.f32.mrf.mxu0
  %v572 = vadd.f32 0.0, %v571
  %573 = vmatmul.f32.gmra.mxu0 %v546
  %v574 = vpop.f32.mrf.mxu0
  %v575 = vadd.f32 0.0, %v574
  %576 = vmatmul.f32.gmra.mxu0 %v549
  %v577 = vpop.f32.mrf.mxu0
  %v578 = vadd.f32 0.0, %v577
  %579 = vdwg.mxu0
  %v580 = vadd.f32 %v528, %v569
  %v581 = vadd.f32 %v531, %v572
  %v582 = vadd.f32 %v534, %v575
  %v583 = vadd.f32 %v537, %v578
  %v585 = vsel %vm357, %v445, 0
  %v588 = vsel %vm357, %v448, 0
  %v591 = vsel %vm357, %v451, 0
  %v594 = vsel %vm357, %v454, 0
  %596 = vmatpush.msra.mxu0 0.0
  %597 = vmatpush.msra.mxu0 0.0
  %598 = vmatpush.msra.mxu0 0.0
  %599 = vmatpush.msra.mxu0 0.0
  %600 = vmatpush.msra.mxu0 0.0
  %601 = vmatpush.msra.mxu0 0.0
  %602 = vmatpush.msra.mxu0 0.0
  %603 = vmatpush.msra.mxu0 0.0
  %604 = vmatpush.msra.mxu0 0.0
  %605 = vmatpush.msra.mxu0 0.0
  %606 = vmatpush.msra.mxu0 0.0
  %607 = vmatpush.msra.mxu0 0.0
  %608 = vmatpush.msra.mxu0 %v241
  %609 = vmatpush.msra.mxu0 %v240
  %610 = vmatpush.msra.mxu0 %v239
  %611 = vmatpush.msra.mxu0 %v238
  %612 = vmatmul.f32.gmra.mxu0 %v585
  %v613 = vpop.f32.mrf.mxu0
  %v614 = vadd.f32 0.0, %v613
  %615 = vmatmul.f32.gmra.mxu0 %v588
  %v616 = vpop.f32.mrf.mxu0
  %v617 = vadd.f32 0.0, %v616
  %618 = vmatmul.f32.gmra.mxu0 %v591
  %v619 = vpop.f32.mrf.mxu0
  %v620 = vadd.f32 0.0, %v619
  %621 = vmatmul.f32.gmra.mxu0 %v594
  %v622 = vpop.f32.mrf.mxu0
  %v623 = vadd.f32 0.0, %v622
  %624 = vdwg.mxu0
  %v625 = vadd.f32 %v580, %v614
  %v626 = vadd.f32 %v581, %v617
  %v627 = vadd.f32 %v582, %v620
  %v628 = vadd.f32 %v583, %v623
  %v629 = vmul.f32 %v625, 0.5
  %v630 = vmul.f32 %v626, 0.5
  %v631 = vmul.f32 %v627, 0.5
  %v632 = vmul.f32 %v628, 0.5
  %v633 = vmul.f32 %v625, 0.70710677
  %v634 = vmul.f32 %v626, 0.70710677
  %v635 = vmul.f32 %v627, 0.70710677
  %v636 = vmul.f32 %v628, 0.70710677
  %v637 = vmul.f32 %v633, %v633
  %v638 = vmin.f32 16.0, %v637
  %v639 = vmul.f32 %v638, 2.1237322e-06
  %v640 = vadd.f32 %v639, 0.00028619796
  %v641 = vmul.f32 %v638, %v640
  %v642 = vadd.f32 %v641, 0.0036580483
  %v643 = vmul.f32 %v638, %v642
  %v644 = vadd.f32 %v643, 0.05243302
  %v645 = vmul.f32 %v638, %v644
  %v646 = vadd.f32 %v645, 0.18741608
  %v647 = vmul.f32 %v638, %v646
  %v648 = vadd.f32 %v647, 1.1283791
  %v649 = vmul.f32 %v633, %v648
  %v650 = vmul.f32 %v638, 3.8918573e-05
  %v651 = vadd.f32 %v650, 0.001143296
  %v652 = vmul.f32 %v638, %v651
  %v653 = vadd.f32 %v652, 0.014752088
  %v654 = vmul.f32 %v638, %v653
  %v655 = vadd.f32 %v654, 0.112945676
  %v656 = vmul.f32 %v638, %v655
  %v657 = vadd.f32 %v656, 0.4994258
  %v658 = vmul.f32 %v638, %v657
  %v659 = vadd.f32 %v658, 1.0
  %v660 = vrcp.pop %v659
  %v661 = vmul.f32 %v659, %v660
  %v662 = vsub.f32 1.0, %v661
  %v663 = vmul.f32 %v660, %v662
  %v664 = vadd.f32 %v660, %v663
  %vm665 = vweird.f32 %v659
  %vm666 = vweird.f32 %v660
  %vm667 = vmor %vm665, %vm666
  %v668 = vsel %vm667, %v660, %v664
  %v669 = vand.u32 2147483647, %v659
  %vm670 = vcmp.eq.f32.partialorder %v669, 8.507059e+37
  %v671 = vand.u32 %v659, 2147483648
  %v672 = vor.u32 1.1754944e-38, %v671
  %v673 = vsel %vm670, %v672, %v668
  %v674 = vmul.f32 %v649, %v673
  %v675 = vmin.f32 %v674, 1.0
  %v676 = vmax.f32 %v675, -1.0
  %v677 = vmul.f32 %v634, %v634
  %v678 = vmin.f32 16.0, %v677
  %v679 = vmul.f32 %v678, 2.1237322e-06
  %v680 = vadd.f32 %v679, 0.00028619796
  %v681 = vmul.f32 %v678, %v680
  %v682 = vadd.f32 %v681, 0.0036580483
  %v683 = vmul.f32 %v678, %v682
  %v684 = vadd.f32 %v683, 0.05243302
  %v685 = vmul.f32 %v678, %v684
  %v686 = vadd.f32 %v685, 0.18741608
  %v687 = vmul.f32 %v678, %v686
  %v688 = vadd.f32 %v687, 1.1283791
  %v689 = vmul.f32 %v634, %v688
  %v690 = vmul.f32 %v678, 3.8918573e-05
  %v691 = vadd.f32 %v690, 0.001143296
  %v692 = vmul.f32 %v678, %v691
  %v693 = vadd.f32 %v692, 0.014752088
  %v694 = vmul.f32 %v678, %v693
  %v695 = vadd.f32 %v694, 0.112945676
  %v696 = vmul.f32 %v678, %v695
  %v697 = vadd.f32 %v696, 0.4994258
  %v698 = vmul.f32 %v678, %v697
  %v699 = vadd.f32 %v698, 1.0
  %v700 = vrcp.pop %v699
  %v701 = vmul.f32 %v699, %v700
  %v702 = vsub.f32 1.0, %v701
  %v703 = vmul.f32 %v700, %v702
  %v704 = vadd.f32 %v700, %v703
  %vm705 = vweird.f32 %v699
  %vm706 = vweird.f32 %v700
  %vm707 = vmor %vm705, %vm706
  %v708 = vsel %vm707, %v700, %v704
  %v709 = vand.u32 2147483647, %v699
  %vm710 = vcmp.eq.f32.partialorder %v709, 8.507059e+37
  %v711 = vand.u32 %v699, 2147483648
  %v712 = vor.u32 1.1754944e-38, %v711
  %v713 = vsel %vm710, %v712, %v708
  %v714 = vmul.f32 %v689, %v713
  %v715 = vmin.f32 %v714, 1.0
  %v716 = vmax.f32 %v715, -1.0
  %v717 = vmul.f32 %v635, %v635
  %v718 = vmin.f32 16.0, %v717
  %v719 = vmul.f32 %v718, 2.1237322e-06
  %v720 = vadd.f32 %v719, 0.00028619796
  %v721 = vmul.f32 %v718, %v720
  %v722 = vadd.f32 %v721, 0.0036580483
  %v723 = vmul.f32 %v718, %v722
  %v724 = vadd.f32 %v723, 0.05243302
  %v725 = vmul.f32 %v718, %v724
  %v726 = vadd.f32 %v725, 0.18741608
  %v727 = vmul.f32 %v718, %v726
  %v728 = vadd.f32 %v727, 1.1283791
  %v729 = vmul.f32 %v635, %v728
  %v730 = vmul.f32 %v718, 3.8918573e-05
  %v731 = vadd.f32 %v730, 0.001143296
  %v732 = vmul.f32 %v718, %v731
  %v733 = vadd.f32 %v732, 0.014752088
  %v734 = vmul.f32 %v718, %v733
  %v735 = vadd.f32 %v734, 0.112945676
  %v736 = vmul.f32 %v718, %v735
  %v737 = vadd.f32 %v736, 0.4994258
  %v738 = vmul.f32 %v718, %v737
  %v739 = vadd.f32 %v738, 1.0
  %v740 = vrcp.pop %v739
  %v741 = vmul.f32 %v739, %v740
  %v742 = vsub.f32 1.0, %v741
  %v743 = vmul.f32 %v740, %v742
  %v744 = vadd.f32 %v740, %v743
  %vm745 = vweird.f32 %v739
  %vm746 = vweird.f32 %v740
  %vm747 = vmor %vm745, %vm746
  %v748 = vsel %vm747, %v740, %v744
  %v749 = vand.u32 2147483647, %v739
  %vm750 = vcmp.eq.f32.partialorder %v749, 8.507059e+37
  %v751 = vand.u32 %v739, 2147483648
  %v752 = vor.u32 1.1754944e-38, %v751
  %v753 = vsel %vm750, %v752, %v748
  %v754 = vmul.f32 %v729, %v753
  %v755 = vmin.f32 %v754, 1.0
  %v756 = vmax.f32 %v755, -1.0
  %v757 = vmul.f32 %v636, %v636
  %v758 = vmin.f32 16.0, %v757
  %v759 = vmul.f32 %v758, 2.1237322e-06
  %v760 = vadd.f32 %v759, 0.00028619796
  %v761 = vmul.f32 %v758, %v760
  %v762 = vadd.f32 %v761, 0.0036580483
  %v763 = vmul.f32 %v758, %v762
  %v764 = vadd.f32 %v763, 0.05243302
  %v765 = vmul.f32 %v758, %v764
  %v766 = vadd.f32 %v765, 0.18741608
  %v767 = vmul.f32 %v758, %v766
  %v768 = vadd.f32 %v767, 1.1283791
  %v769 = vmul.f32 %v636, %v768
  %v770 = vmul.f32 %v758, 3.8918573e-05
  %v771 = vadd.f32 %v770, 0.001143296
  %v772 = vmul.f32 %v758, %v771
  %v773 = vadd.f32 %v772, 0.014752088
  %v774 = vmul.f32 %v758, %v773
  %v775 = vadd.f32 %v774, 0.112945676
  %v776 = vmul.f32 %v758, %v775
  %v777 = vadd.f32 %v776, 0.4994258
  %v778 = vmul.f32 %v758, %v777
  %v779 = vadd.f32 %v778, 1.0
  %v780 = vrcp.pop %v779
  %v781 = vmul.f32 %v779, %v780
  %v782 = vsub.f32 1.0, %v781
  %v783 = vmul.f32 %v780, %v782
  %v784 = vadd.f32 %v780, %v783
  %vm785 = vweird.f32 %v779
  %vm786 = vweird.f32 %v780
  %vm787 = vmor %vm785, %vm786
  %v788 = vsel %vm787, %v780, %v784
  %v789 = vand.u32 2147483647, %v779
  %vm790 = vcmp.eq.f32.partialorder %v789, 8.507059e+37
  %v791 = vand.u32 %v779, 2147483648
  %v792 = vor.u32 1.1754944e-38, %v791
  %v793 = vsel %vm790, %v792, %v788
  %v794 = vmul.f32 %v769, %v793
  %v795 = vmin.f32 %v794, 1.0
  %v796 = vmax.f32 %v795, -1.0
  %v797 = vadd.f32 %v676, 1.0
  %v798 = vadd.f32 %v716, 1.0
  %v799 = vadd.f32 %v756, 1.0
  %v800 = vadd.f32 %v796, 1.0
  %v801 = vmul.f32 %v629, %v797
  %v802 = vmul.f32 %v630, %v798
  %v803 = vmul.f32 %v631, %v799
  %v804 = vmul.f32 %v632, %v800
  %v805 = vsel %vm357, %v801, 0.0
  %806 = vadd.xlane.f32.xlu0 %v805
  %v807 = vpop.xlane.xlu0 %806
  %v808 = vsel %vm357, %v802, 0.0
  %809 = vadd.xlane.f32.xlu0 %v808
  %v810 = vpop.xlane.xlu0 %809
  %v811 = vsel %vm357, %v803, 0.0
  %812 = vadd.xlane.f32.xlu0 %v811
  %v813 = vpop.xlane.xlu0 %812
  %v814 = vsel %vm357, %v804, 0.0
  %815 = vadd.xlane.f32.xlu0 %v814
  %v816 = vpop.xlane.xlu0 %815
  %v817 = vrcp.pop 32.0
  %v818 = vmul.f32 32.0, %v817
  %v819 = vsub.f32 1.0, %v818
  %v820 = vmul.f32 %v817, %v819
  %v821 = vadd.f32 %v817, %v820
  %vm822 = vweird.f32 %v817
  %v823 = vsel %vm822, %v817, %v821
  %v824 = vmul.f32 %v807, %v823
  %v825 = vmul.f32 %v810, %v823
  %v826 = vmul.f32 %v813, %v823
  %v827 = vmul.f32 %v816, %v823
  %v828 = vsub.f32 %v801, %v824
  %v829 = vsub.f32 %v802, %v825
  %v830 = vsub.f32 %v803, %v826
  %v831 = vsub.f32 %v804, %v827
  %v832 = vmul.f32 %v828, %v828
  %v833 = vmul.f32 %v829, %v829
  %v834 = vmul.f32 %v830, %v830
  %v835 = vmul.f32 %v831, %v831
  %v836 = vsel %vm357, %v832, 0.0
  %837 = vadd.xlane.f32.xlu0 %v836
  %v838 = vpop.xlane.xlu0 %837
  %v839 = vsel %vm357, %v833, 0.0
  %840 = vadd.xlane.f32.xlu0 %v839
  %v841 = vpop.xlane.xlu0 %840
  %v842 = vsel %vm357, %v834, 0.0
  %843 = vadd.xlane.f32.xlu0 %v842
  %v844 = vpop.xlane.xlu0 %843
  %v845 = vsel %vm357, %v835, 0.0
  %846 = vadd.xlane.f32.xlu0 %v845
  %v847 = vpop.xlane.xlu0 %846
  %v848 = vmul.f32 %v838, %v823
  %v849 = vmul.f32 %v841, %v823
  %v850 = vmul.f32 %v844, %v823
  %v851 = vmul.f32 %v847, %v823
  %v852 = vadd.f32 %v848, 1e-05
  %v853 = vadd.f32 %v849, 1e-05
  %v854 = vadd.f32 %v850, 1e-05
  %v855 = vadd.f32 %v851, 1e-05
  %v856 = vrsqrt.pop %v852
  %v857 = vmul.f32 %v856, %v852
  %v858 = vmul.f32 %v857, %v856
  %v859 = vmul.f32 0.5, %v858
  %v860 = vsub.f32 1.5, %v859
  %v861 = vmul.f32 %v856, %v860
  %vm862 = vweird.f32 %v852
  %vm863 = vweird.f32 %v856
  %vm864 = vmor %vm862, %vm863
  %v865 = vsel %vm864, %v856, %v861
  %v866 = vrsqrt.pop %v853
  %v867 = vmul.f32 %v866, %v853
  %v868 = vmul.f32 %v867, %v866
  %v869 = vmul.f32 0.5, %v868
  %v870 = vsub.f32 1.5, %v869
  %v871 = vmul.f32 %v866, %v870
  %vm872 = vweird.f32 %v853
  %vm873 = vweird.f32 %v866
  %vm874 = vmor %vm872, %vm873
  %v875 = vsel %vm874, %v866, %v871
  %v876 = vrsqrt.pop %v854
  %v877 = vmul.f32 %v876, %v854
  %v878 = vmul.f32 %v877, %v876
  %v879 = vmul.f32 0.5, %v878
  %v880 = vsub.f32 1.5, %v879
  %v881 = vmul.f32 %v876, %v880
  %vm882 = vweird.f32 %v854
  %vm883 = vweird.f32 %v876
  %vm884 = vmor %vm882, %vm883
  %v885 = vsel %vm884, %v876, %v881
  %v886 = vrsqrt.pop %v855
  %v887 = vmul.f32 %v886, %v855
  %v888 = vmul.f32 %v887, %v886
  %v889 = vmul.f32 0.5, %v888
  %v890 = vsub.f32 1.5, %v889
  %v891 = vmul.f32 %v886, %v890
  %vm892 = vweird.f32 %v855
  %vm893 = vweird.f32 %v886
  %vm894 = vmor %vm892, %vm893
  %v895 = vsel %vm894, %v886, %v891
  %v896 = vmul.f32 %v828, %v865
  %v897 = vmul.f32 %v829, %v875
  %v898 = vmul.f32 %v830, %v885
  %v899 = vmul.f32 %v831, %v895
  %v901 = vperm.slane %v254, 0
  %v903 = vmul.f32 %v896, %v901
  %v904 = vmul.f32 %v897, %v901
  %v905 = vmul.f32 %v898, %v901
  %v906 = vmul.f32 %v899, %v901
  %v908 = vperm.slane %v255, 0
  %v910 = vadd.f32 %v903, %v908
  %v911 = vadd.f32 %v904, %v908
  %v912 = vadd.f32 %v905, %v908
  %v913 = vadd.f32 %v906, %v908
  %v915 = vperm.slane %v260, 0
  %v918 = vsel %vm357, %v910, 0
  %v921 = vsel %vm357, %v911, 0
  %v924 = vsel %vm357, %v912, 0
  %v927 = vsel %vm357, %v913, 0
  %929 = vmatpush.msra.mxu0 0.0
  %930 = vmatpush.msra.mxu0 0.0
  %931 = vmatpush.msra.mxu0 0.0
  %932 = vmatpush.msra.mxu0 0.0
  %933 = vmatpush.msra.mxu0 0.0
  %934 = vmatpush.msra.mxu0 0.0
  %935 = vmatpush.msra.mxu0 0.0
  %936 = vmatpush.msra.mxu0 0.0
  %937 = vmatpush.msra.mxu0 0.0
  %938 = vmatpush.msra.mxu0 0.0
  %939 = vmatpush.msra.mxu0 0.0
  %940 = vmatpush.msra.mxu0 0.0
  %941 = vmatpush.msra.mxu0 %v259
  %942 = vmatpush.msra.mxu0 %v258
  %943 = vmatpush.msra.mxu0 %v257
  %944 = vmatpush.msra.mxu0 %v256
  %945 = vmatmul.f32.gmra.mxu0 %v918
  %v946 = vpop.f32.mrf.mxu0
  %v947 = vadd.f32 %v915, %v946
  %948 = vmatmul.f32.gmra.mxu0 %v921
  %v949 = vpop.f32.mrf.mxu0
  %v950 = vadd.f32 %v915, %v949
  %951 = vmatmul.f32.gmra.mxu0 %v924
  %v952 = vpop.f32.mrf.mxu0
  %v953 = vadd.f32 %v915, %v952
  %954 = vmatmul.f32.gmra.mxu0 %v927
  %v955 = vpop.f32.mrf.mxu0
  %v956 = vadd.f32 %v915, %v955
  %957 = vdwg.mxu0
  %v958 = vtanh.pop %v947
  %v959 = vtanh.pop %v950
  %v960 = vtanh.pop %v953
  %v961 = vtanh.pop %v956
  %v962 = vld [vmem:[%s19] sm:$0xff]
  %v963 = vld [vmem:[%s19 + $0x8] sm:$0xff]
  %v964 = vld [vmem:[%s19 + $0x10] sm:$0xff]
  %v965 = vld [vmem:[%s19 + $0x18] sm:$0xff]
  %v966 = vld [vmem:[%s19 + $0x20] sm:$0xff]
  %v967 = vld [vmem:[%s19 + $0x28] sm:$0xff]
  %v968 = vld [vmem:[%s19 + $0x30] sm:$0xff]
  %v969 = vld [vmem:[%s19 + $0x38] sm:$0xff]
  %v970 = vld [vmem:[%s19 + $0x40] sm:$0xff]
  %v971 = vld [vmem:[%s19 + $0x48] sm:$0xff]
  %v972 = vld [vmem:[%s19 + $0x50] sm:$0xff]
  %v973 = vld [vmem:[%s19 + $0x58] sm:$0xff]
  %v974 = vld [vmem:[%s21] sm:$0xff]
  %v975 = vld [vmem:[%s21 + $0x8] sm:$0xff]
  %v976 = vld [vmem:[%s21 + $0x10] sm:$0xff]
  %v977 = vld [vmem:[%s21 + $0x18] sm:$0xff]
  %v978 = vld [vmem:[%s21 + $0x20] sm:$0xff]
  %v979 = vld [vmem:[%s21 + $0x28] sm:$0xff]
  %v980 = vld [vmem:[%s21 + $0x30] sm:$0xff]
  %v981 = vld [vmem:[%s21 + $0x38] sm:$0xff]
  %v982 = vld [vmem:[%s21 + $0x40] sm:$0xff]
  %v983 = vld [vmem:[%s21 + $0x48] sm:$0xff]
  %v984 = vld [vmem:[%s21 + $0x50] sm:$0xff]
  %v985 = vld [vmem:[%s21 + $0x58] sm:$0xff]
  %v986 = vld [vmem:[%s23] sm:$0x1]
  %v987 = vld [vmem:[%s25] sm:$0x1]
  %v988 = vld [vmem:[%s27] sm:$0xff]
  %v989 = vld [vmem:[%s27 + $0x8] sm:$0xff]
  %v990 = vld [vmem:[%s27 + $0x10] sm:$0xff]
  %v991 = vld [vmem:[%s27 + $0x18] sm:$0xff]
  %v992 = vld [vmem:[%s29] sm:$0x1]
  %v993 = vmul.f32 %v264, %v958
  %v994 = vmul.f32 %v269, %v959
  %v995 = vmul.f32 %v274, %v960
  %v996 = vmul.f32 %v279, %v961
  %v997 = vmul.f32 %v287, %v958
  %v998 = vmul.f32 %v291, %v959
  %v999 = vmul.f32 %v295, %v960
  %v1000 = vmul.f32 %v299, %v961
  %v1001 = vmul.f32 %v307, %v958
  %v1002 = vmul.f32 %v311, %v959
  %v1003 = vmul.f32 %v315, %v960
  %v1004 = vmul.f32 %v319, %v961
  %1009 = vrot.lane.b32.xlu0 %v997, 32
  %v1010 = vpop.permute.xlu0 %1009
  %1011 = vrot.lane.b32.xlu0 %v998, 32
  %v1012 = vpop.permute.xlu0 %1011
  %1013 = vrot.lane.b32.xlu0 %v999, 32
  %v1014 = vpop.permute.xlu0 %1013
  %1015 = vrot.lane.b32.xlu0 %v1000, 32
  %v1016 = vpop.permute.xlu0 %1015
  %1025 = vrot.lane.b32.xlu0 %v1001, 64
  %v1026 = vpop.permute.xlu0 %1025
  %1027 = vrot.lane.b32.xlu0 %v1002, 64
  %v1028 = vpop.permute.xlu0 %1027
  %1029 = vrot.lane.b32.xlu0 %v1003, 64
  %v1030 = vpop.permute.xlu0 %1029
  %1031 = vrot.lane.b32.xlu0 %v1004, 64
  %v1032 = vpop.permute.xlu0 %1031
  %v1037 = vsel %vm357, %v993, %v1010
  %v1038 = vsel %vm357, %v994, %v1012
  %v1039 = vsel %vm357, %v995, %v1014
  %v1040 = vsel %vm357, %v996, %v1016
  %v1041 = vsel %vm362, %v1037, %v1026
  %v1042 = vsel %vm362, %v1038, %v1028
  %v1043 = vsel %vm362, %v1039, %v1030
  %v1044 = vsel %vm362, %v1040, %v1032
  %1045 = vmatpush.msra.mxu0 0.0
  %1046 = vmatpush.msra.mxu0 0.0
  %1047 = vmatpush.msra.mxu0 0.0
  %1048 = vmatpush.msra.mxu0 0.0
  %1049 = vmatpush.msra.mxu0 0.0
  %1050 = vmatpush.msra.mxu0 0.0
  %1051 = vmatpush.msra.mxu0 0.0
  %1052 = vmatpush.msra.mxu0 0.0
  %1053 = vmatpush.msra.mxu0 0.0
  %1054 = vmatpush.msra.mxu0 0.0
  %1055 = vmatpush.msra.mxu0 0.0
  %1056 = vmatpush.msra.mxu0 0.0
  %1057 = vmatpush.msra.mxu0 %v961
  %1058 = vmatpush.msra.mxu0 %v960
  %1059 = vmatpush.msra.mxu0 %v959
  %1060 = vmatpush.msra.mxu0 %v958
  %1061 = vmatmul.f32.gmra.mxu0 %v368
  %v1062 = vpop.f32.mrf.mxu0
  %v1063 = vadd.f32 0.0, %v1062
  %1064 = vmatmul.f32.gmra.mxu0 %v371
  %v1065 = vpop.f32.mrf.mxu0
  %v1066 = vadd.f32 0.0, %v1065
  %1067 = vmatmul.f32.gmra.mxu0 %v374
  %v1068 = vpop.f32.mrf.mxu0
  %v1069 = vadd.f32 0.0, %v1068
  %1070 = vmatmul.f32.gmra.mxu0 %v377
  %v1071 = vpop.f32.mrf.mxu0
  %v1072 = vadd.f32 0.0, %v1071
  %1073 = vmatmul.f32.gmra.mxu0 %v380
  %v1074 = vpop.f32.mrf.mxu0
  %v1075 = vadd.f32 0.0, %v1074
  %1076 = vmatmul.f32.gmra.mxu0 %v383
  %v1077 = vpop.f32.mrf.mxu0
  %v1078 = vadd.f32 0.0, %v1077
  %1079 = vmatmul.f32.gmra.mxu0 %v386
  %v1080 = vpop.f32.mrf.mxu0
  %v1081 = vadd.f32 0.0, %v1080
  %1082 = vmatmul.f32.gmra.mxu0 %v389
  %v1083 = vpop.f32.mrf.mxu0
  %v1084 = vadd.f32 0.0, %v1083
  %1085 = vmatmul.f32.gmra.mxu0 %v392
  %v1086 = vpop.f32.mrf.mxu0
  %v1087 = vadd.f32 0.0, %v1086
  %1088 = vmatmul.f32.gmra.mxu0 %v395
  %v1089 = vpop.f32.mrf.mxu0
  %v1090 = vadd.f32 0.0, %v1089
  %1091 = vmatmul.f32.gmra.mxu0 %v398
  %v1092 = vpop.f32.mrf.mxu0
  %v1093 = vadd.f32 0.0, %v1092
  %1094 = vmatmul.f32.gmra.mxu0 %v401
  %v1095 = vpop.f32.mrf.mxu0
  %v1096 = vadd.f32 0.0, %v1095
  %1097 = vdwg.mxu0
  %v1099 = vsel %vm357, %v1063, 0
  %v1102 = vsel %vm357, %v1066, 0
  %v1105 = vsel %vm357, %v1069, 0
  %v1108 = vsel %vm357, %v1072, 0
  %1110 = vmatpush.msra.mxu0 0.0
  %1111 = vmatpush.msra.mxu0 0.0
  %1112 = vmatpush.msra.mxu0 0.0
  %1113 = vmatpush.msra.mxu0 0.0
  %1114 = vmatpush.msra.mxu0 0.0
  %1115 = vmatpush.msra.mxu0 0.0
  %1116 = vmatpush.msra.mxu0 0.0
  %1117 = vmatpush.msra.mxu0 0.0
  %1118 = vmatpush.msra.mxu0 0.0
  %1119 = vmatpush.msra.mxu0 0.0
  %1120 = vmatpush.msra.mxu0 0.0
  %1121 = vmatpush.msra.mxu0 0.0
  %1122 = vmatpush.msra.mxu0 %v965
  %1123 = vmatpush.msra.mxu0 %v964
  %1124 = vmatpush.msra.mxu0 %v963
  %1125 = vmatpush.msra.mxu0 %v962
  %1126 = vmatmul.f32.gmra.mxu0 %v1099
  %v1127 = vpop.f32.mrf.mxu0
  %v1128 = vadd.f32 0.0, %v1127
  %1129 = vmatmul.f32.gmra.mxu0 %v1102
  %v1130 = vpop.f32.mrf.mxu0
  %v1131 = vadd.f32 0.0, %v1130
  %1132 = vmatmul.f32.gmra.mxu0 %v1105
  %v1133 = vpop.f32.mrf.mxu0
  %v1134 = vadd.f32 0.0, %v1133
  %1135 = vmatmul.f32.gmra.mxu0 %v1108
  %v1136 = vpop.f32.mrf.mxu0
  %v1137 = vadd.f32 0.0, %v1136
  %1138 = vdwg.mxu0
  %v1140 = vsel %vm497, %v1041, 0
  %v1143 = vsel %vm497, %v1042, 0
  %v1146 = vsel %vm497, %v1043, 0
  %v1149 = vsel %vm497, %v1044, 0
  %1151 = vmatpush.msra.mxu0 0.0
  %1152 = vmatpush.msra.mxu0 0.0
  %1153 = vmatpush.msra.mxu0 0.0
  %1154 = vmatpush.msra.mxu0 0.0
  %1155 = vmatpush.msra.mxu0 %v985
  %1156 = vmatpush.msra.mxu0 %v984
  %1157 = vmatpush.msra.mxu0 %v983
  %1158 = vmatpush.msra.mxu0 %v982
  %1159 = vmatpush.msra.mxu0 %v981
  %1160 = vmatpush.msra.mxu0 %v980
  %1161 = vmatpush.msra.mxu0 %v979
  %1162 = vmatpush.msra.mxu0 %v978
  %1163 = vmatpush.msra.mxu0 %v977
  %1164 = vmatpush.msra.mxu0 %v976
  %1165 = vmatpush.msra.mxu0 %v975
  %1166 = vmatpush.msra.mxu0 %v974
  %1167 = vmatmul.f32.gmra.mxu0 %v1140
  %v1168 = vpop.f32.mrf.mxu0
  %v1169 = vadd.f32 %v1128, %v1168
  %1170 = vmatmul.f32.gmra.mxu0 %v1143
  %v1171 = vpop.f32.mrf.mxu0
  %v1172 = vadd.f32 %v1131, %v1171
  %1173 = vmatmul.f32.gmra.mxu0 %v1146
  %v1174 = vpop.f32.mrf.mxu0
  %v1175 = vadd.f32 %v1134, %v1174
  %1176 = vmatmul.f32.gmra.mxu0 %v1149
  %v1177 = vpop.f32.mrf.mxu0
  %v1178 = vadd.f32 %v1137, %v1177
  %1179 = vdwg.mxu0
  %v1181 = vsel %vm357, %v1075, 0
  %v1184 = vsel %vm357, %v1078, 0
  %v1187 = vsel %vm357, %v1081, 0
  %v1190 = vsel %vm357, %v1084, 0
  %1192 = vmatpush.msra.mxu0 0.0
  %1193 = vmatpush.msra.mxu0 0.0
  %1194 = vmatpush.msra.mxu0 0.0
  %1195 = vmatpush.msra.mxu0 0.0
  %1196 = vmatpush.msra.mxu0 0.0
  %1197 = vmatpush.msra.mxu0 0.0
  %1198 = vmatpush.msra.mxu0 0.0
  %1199 = vmatpush.msra.mxu0 0.0
  %1200 = vmatpush.msra.mxu0 0.0
  %1201 = vmatpush.msra.mxu0 0.0
  %1202 = vmatpush.msra.mxu0 0.0
  %1203 = vmatpush.msra.mxu0 0.0
  %1204 = vmatpush.msra.mxu0 %v969
  %1205 = vmatpush.msra.mxu0 %v968
  %1206 = vmatpush.msra.mxu0 %v967
  %1207 = vmatpush.msra.mxu0 %v966
  %1208 = vmatmul.f32.gmra.mxu0 %v1181
  %v1209 = vpop.f32.mrf.mxu0
  %v1210 = vadd.f32 0.0, %v1209
  %1211 = vmatmul.f32.gmra.mxu0 %v1184
  %v1212 = vpop.f32.mrf.mxu0
  %v1213 = vadd.f32 0.0, %v1212
  %1214 = vmatmul.f32.gmra.mxu0 %v1187
  %v1215 = vpop.f32.mrf.mxu0
  %v1216 = vadd.f32 0.0, %v1215
  %1217 = vmatmul.f32.gmra.mxu0 %v1190
  %v1218 = vpop.f32.mrf.mxu0
  %v1219 = vadd.f32 0.0, %v1218
  %1220 = vdwg.mxu0
  %v1221 = vadd.f32 %v1169, %v1210
  %v1222 = vadd.f32 %v1172, %v1213
  %v1223 = vadd.f32 %v1175, %v1216
  %v1224 = vadd.f32 %v1178, %v1219
  %v1226 = vsel %vm357, %v1087, 0
  %v1229 = vsel %vm357, %v1090, 0
  %v1232 = vsel %vm357, %v1093, 0
  %v1235 = vsel %vm357, %v1096, 0
  %1237 = vmatpush.msra.mxu0 0.0
  %1238 = vmatpush.msra.mxu0 0.0
  %1239 = vmatpush.msra.mxu0 0.0
  %1240 = vmatpush.msra.mxu0 0.0
  %1241 = vmatpush.msra.mxu0 0.0
  %1242 = vmatpush.msra.mxu0 0.0
  %1243 = vmatpush.msra.mxu0 0.0
  %1244 = vmatpush.msra.mxu0 0.0
  %1245 = vmatpush.msra.mxu0 0.0
  %1246 = vmatpush.msra.mxu0 0.0
  %1247 = vmatpush.msra.mxu0 0.0
  %1248 = vmatpush.msra.mxu0 0.0
  %1249 = vmatpush.msra.mxu0 %v973
  %1250 = vmatpush.msra.mxu0 %v972
  %1251 = vmatpush.msra.mxu0 %v971
  %1252 = vmatpush.msra.mxu0 %v970
  %1253 = vmatmul.f32.gmra.mxu0 %v1226
  %v1254 = vpop.f32.mrf.mxu0
  %v1255 = vadd.f32 0.0, %v1254
  %1256 = vmatmul.f32.gmra.mxu0 %v1229
  %v1257 = vpop.f32.mrf.mxu0
  %v1258 = vadd.f32 0.0, %v1257
  %1259 = vmatmul.f32.gmra.mxu0 %v1232
  %v1260 = vpop.f32.mrf.mxu0
  %v1261 = vadd.f32 0.0, %v1260
  %1262 = vmatmul.f32.gmra.mxu0 %v1235
  %v1263 = vpop.f32.mrf.mxu0
  %v1264 = vadd.f32 0.0, %v1263
  %1265 = vdwg.mxu0
  %v1266 = vadd.f32 %v1221, %v1255
  %v1267 = vadd.f32 %v1222, %v1258
  %v1268 = vadd.f32 %v1223, %v1261
  %v1269 = vadd.f32 %v1224, %v1264
  %v1270 = vmul.f32 %v1266, 0.5
  %v1271 = vmul.f32 %v1267, 0.5
  %v1272 = vmul.f32 %v1268, 0.5
  %v1273 = vmul.f32 %v1269, 0.5
  %v1274 = vmul.f32 %v1266, 0.70710677
  %v1275 = vmul.f32 %v1267, 0.70710677
  %v1276 = vmul.f32 %v1268, 0.70710677
  %v1277 = vmul.f32 %v1269, 0.70710677
  %v1278 = vmul.f32 %v1274, %v1274
  %v1279 = vmin.f32 16.0, %v1278
  %v1280 = vmul.f32 %v1279, 2.1237322e-06
  %v1281 = vadd.f32 %v1280, 0.00028619796
  %v1282 = vmul.f32 %v1279, %v1281
  %v1283 = vadd.f32 %v1282, 0.0036580483
  %v1284 = vmul.f32 %v1279, %v1283
  %v1285 = vadd.f32 %v1284, 0.05243302
  %v1286 = vmul.f32 %v1279, %v1285
  %v1287 = vadd.f32 %v1286, 0.18741608
  %v1288 = vmul.f32 %v1279, %v1287
  %v1289 = vadd.f32 %v1288, 1.1283791
  %v1290 = vmul.f32 %v1274, %v1289
  %v1291 = vmul.f32 %v1279, 3.8918573e-05
  %v1292 = vadd.f32 %v1291, 0.001143296
  %v1293 = vmul.f32 %v1279, %v1292
  %v1294 = vadd.f32 %v1293, 0.014752088
  %v1295 = vmul.f32 %v1279, %v1294
  %v1296 = vadd.f32 %v1295, 0.112945676
  %v1297 = vmul.f32 %v1279, %v1296
  %v1298 = vadd.f32 %v1297, 0.4994258
  %v1299 = vmul.f32 %v1279, %v1298
  %v1300 = vadd.f32 %v1299, 1.0
  %v1301 = vrcp.pop %v1300
  %v1302 = vmul.f32 %v1300, %v1301
  %v1303 = vsub.f32 1.0, %v1302
  %v1304 = vmul.f32 %v1301, %v1303
  %v1305 = vadd.f32 %v1301, %v1304
  %vm1306 = vweird.f32 %v1300
  %vm1307 = vweird.f32 %v1301
  %vm1308 = vmor %vm1306, %vm1307
  %v1309 = vsel %vm1308, %v1301, %v1305
  %v1310 = vand.u32 2147483647, %v1300
  %vm1311 = vcmp.eq.f32.partialorder %v1310, 8.507059e+37
  %v1312 = vand.u32 %v1300, 2147483648
  %v1313 = vor.u32 1.1754944e-38, %v1312
  %v1314 = vsel %vm1311, %v1313, %v1309
  %v1315 = vmul.f32 %v1290, %v1314
  %v1316 = vmin.f32 %v1315, 1.0
  %v1317 = vmax.f32 %v1316, -1.0
  %v1318 = vmul.f32 %v1275, %v1275
  %v1319 = vmin.f32 16.0, %v1318
  %v1320 = vmul.f32 %v1319, 2.1237322e-06
  %v1321 = vadd.f32 %v1320, 0.00028619796
  %v1322 = vmul.f32 %v1319, %v1321
  %v1323 = vadd.f32 %v1322, 0.0036580483
  %v1324 = vmul.f32 %v1319, %v1323
  %v1325 = vadd.f32 %v1324, 0.05243302
  %v1326 = vmul.f32 %v1319, %v1325
  %v1327 = vadd.f32 %v1326, 0.18741608
  %v1328 = vmul.f32 %v1319, %v1327
  %v1329 = vadd.f32 %v1328, 1.1283791
  %v1330 = vmul.f32 %v1275, %v1329
  %v1331 = vmul.f32 %v1319, 3.8918573e-05
  %v1332 = vadd.f32 %v1331, 0.001143296
  %v1333 = vmul.f32 %v1319, %v1332
  %v1334 = vadd.f32 %v1333, 0.014752088
  %v1335 = vmul.f32 %v1319, %v1334
  %v1336 = vadd.f32 %v1335, 0.112945676
  %v1337 = vmul.f32 %v1319, %v1336
  %v1338 = vadd.f32 %v1337, 0.4994258
  %v1339 = vmul.f32 %v1319, %v1338
  %v1340 = vadd.f32 %v1339, 1.0
  %v1341 = vrcp.pop %v1340
  %v1342 = vmul.f32 %v1340, %v1341
  %v1343 = vsub.f32 1.0, %v1342
  %v1344 = vmul.f32 %v1341, %v1343
  %v1345 = vadd.f32 %v1341, %v1344
  %vm1346 = vweird.f32 %v1340
  %vm1347 = vweird.f32 %v1341
  %vm1348 = vmor %vm1346, %vm1347
  %v1349 = vsel %vm1348, %v1341, %v1345
  %v1350 = vand.u32 2147483647, %v1340
  %vm1351 = vcmp.eq.f32.partialorder %v1350, 8.507059e+37
  %v1352 = vand.u32 %v1340, 2147483648
  %v1353 = vor.u32 1.1754944e-38, %v1352
  %v1354 = vsel %vm1351, %v1353, %v1349
  %v1355 = vmul.f32 %v1330, %v1354
  %v1356 = vmin.f32 %v1355, 1.0
  %v1357 = vmax.f32 %v1356, -1.0
  %v1358 = vmul.f32 %v1276, %v1276
  %v1359 = vmin.f32 16.0, %v1358
  %v1360 = vmul.f32 %v1359, 2.1237322e-06
  %v1361 = vadd.f32 %v1360, 0.00028619796
  %v1362 = vmul.f32 %v1359, %v1361
  %v1363 = vadd.f32 %v1362, 0.0036580483
  %v1364 = vmul.f32 %v1359, %v1363
  %v1365 = vadd.f32 %v1364, 0.05243302
  %v1366 = vmul.f32 %v1359, %v1365
  %v1367 = vadd.f32 %v1366, 0.18741608
  %v1368 = vmul.f32 %v1359, %v1367
  %v1369 = vadd.f32 %v1368, 1.1283791
  %v1370 = vmul.f32 %v1276, %v1369
  %v1371 = vmul.f32 %v1359, 3.8918573e-05
  %v1372 = vadd.f32 %v1371, 0.001143296
  %v1373 = vmul.f32 %v1359, %v1372
  %v1374 = vadd.f32 %v1373, 0.014752088
  %v1375 = vmul.f32 %v1359, %v1374
  %v1376 = vadd.f32 %v1375, 0.112945676
  %v1377 = vmul.f32 %v1359, %v1376
  %v1378 = vadd.f32 %v1377, 0.4994258
  %v1379 = vmul.f32 %v1359, %v1378
  %v1380 = vadd.f32 %v1379, 1.0
  %v1381 = vrcp.pop %v1380
  %v1382 = vmul.f32 %v1380, %v1381
  %v1383 = vsub.f32 1.0, %v1382
  %v1384 = vmul.f32 %v1381, %v1383
  %v1385 = vadd.f32 %v1381, %v1384
  %vm1386 = vweird.f32 %v1380
  %vm1387 = vweird.f32 %v1381
  %vm1388 = vmor %vm1386, %vm1387
  %v1389 = vsel %vm1388, %v1381, %v1385
  %v1390 = vand.u32 2147483647, %v1380
  %vm1391 = vcmp.eq.f32.partialorder %v1390, 8.507059e+37
  %v1392 = vand.u32 %v1380, 2147483648
  %v1393 = vor.u32 1.1754944e-38, %v1392
  %v1394 = vsel %vm1391, %v1393, %v1389
  %v1395 = vmul.f32 %v1370, %v1394
  %v1396 = vmin.f32 %v1395, 1.0
  %v1397 = vmax.f32 %v1396, -1.0
  %v1398 = vmul.f32 %v1277, %v1277
  %v1399 = vmin.f32 16.0, %v1398
  %v1400 = vmul.f32 %v1399, 2.1237322e-06
  %v1401 = vadd.f32 %v1400, 0.00028619796
  %v1402 = vmul.f32 %v1399, %v1401
  %v1403 = vadd.f32 %v1402, 0.0036580483
  %v1404 = vmul.f32 %v1399, %v1403
  %v1405 = vadd.f32 %v1404, 0.05243302
  %v1406 = vmul.f32 %v1399, %v1405
  %v1407 = vadd.f32 %v1406, 0.18741608
  %v1408 = vmul.f32 %v1399, %v1407
  %v1409 = vadd.f32 %v1408, 1.1283791
  %v1410 = vmul.f32 %v1277, %v1409
  %v1411 = vmul.f32 %v1399, 3.8918573e-05
  %v1412 = vadd.f32 %v1411, 0.001143296
  %v1413 = vmul.f32 %v1399, %v1412
  %v1414 = vadd.f32 %v1413, 0.014752088
  %v1415 = vmul.f32 %v1399, %v1414
  %v1416 = vadd.f32 %v1415, 0.112945676
  %v1417 = vmul.f32 %v1399, %v1416
  %v1418 = vadd.f32 %v1417, 0.4994258
  %v1419 = vmul.f32 %v1399, %v1418
  %v1420 = vadd.f32 %v1419, 1.0
  %v1421 = vrcp.pop %v1420
  %v1422 = vmul.f32 %v1420, %v1421
  %v1423 = vsub.f32 1.0, %v1422
  %v1424 = vmul.f32 %v1421, %v1423
  %v1425 = vadd.f32 %v1421, %v1424
  %vm1426 = vweird.f32 %v1420
  %vm1427 = vweird.f32 %v1421
  %vm1428 = vmor %vm1426, %vm1427
  %v1429 = vsel %vm1428, %v1421, %v1425
  %v1430 = vand.u32 2147483647, %v1420
  %vm1431 = vcmp.eq.f32.partialorder %v1430, 8.507059e+37
  %v1432 = vand.u32 %v1420, 2147483648
  %v1433 = vor.u32 1.1754944e-38, %v1432
  %v1434 = vsel %vm1431, %v1433, %v1429
  %v1435 = vmul.f32 %v1410, %v1434
  %v1436 = vmin.f32 %v1435, 1.0
  %v1437 = vmax.f32 %v1436, -1.0
  %v1438 = vadd.f32 %v1317, 1.0
  %v1439 = vadd.f32 %v1357, 1.0
  %v1440 = vadd.f32 %v1397, 1.0
  %v1441 = vadd.f32 %v1437, 1.0
  %v1442 = vmul.f32 %v1270, %v1438
  %v1443 = vmul.f32 %v1271, %v1439
  %v1444 = vmul.f32 %v1272, %v1440
  %v1445 = vmul.f32 %v1273, %v1441
  %v1446 = vsel %vm357, %v1442, 0.0
  %1447 = vadd.xlane.f32.xlu0 %v1446
  %v1448 = vpop.xlane.xlu0 %1447
  %v1449 = vsel %vm357, %v1443, 0.0
  %1450 = vadd.xlane.f32.xlu0 %v1449
  %v1451 = vpop.xlane.xlu0 %1450
  %v1452 = vsel %vm357, %v1444, 0.0
  %1453 = vadd.xlane.f32.xlu0 %v1452
  %v1454 = vpop.xlane.xlu0 %1453
  %v1455 = vsel %vm357, %v1445, 0.0
  %1456 = vadd.xlane.f32.xlu0 %v1455
  %v1457 = vpop.xlane.xlu0 %1456
  %v1458 = vmul.f32 %v1448, %v823
  %v1459 = vmul.f32 %v1451, %v823
  %v1460 = vmul.f32 %v1454, %v823
  %v1461 = vmul.f32 %v1457, %v823
  %v1462 = vsub.f32 %v1442, %v1458
  %v1463 = vsub.f32 %v1443, %v1459
  %v1464 = vsub.f32 %v1444, %v1460
  %v1465 = vsub.f32 %v1445, %v1461
  %v1466 = vmul.f32 %v1462, %v1462
  %v1467 = vmul.f32 %v1463, %v1463
  %v1468 = vmul.f32 %v1464, %v1464
  %v1469 = vmul.f32 %v1465, %v1465
  %v1470 = vsel %vm357, %v1466, 0.0
  %1471 = vadd.xlane.f32.xlu0 %v1470
  %v1472 = vpop.xlane.xlu0 %1471
  %v1473 = vsel %vm357, %v1467, 0.0
  %1474 = vadd.xlane.f32.xlu0 %v1473
  %v1475 = vpop.xlane.xlu0 %1474
  %v1476 = vsel %vm357, %v1468, 0.0
  %1477 = vadd.xlane.f32.xlu0 %v1476
  %v1478 = vpop.xlane.xlu0 %1477
  %v1479 = vsel %vm357, %v1469, 0.0
  %1480 = vadd.xlane.f32.xlu0 %v1479
  %v1481 = vpop.xlane.xlu0 %1480
  %v1482 = vmul.f32 %v1472, %v823
  %v1483 = vmul.f32 %v1475, %v823
  %v1484 = vmul.f32 %v1478, %v823
  %v1485 = vmul.f32 %v1481, %v823
  %v1486 = vadd.f32 %v1482, 1e-05
  %v1487 = vadd.f32 %v1483, 1e-05
  %v1488 = vadd.f32 %v1484, 1e-05
  %v1489 = vadd.f32 %v1485, 1e-05
  %v1490 = vrsqrt.pop %v1486
  %v1491 = vmul.f32 %v1490, %v1486
  %v1492 = vmul.f32 %v1491, %v1490
  %v1493 = vmul.f32 0.5, %v1492
  %v1494 = vsub.f32 1.5, %v1493
  %v1495 = vmul.f32 %v1490, %v1494
  %vm1496 = vweird.f32 %v1486
  %vm1497 = vweird.f32 %v1490
  %vm1498 = vmor %vm1496, %vm1497
  %v1499 = vsel %vm1498, %v1490, %v1495
  %v1500 = vrsqrt.pop %v1487
  %v1501 = vmul.f32 %v1500, %v1487
  %v1502 = vmul.f32 %v1501, %v1500
  %v1503 = vmul.f32 0.5, %v1502
  %v1504 = vsub.f32 1.5, %v1503
  %v1505 = vmul.f32 %v1500, %v1504
  %vm1506 = vweird.f32 %v1487
  %vm1507 = vweird.f32 %v1500
  %vm1508 = vmor %vm1506, %vm1507
  %v1509 = vsel %vm1508, %v1500, %v1505
  %v1510 = vrsqrt.pop %v1488
  %v1511 = vmul.f32 %v1510, %v1488
  %v1512 = vmul.f32 %v1511, %v1510
  %v1513 = vmul.f32 0.5, %v1512
  %v1514 = vsub.f32 1.5, %v1513
  %v1515 = vmul.f32 %v1510, %v1514
  %vm1516 = vweird.f32 %v1488
  %vm1517 = vweird.f32 %v1510
  %vm1518 = vmor %vm1516, %vm1517
  %v1519 = vsel %vm1518, %v1510, %v1515
  %v1520 = vrsqrt.pop %v1489
  %v1521 = vmul.f32 %v1520, %v1489
  %v1522 = vmul.f32 %v1521, %v1520
  %v1523 = vmul.f32 0.5, %v1522
  %v1524 = vsub.f32 1.5, %v1523
  %v1525 = vmul.f32 %v1520, %v1524
  %vm1526 = vweird.f32 %v1489
  %vm1527 = vweird.f32 %v1520
  %vm1528 = vmor %vm1526, %vm1527
  %v1529 = vsel %vm1528, %v1520, %v1525
  %v1530 = vmul.f32 %v1462, %v1499
  %v1531 = vmul.f32 %v1463, %v1509
  %v1532 = vmul.f32 %v1464, %v1519
  %v1533 = vmul.f32 %v1465, %v1529
  %v1535 = vperm.slane %v986, 0
  %v1537 = vmul.f32 %v1530, %v1535
  %v1538 = vmul.f32 %v1531, %v1535
  %v1539 = vmul.f32 %v1532, %v1535
  %v1540 = vmul.f32 %v1533, %v1535
  %v1542 = vperm.slane %v987, 0
  %v1544 = vadd.f32 %v1537, %v1542
  %v1545 = vadd.f32 %v1538, %v1542
  %v1546 = vadd.f32 %v1539, %v1542
  %v1547 = vadd.f32 %v1540, %v1542
  %v1549 = vperm.slane %v992, 0
  %v1552 = vsel %vm357, %v1544, 0
  %v1555 = vsel %vm357, %v1545, 0
  %v1558 = vsel %vm357, %v1546, 0
  %v1561 = vsel %vm357, %v1547, 0
  %1563 = vmatpush.msra.mxu0 0.0
  %1564 = vmatpush.msra.mxu0 0.0
  %1565 = vmatpush.msra.mxu0 0.0
  %1566 = vmatpush.msra.mxu0 0.0
  %1567 = vmatpush.msra.mxu0 0.0
  %1568 = vmatpush.msra.mxu0 0.0
  %1569 = vmatpush.msra.mxu0 0.0
  %1570 = vmatpush.msra.mxu0 0.0
  %1571 = vmatpush.msra.mxu0 0.0
  %1572 = vmatpush.msra.mxu0 0.0
  %1573 = vmatpush.msra.mxu0 0.0
  %1574 = vmatpush.msra.mxu0 0.0
  %1575 = vmatpush.msra.mxu0 %v991
  %1576 = vmatpush.msra.mxu0 %v990
  %1577 = vmatpush.msra.mxu0 %v989
  %1578 = vmatpush.msra.mxu0 %v988
  %1579 = vmatmul.f32.gmra.mxu0 %v1552
  %v1580 = vpop.f32.mrf.mxu0
  %v1581 = vadd.f32 %v1549, %v1580
  %1582 = vmatmul.f32.gmra.mxu0 %v1555
  %v1583 = vpop.f32.mrf.mxu0
  %v1584 = vadd.f32 %v1549, %v1583
  %1585 = vmatmul.f32.gmra.mxu0 %v1558
  %v1586 = vpop.f32.mrf.mxu0
  %v1587 = vadd.f32 %v1549, %v1586
  %1588 = vmatmul.f32.gmra.mxu0 %v1561
  %v1589 = vpop.f32.mrf.mxu0
  %v1590 = vadd.f32 %v1549, %v1589
  %1591 = vdwg.mxu0
  %v1592 = vtanh.pop %v1581
  %v1593 = vtanh.pop %v1584
  %v1594 = vtanh.pop %v1587
  %v1595 = vtanh.pop %v1590
  %v1596 = vld [vmem:[%s31] sm:$0xff]
  %v1597 = vld [vmem:[%s31 + $0x8] sm:$0xff]
  %v1598 = vld [vmem:[%s31 + $0x10] sm:$0xff]
  %v1599 = vld [vmem:[%s31 + $0x18] sm:$0xff]
  %v1600 = vld [vmem:[%s31 + $0x20] sm:$0xff]
  %v1601 = vld [vmem:[%s31 + $0x28] sm:$0xff]
  %v1602 = vld [vmem:[%s31 + $0x30] sm:$0xff]
  %v1603 = vld [vmem:[%s31 + $0x38] sm:$0xff]
  %v1604 = vld [vmem:[%s31 + $0x40] sm:$0xff]
  %v1605 = vld [vmem:[%s31 + $0x48] sm:$0xff]
  %v1606 = vld [vmem:[%s31 + $0x50] sm:$0xff]
  %v1607 = vld [vmem:[%s31 + $0x58] sm:$0xff]
  %v1608 = vld [vmem:[%s33] sm:$0xff]
  %v1609 = vld [vmem:[%s33 + $0x8] sm:$0xff]
  %v1610 = vld [vmem:[%s33 + $0x10] sm:$0xff]
  %v1611 = vld [vmem:[%s33 + $0x18] sm:$0xff]
  %v1612 = vld [vmem:[%s33 + $0x20] sm:$0xff]
  %v1613 = vld [vmem:[%s33 + $0x28] sm:$0xff]
  %v1614 = vld [vmem:[%s33 + $0x30] sm:$0xff]
  %v1615 = vld [vmem:[%s33 + $0x38] sm:$0xff]
  %v1616 = vld [vmem:[%s33 + $0x40] sm:$0xff]
  %v1617 = vld [vmem:[%s33 + $0x48] sm:$0xff]
  %v1618 = vld [vmem:[%s33 + $0x50] sm:$0xff]
  %v1619 = vld [vmem:[%s33 + $0x58] sm:$0xff]
  %v1620 = vld [vmem:[%s35] sm:$0x1]
  %v1621 = vld [vmem:[%s37] sm:$0x1]
  %v1622 = vld [vmem:[%s39] sm:$0xff]
  %v1623 = vld [vmem:[%s39 + $0x8] sm:$0xff]
  %v1624 = vld [vmem:[%s39 + $0x10] sm:$0xff]
  %v1625 = vld [vmem:[%s39 + $0x18] sm:$0xff]
  %v1626 = vld [vmem:[%s41] sm:$0x1]
  %v1627 = vmul.f32 %v264, %v1592
  %v1628 = vmul.f32 %v269, %v1593
  %v1629 = vmul.f32 %v274, %v1594
  %v1630 = vmul.f32 %v279, %v1595
  %v1631 = vmul.f32 %v287, %v1592
  %v1632 = vmul.f32 %v291, %v1593
  %v1633 = vmul.f32 %v295, %v1594
  %v1634 = vmul.f32 %v299, %v1595
  %v1635 = vmul.f32 %v307, %v1592
  %v1636 = vmul.f32 %v311, %v1593
  %v1637 = vmul.f32 %v315, %v1594
  %v1638 = vmul.f32 %v319, %v1595
  %1643 = vrot.lane.b32.xlu0 %v1631, 32
  %v1644 = vpop.permute.xlu0 %1643
  %1645 = vrot.lane.b32.xlu0 %v1632, 32
  %v1646 = vpop.permute.xlu0 %1645
  %1647 = vrot.lane.b32.xlu0 %v1633, 32
  %v1648 = vpop.permute.xlu0 %1647
  %1649 = vrot.lane.b32.xlu0 %v1634, 32
  %v1650 = vpop.permute.xlu0 %1649
  %1659 = vrot.lane.b32.xlu0 %v1635, 64
  %v1660 = vpop.permute.xlu0 %1659
  %1661 = vrot.lane.b32.xlu0 %v1636, 64
  %v1662 = vpop.permute.xlu0 %1661
  %1663 = vrot.lane.b32.xlu0 %v1637, 64
  %v1664 = vpop.permute.xlu0 %1663
  %1665 = vrot.lane.b32.xlu0 %v1638, 64
  %v1666 = vpop.permute.xlu0 %1665
  %v1671 = vsel %vm357, %v1627, %v1644
  %v1672 = vsel %vm357, %v1628, %v1646
  %v1673 = vsel %vm357, %v1629, %v1648
  %v1674 = vsel %vm357, %v1630, %v1650
  %v1675 = vsel %vm362, %v1671, %v1660
  %v1676 = vsel %vm362, %v1672, %v1662
  %v1677 = vsel %vm362, %v1673, %v1664
  %v1678 = vsel %vm362, %v1674, %v1666
  %1679 = vmatpush.msra.mxu0 0.0
  %1680 = vmatpush.msra.mxu0 0.0
  %1681 = vmatpush.msra.mxu0 0.0
  %1682 = vmatpush.msra.mxu0 0.0
  %1683 = vmatpush.msra.mxu0 0.0
  %1684 = vmatpush.msra.mxu0 0.0
  %1685 = vmatpush.msra.mxu0 0.0
  %1686 = vmatpush.msra.mxu0 0.0
  %1687 = vmatpush.msra.mxu0 0.0
  %1688 = vmatpush.msra.mxu0 0.0
  %1689 = vmatpush.msra.mxu0 0.0
  %1690 = vmatpush.msra.mxu0 0.0
  %1691 = vmatpush.msra.mxu0 %v1595
  %1692 = vmatpush.msra.mxu0 %v1594
  %1693 = vmatpush.msra.mxu0 %v1593
  %1694 = vmatpush.msra.mxu0 %v1592
  %1695 = vmatmul.f32.gmra.mxu0 %v368
  %v1696 = vpop.f32.mrf.mxu0
  %v1697 = vadd.f32 0.0, %v1696
  %1698 = vmatmul.f32.gmra.mxu0 %v371
  %v1699 = vpop.f32.mrf.mxu0
  %v1700 = vadd.f32 0.0, %v1699
  %1701 = vmatmul.f32.gmra.mxu0 %v374
  %v1702 = vpop.f32.mrf.mxu0
  %v1703 = vadd.f32 0.0, %v1702
  %1704 = vmatmul.f32.gmra.mxu0 %v377
  %v1705 = vpop.f32.mrf.mxu0
  %v1706 = vadd.f32 0.0, %v1705
  %1707 = vmatmul.f32.gmra.mxu0 %v380
  %v1708 = vpop.f32.mrf.mxu0
  %v1709 = vadd.f32 0.0, %v1708
  %1710 = vmatmul.f32.gmra.mxu0 %v383
  %v1711 = vpop.f32.mrf.mxu0
  %v1712 = vadd.f32 0.0, %v1711
  %1713 = vmatmul.f32.gmra.mxu0 %v386
  %v1714 = vpop.f32.mrf.mxu0
  %v1715 = vadd.f32 0.0, %v1714
  %1716 = vmatmul.f32.gmra.mxu0 %v389
  %v1717 = vpop.f32.mrf.mxu0
  %v1718 = vadd.f32 0.0, %v1717
  %1719 = vmatmul.f32.gmra.mxu0 %v392
  %v1720 = vpop.f32.mrf.mxu0
  %v1721 = vadd.f32 0.0, %v1720
  %1722 = vmatmul.f32.gmra.mxu0 %v395
  %v1723 = vpop.f32.mrf.mxu0
  %v1724 = vadd.f32 0.0, %v1723
  %1725 = vmatmul.f32.gmra.mxu0 %v398
  %v1726 = vpop.f32.mrf.mxu0
  %v1727 = vadd.f32 0.0, %v1726
  %1728 = vmatmul.f32.gmra.mxu0 %v401
  %v1729 = vpop.f32.mrf.mxu0
  %v1730 = vadd.f32 0.0, %v1729
  %1731 = vdwg.mxu0
  %v1733 = vsel %vm357, %v1697, 0
  %v1736 = vsel %vm357, %v1700, 0
  %v1739 = vsel %vm357, %v1703, 0
  %v1742 = vsel %vm357, %v1706, 0
  %1744 = vmatpush.msra.mxu0 0.0
  %1745 = vmatpush.msra.mxu0 0.0
  %1746 = vmatpush.msra.mxu0 0.0
  %1747 = vmatpush.msra.mxu0 0.0
  %1748 = vmatpush.msra.mxu0 0.0
  %1749 = vmatpush.msra.mxu0 0.0
  %1750 = vmatpush.msra.mxu0 0.0
  %1751 = vmatpush.msra.mxu0 0.0
  %1752 = vmatpush.msra.mxu0 0.0
  %1753 = vmatpush.msra.mxu0 0.0
  %1754 = vmatpush.msra.mxu0 0.0
  %1755 = vmatpush.msra.mxu0 0.0
  %1756 = vmatpush.msra.mxu0 %v1599
  %1757 = vmatpush.msra.mxu0 %v1598
  %1758 = vmatpush.msra.mxu0 %v1597
  %1759 = vmatpush.msra.mxu0 %v1596
  %1760 = vmatmul.f32.gmra.mxu0 %v1733
  %v1761 = vpop.f32.mrf.mxu0
  %v1762 = vadd.f32 0.0, %v1761
  %1763 = vmatmul.f32.gmra.mxu0 %v1736
  %v1764 = vpop.f32.mrf.mxu0
  %v1765 = vadd.f32 0.0, %v1764
  %1766 = vmatmul.f32.gmra.mxu0 %v1739
  %v1767 = vpop.f32.mrf.mxu0
  %v1768 = vadd.f32 0.0, %v1767
  %1769 = vmatmul.f32.gmra.mxu0 %v1742
  %v1770 = vpop.f32.mrf.mxu0
  %v1771 = vadd.f32 0.0, %v1770
  %1772 = vdwg.mxu0
  %v1774 = vsel %vm497, %v1675, 0
  %v1777 = vsel %vm497, %v1676, 0
  %v1780 = vsel %vm497, %v1677, 0
  %v1783 = vsel %vm497, %v1678, 0
  %1785 = vmatpush.msra.mxu0 0.0
  %1786 = vmatpush.msra.mxu0 0.0
  %1787 = vmatpush.msra.mxu0 0.0
  %1788 = vmatpush.msra.mxu0 0.0
  %1789 = vmatpush.msra.mxu0 %v1619
  %1790 = vmatpush.msra.mxu0 %v1618
  %1791 = vmatpush.msra.mxu0 %v1617
  %1792 = vmatpush.msra.mxu0 %v1616
  %1793 = vmatpush.msra.mxu0 %v1615
  %1794 = vmatpush.msra.mxu0 %v1614
  %1795 = vmatpush.msra.mxu0 %v1613
  %1796 = vmatpush.msra.mxu0 %v1612
  %1797 = vmatpush.msra.mxu0 %v1611
  %1798 = vmatpush.msra.mxu0 %v1610
  %1799 = vmatpush.msra.mxu0 %v1609
  %1800 = vmatpush.msra.mxu0 %v1608
  %1801 = vmatmul.f32.gmra.mxu0 %v1774
  %v1802 = vpop.f32.mrf.mxu0
  %v1803 = vadd.f32 %v1762, %v1802
  %1804 = vmatmul.f32.gmra.mxu0 %v1777
  %v1805 = vpop.f32.mrf.mxu0
  %v1806 = vadd.f32 %v1765, %v1805
  %1807 = vmatmul.f32.gmra.mxu0 %v1780
  %v1808 = vpop.f32.mrf.mxu0
  %v1809 = vadd.f32 %v1768, %v1808
  %1810 = vmatmul.f32.gmra.mxu0 %v1783
  %v1811 = vpop.f32.mrf.mxu0
  %v1812 = vadd.f32 %v1771, %v1811
  %1813 = vdwg.mxu0
  %v1815 = vsel %vm357, %v1709, 0
  %v1818 = vsel %vm357, %v1712, 0
  %v1821 = vsel %vm357, %v1715, 0
  %v1824 = vsel %vm357, %v1718, 0
  %1826 = vmatpush.msra.mxu0 0.0
  %1827 = vmatpush.msra.mxu0 0.0
  %1828 = vmatpush.msra.mxu0 0.0
  %1829 = vmatpush.msra.mxu0 0.0
  %1830 = vmatpush.msra.mxu0 0.0
  %1831 = vmatpush.msra.mxu0 0.0
  %1832 = vmatpush.msra.mxu0 0.0
  %1833 = vmatpush.msra.mxu0 0.0
  %1834 = vmatpush.msra.mxu0 0.0
  %1835 = vmatpush.msra.mxu0 0.0
  %1836 = vmatpush.msra.mxu0 0.0
  %1837 = vmatpush.msra.mxu0 0.0
  %1838 = vmatpush.msra.mxu0 %v1603
  %1839 = vmatpush.msra.mxu0 %v1602
  %1840 = vmatpush.msra.mxu0 %v1601
  %1841 = vmatpush.msra.mxu0 %v1600
  %1842 = vmatmul.f32.gmra.mxu0 %v1815
  %v1843 = vpop.f32.mrf.mxu0
  %v1844 = vadd.f32 0.0, %v1843
  %1845 = vmatmul.f32.gmra.mxu0 %v1818
  %v1846 = vpop.f32.mrf.mxu0
  %v1847 = vadd.f32 0.0, %v1846
  %1848 = vmatmul.f32.gmra.mxu0 %v1821
  %v1849 = vpop.f32.mrf.mxu0
  %v1850 = vadd.f32 0.0, %v1849
  %1851 = vmatmul.f32.gmra.mxu0 %v1824
  %v1852 = vpop.f32.mrf.mxu0
  %v1853 = vadd.f32 0.0, %v1852
  %1854 = vdwg.mxu0
  %v1855 = vadd.f32 %v1803, %v1844
  %v1856 = vadd.f32 %v1806, %v1847
  %v1857 = vadd.f32 %v1809, %v1850
  %v1858 = vadd.f32 %v1812, %v1853
  %v1860 = vsel %vm357, %v1721, 0
  %v1863 = vsel %vm357, %v1724, 0
  %v1866 = vsel %vm357, %v1727, 0
  %v1869 = vsel %vm357, %v1730, 0
  %1871 = vmatpush.msra.mxu0 0.0
  %1872 = vmatpush.msra.mxu0 0.0
  %1873 = vmatpush.msra.mxu0 0.0
  %1874 = vmatpush.msra.mxu0 0.0
  %1875 = vmatpush.msra.mxu0 0.0
  %1876 = vmatpush.msra.mxu0 0.0
  %1877 = vmatpush.msra.mxu0 0.0
  %1878 = vmatpush.msra.mxu0 0.0
  %1879 = vmatpush.msra.mxu0 0.0
  %1880 = vmatpush.msra.mxu0 0.0
  %1881 = vmatpush.msra.mxu0 0.0
  %1882 = vmatpush.msra.mxu0 0.0
  %1883 = vmatpush.msra.mxu0 %v1607
  %1884 = vmatpush.msra.mxu0 %v1606
  %1885 = vmatpush.msra.mxu0 %v1605
  %1886 = vmatpush.msra.mxu0 %v1604
  %1887 = vmatmul.f32.gmra.mxu0 %v1860
  %v1888 = vpop.f32.mrf.mxu0
  %v1889 = vadd.f32 0.0, %v1888
  %1890 = vmatmul.f32.gmra.mxu0 %v1863
  %v1891 = vpop.f32.mrf.mxu0
  %v1892 = vadd.f32 0.0, %v1891
  %1893 = vmatmul.f32.gmra.mxu0 %v1866
  %v1894 = vpop.f32.mrf.mxu0
  %v1895 = vadd.f32 0.0, %v1894
  %1896 = vmatmul.f32.gmra.mxu0 %v1869
  %v1897 = vpop.f32.mrf.mxu0
  %v1898 = vadd.f32 0.0, %v1897
  %1899 = vdwg.mxu0
  %v1900 = vadd.f32 %v1855, %v1889
  %v1901 = vadd.f32 %v1856, %v1892
  %v1902 = vadd.f32 %v1857, %v1895
  %v1903 = vadd.f32 %v1858, %v1898
  %v1904 = vmul.f32 %v1900, 0.5
  %v1905 = vmul.f32 %v1901, 0.5
  %v1906 = vmul.f32 %v1902, 0.5
  %v1907 = vmul.f32 %v1903, 0.5
  %v1908 = vmul.f32 %v1900, 0.70710677
  %v1909 = vmul.f32 %v1901, 0.70710677
  %v1910 = vmul.f32 %v1902, 0.70710677
  %v1911 = vmul.f32 %v1903, 0.70710677
  %v1912 = vmul.f32 %v1908, %v1908
  %v1913 = vmin.f32 16.0, %v1912
  %v1914 = vmul.f32 %v1913, 2.1237322e-06
  %v1915 = vadd.f32 %v1914, 0.00028619796
  %v1916 = vmul.f32 %v1913, %v1915
  %v1917 = vadd.f32 %v1916, 0.0036580483
  %v1918 = vmul.f32 %v1913, %v1917
  %v1919 = vadd.f32 %v1918, 0.05243302
  %v1920 = vmul.f32 %v1913, %v1919
  %v1921 = vadd.f32 %v1920, 0.18741608
  %v1922 = vmul.f32 %v1913, %v1921
  %v1923 = vadd.f32 %v1922, 1.1283791
  %v1924 = vmul.f32 %v1908, %v1923
  %v1925 = vmul.f32 %v1913, 3.8918573e-05
  %v1926 = vadd.f32 %v1925, 0.001143296
  %v1927 = vmul.f32 %v1913, %v1926
  %v1928 = vadd.f32 %v1927, 0.014752088
  %v1929 = vmul.f32 %v1913, %v1928
  %v1930 = vadd.f32 %v1929, 0.112945676
  %v1931 = vmul.f32 %v1913, %v1930
  %v1932 = vadd.f32 %v1931, 0.4994258
  %v1933 = vmul.f32 %v1913, %v1932
  %v1934 = vadd.f32 %v1933, 1.0
  %v1935 = vrcp.pop %v1934
  %v1936 = vmul.f32 %v1934, %v1935
  %v1937 = vsub.f32 1.0, %v1936
  %v1938 = vmul.f32 %v1935, %v1937
  %v1939 = vadd.f32 %v1935, %v1938
  %vm1940 = vweird.f32 %v1934
  %vm1941 = vweird.f32 %v1935
  %vm1942 = vmor %vm1940, %vm1941
  %v1943 = vsel %vm1942, %v1935, %v1939
  %v1944 = vand.u32 2147483647, %v1934
  %vm1945 = vcmp.eq.f32.partialorder %v1944, 8.507059e+37
  %v1946 = vand.u32 %v1934, 2147483648
  %v1947 = vor.u32 1.1754944e-38, %v1946
  %v1948 = vsel %vm1945, %v1947, %v1943
  %v1949 = vmul.f32 %v1924, %v1948
  %v1950 = vmin.f32 %v1949, 1.0
  %v1951 = vmax.f32 %v1950, -1.0
  %v1952 = vmul.f32 %v1909, %v1909
  %v1953 = vmin.f32 16.0, %v1952
  %v1954 = vmul.f32 %v1953, 2.1237322e-06
  %v1955 = vadd.f32 %v1954, 0.00028619796
  %v1956 = vmul.f32 %v1953, %v1955
  %v1957 = vadd.f32 %v1956, 0.0036580483
  %v1958 = vmul.f32 %v1953, %v1957
  %v1959 = vadd.f32 %v1958, 0.05243302
  %v1960 = vmul.f32 %v1953, %v1959
  %v1961 = vadd.f32 %v1960, 0.18741608
  %v1962 = vmul.f32 %v1953, %v1961
  %v1963 = vadd.f32 %v1962, 1.1283791
  %v1964 = vmul.f32 %v1909, %v1963
  %v1965 = vmul.f32 %v1953, 3.8918573e-05
  %v1966 = vadd.f32 %v1965, 0.001143296
  %v1967 = vmul.f32 %v1953, %v1966
  %v1968 = vadd.f32 %v1967, 0.014752088
  %v1969 = vmul.f32 %v1953, %v1968
  %v1970 = vadd.f32 %v1969, 0.112945676
  %v1971 = vmul.f32 %v1953, %v1970
  %v1972 = vadd.f32 %v1971, 0.4994258
  %v1973 = vmul.f32 %v1953, %v1972
  %v1974 = vadd.f32 %v1973, 1.0
  %v1975 = vrcp.pop %v1974
  %v1976 = vmul.f32 %v1974, %v1975
  %v1977 = vsub.f32 1.0, %v1976
  %v1978 = vmul.f32 %v1975, %v1977
  %v1979 = vadd.f32 %v1975, %v1978
  %vm1980 = vweird.f32 %v1974
  %vm1981 = vweird.f32 %v1975
  %vm1982 = vmor %vm1980, %vm1981
  %v1983 = vsel %vm1982, %v1975, %v1979
  %v1984 = vand.u32 2147483647, %v1974
  %vm1985 = vcmp.eq.f32.partialorder %v1984, 8.507059e+37
  %v1986 = vand.u32 %v1974, 2147483648
  %v1987 = vor.u32 1.1754944e-38, %v1986
  %v1988 = vsel %vm1985, %v1987, %v1983
  %v1989 = vmul.f32 %v1964, %v1988
  %v1990 = vmin.f32 %v1989, 1.0
  %v1991 = vmax.f32 %v1990, -1.0
  %v1992 = vmul.f32 %v1910, %v1910
  %v1993 = vmin.f32 16.0, %v1992
  %v1994 = vmul.f32 %v1993, 2.1237322e-06
  %v1995 = vadd.f32 %v1994, 0.00028619796
  %v1996 = vmul.f32 %v1993, %v1995
  %v1997 = vadd.f32 %v1996, 0.0036580483
  %v1998 = vmul.f32 %v1993, %v1997
  %v1999 = vadd.f32 %v1998, 0.05243302
  %v2000 = vmul.f32 %v1993, %v1999
  %v2001 = vadd.f32 %v2000, 0.18741608
  %v2002 = vmul.f32 %v1993, %v2001
  %v2003 = vadd.f32 %v2002, 1.1283791
  %v2004 = vmul.f32 %v1910, %v2003
  %v2005 = vmul.f32 %v1993, 3.8918573e-05
  %v2006 = vadd.f32 %v2005, 0.001143296
  %v2007 = vmul.f32 %v1993, %v2006
  %v2008 = vadd.f32 %v2007, 0.014752088
  %v2009 = vmul.f32 %v1993, %v2008
  %v2010 = vadd.f32 %v2009, 0.112945676
  %v2011 = vmul.f32 %v1993, %v2010
  %v2012 = vadd.f32 %v2011, 0.4994258
  %v2013 = vmul.f32 %v1993, %v2012
  %v2014 = vadd.f32 %v2013, 1.0
  %v2015 = vrcp.pop %v2014
  %v2016 = vmul.f32 %v2014, %v2015
  %v2017 = vsub.f32 1.0, %v2016
  %v2018 = vmul.f32 %v2015, %v2017
  %v2019 = vadd.f32 %v2015, %v2018
  %vm2020 = vweird.f32 %v2014
  %vm2021 = vweird.f32 %v2015
  %vm2022 = vmor %vm2020, %vm2021
  %v2023 = vsel %vm2022, %v2015, %v2019
  %v2024 = vand.u32 2147483647, %v2014
  %vm2025 = vcmp.eq.f32.partialorder %v2024, 8.507059e+37
  %v2026 = vand.u32 %v2014, 2147483648
  %v2027 = vor.u32 1.1754944e-38, %v2026
  %v2028 = vsel %vm2025, %v2027, %v2023
  %v2029 = vmul.f32 %v2004, %v2028
  %v2030 = vmin.f32 %v2029, 1.0
  %v2031 = vmax.f32 %v2030, -1.0
  %v2032 = vmul.f32 %v1911, %v1911
  %v2033 = vmin.f32 16.0, %v2032
  %v2034 = vmul.f32 %v2033, 2.1237322e-06
  %v2035 = vadd.f32 %v2034, 0.00028619796
  %v2036 = vmul.f32 %v2033, %v2035
  %v2037 = vadd.f32 %v2036, 0.0036580483
  %v2038 = vmul.f32 %v2033, %v2037
  %v2039 = vadd.f32 %v2038, 0.05243302
  %v2040 = vmul.f32 %v2033, %v2039
  %v2041 = vadd.f32 %v2040, 0.18741608
  %v2042 = vmul.f32 %v2033, %v2041
  %v2043 = vadd.f32 %v2042, 1.1283791
  %v2044 = vmul.f32 %v1911, %v2043
  %v2045 = vmul.f32 %v2033, 3.8918573e-05
  %v2046 = vadd.f32 %v2045, 0.001143296
  %v2047 = vmul.f32 %v2033, %v2046
  %v2048 = vadd.f32 %v2047, 0.014752088
  %v2049 = vmul.f32 %v2033, %v2048
  %v2050 = vadd.f32 %v2049, 0.112945676
  %v2051 = vmul.f32 %v2033, %v2050
  %v2052 = vadd.f32 %v2051, 0.4994258
  %v2053 = vmul.f32 %v2033, %v2052
  %v2054 = vadd.f32 %v2053, 1.0
  %v2055 = vrcp.pop %v2054
  %v2056 = vmul.f32 %v2054, %v2055
  %v2057 = vsub.f32 1.0, %v2056
  %v2058 = vmul.f32 %v2055, %v2057
  %v2059 = vadd.f32 %v2055, %v2058
  %vm2060 = vweird.f32 %v2054
  %vm2061 = vweird.f32 %v2055
  %vm2062 = vmor %vm2060, %vm2061
  %v2063 = vsel %vm2062, %v2055, %v2059
  %v2064 = vand.u32 2147483647, %v2054
  %vm2065 = vcmp.eq.f32.partialorder %v2064, 8.507059e+37
  %v2066 = vand.u32 %v2054, 2147483648
  %v2067 = vor.u32 1.1754944e-38, %v2066
  %v2068 = vsel %vm2065, %v2067, %v2063
  %v2069 = vmul.f32 %v2044, %v2068
  %v2070 = vmin.f32 %v2069, 1.0
  %v2071 = vmax.f32 %v2070, -1.0
  %v2072 = vadd.f32 %v1951, 1.0
  %v2073 = vadd.f32 %v1991, 1.0
  %v2074 = vadd.f32 %v2031, 1.0
  %v2075 = vadd.f32 %v2071, 1.0
  %v2076 = vmul.f32 %v1904, %v2072
  %v2077 = vmul.f32 %v1905, %v2073
  %v2078 = vmul.f32 %v1906, %v2074
  %v2079 = vmul.f32 %v1907, %v2075
  %v2080 = vsel %vm357, %v2076, 0.0
  %2081 = vadd.xlane.f32.xlu0 %v2080
  %v2082 = vpop.xlane.xlu0 %2081
  %v2083 = vsel %vm357, %v2077, 0.0
  %2084 = vadd.xlane.f32.xlu0 %v2083
  %v2085 = vpop.xlane.xlu0 %2084
  %v2086 = vsel %vm357, %v2078, 0.0
  %2087 = vadd.xlane.f32.xlu0 %v2086
  %v2088 = vpop.xlane.xlu0 %2087
  %v2089 = vsel %vm357, %v2079, 0.0
  %2090 = vadd.xlane.f32.xlu0 %v2089
  %v2091 = vpop.xlane.xlu0 %2090
  %v2092 = vmul.f32 %v2082, %v823
  %v2093 = vmul.f32 %v2085, %v823
  %v2094 = vmul.f32 %v2088, %v823
  %v2095 = vmul.f32 %v2091, %v823
  %v2096 = vsub.f32 %v2076, %v2092
  %v2097 = vsub.f32 %v2077, %v2093
  %v2098 = vsub.f32 %v2078, %v2094
  %v2099 = vsub.f32 %v2079, %v2095
  %v2100 = vmul.f32 %v2096, %v2096
  %v2101 = vmul.f32 %v2097, %v2097
  %v2102 = vmul.f32 %v2098, %v2098
  %v2103 = vmul.f32 %v2099, %v2099
  %v2104 = vsel %vm357, %v2100, 0.0
  %2105 = vadd.xlane.f32.xlu0 %v2104
  %v2106 = vpop.xlane.xlu0 %2105
  %v2107 = vsel %vm357, %v2101, 0.0
  %2108 = vadd.xlane.f32.xlu0 %v2107
  %v2109 = vpop.xlane.xlu0 %2108
  %v2110 = vsel %vm357, %v2102, 0.0
  %2111 = vadd.xlane.f32.xlu0 %v2110
  %v2112 = vpop.xlane.xlu0 %2111
  %v2113 = vsel %vm357, %v2103, 0.0
  %2114 = vadd.xlane.f32.xlu0 %v2113
  %v2115 = vpop.xlane.xlu0 %2114
  %v2116 = vmul.f32 %v2106, %v823
  %v2117 = vmul.f32 %v2109, %v823
  %v2118 = vmul.f32 %v2112, %v823
  %v2119 = vmul.f32 %v2115, %v823
  %v2120 = vadd.f32 %v2116, 1e-05
  %v2121 = vadd.f32 %v2117, 1e-05
  %v2122 = vadd.f32 %v2118, 1e-05
  %v2123 = vadd.f32 %v2119, 1e-05
  %v2124 = vrsqrt.pop %v2120
  %v2125 = vmul.f32 %v2124, %v2120
  %v2126 = vmul.f32 %v2125, %v2124
  %v2127 = vmul.f32 0.5, %v2126
  %v2128 = vsub.f32 1.5, %v2127
  %v2129 = vmul.f32 %v2124, %v2128
  %vm2130 = vweird.f32 %v2120
  %vm2131 = vweird.f32 %v2124
  %vm2132 = vmor %vm2130, %vm2131
  %v2133 = vsel %vm2132, %v2124, %v2129
  %v2134 = vrsqrt.pop %v2121
  %v2135 = vmul.f32 %v2134, %v2121
  %v2136 = vmul.f32 %v2135, %v2134
  %v2137 = vmul.f32 0.5, %v2136
  %v2138 = vsub.f32 1.5, %v2137
  %v2139 = vmul.f32 %v2134, %v2138
  %vm2140 = vweird.f32 %v2121
  %vm2141 = vweird.f32 %v2134
  %vm2142 = vmor %vm2140, %vm2141
  %v2143 = vsel %vm2142, %v2134, %v2139
  %v2144 = vrsqrt.pop %v2122
  %v2145 = vmul.f32 %v2144, %v2122
  %v2146 = vmul.f32 %v2145, %v2144
  %v2147 = vmul.f32 0.5, %v2146
  %v2148 = vsub.f32 1.5, %v2147
  %v2149 = vmul.f32 %v2144, %v2148
  %vm2150 = vweird.f32 %v2122
  %vm2151 = vweird.f32 %v2144
  %vm2152 = vmor %vm2150, %vm2151
  %v2153 = vsel %vm2152, %v2144, %v2149
  %v2154 = vrsqrt.pop %v2123
  %v2155 = vmul.f32 %v2154, %v2123
  %v2156 = vmul.f32 %v2155, %v2154
  %v2157 = vmul.f32 0.5, %v2156
  %v2158 = vsub.f32 1.5, %v2157
  %v2159 = vmul.f32 %v2154, %v2158
  %vm2160 = vweird.f32 %v2123
  %vm2161 = vweird.f32 %v2154
  %vm2162 = vmor %vm2160, %vm2161
  %v2163 = vsel %vm2162, %v2154, %v2159
  %v2164 = vmul.f32 %v2096, %v2133
  %v2165 = vmul.f32 %v2097, %v2143
  %v2166 = vmul.f32 %v2098, %v2153
  %v2167 = vmul.f32 %v2099, %v2163
  %v2169 = vperm.slane %v1620, 0
  %v2171 = vmul.f32 %v2164, %v2169
  %v2172 = vmul.f32 %v2165, %v2169
  %v2173 = vmul.f32 %v2166, %v2169
  %v2174 = vmul.f32 %v2167, %v2169
  %v2176 = vperm.slane %v1621, 0
  %v2178 = vadd.f32 %v2171, %v2176
  %v2179 = vadd.f32 %v2172, %v2176
  %v2180 = vadd.f32 %v2173, %v2176
  %v2181 = vadd.f32 %v2174, %v2176
  %v2183 = vperm.slane %v1626, 0
  %v2186 = vsel %vm357, %v2178, 0
  %v2189 = vsel %vm357, %v2179, 0
  %v2192 = vsel %vm357, %v2180, 0
  %v2195 = vsel %vm357, %v2181, 0
  %2197 = vmatpush.msra.mxu0 0.0
  %2198 = vmatpush.msra.mxu0 0.0
  %2199 = vmatpush.msra.mxu0 0.0
  %2200 = vmatpush.msra.mxu0 0.0
  %2201 = vmatpush.msra.mxu0 0.0
  %2202 = vmatpush.msra.mxu0 0.0
  %2203 = vmatpush.msra.mxu0 0.0
  %2204 = vmatpush.msra.mxu0 0.0
  %2205 = vmatpush.msra.mxu0 0.0
  %2206 = vmatpush.msra.mxu0 0.0
  %2207 = vmatpush.msra.mxu0 0.0
  %2208 = vmatpush.msra.mxu0 0.0
  %2209 = vmatpush.msra.mxu0 %v1625
  %2210 = vmatpush.msra.mxu0 %v1624
  %2211 = vmatpush.msra.mxu0 %v1623
  %2212 = vmatpush.msra.mxu0 %v1622
  %2213 = vmatmul.f32.gmra.mxu0 %v2186
  %v2214 = vpop.f32.mrf.mxu0
  %v2215 = vadd.f32 %v2183, %v2214
  %2216 = vmatmul.f32.gmra.mxu0 %v2189
  %v2217 = vpop.f32.mrf.mxu0
  %v2218 = vadd.f32 %v2183, %v2217
  %2219 = vmatmul.f32.gmra.mxu0 %v2192
  %v2220 = vpop.f32.mrf.mxu0
  %v2221 = vadd.f32 %v2183, %v2220
  %2222 = vmatmul.f32.gmra.mxu0 %v2195
  %v2223 = vpop.f32.mrf.mxu0
  %v2224 = vadd.f32 %v2183, %v2223
  %2225 = vdwg.mxu0
  %v2226 = vtanh.pop %v2215
  %v2227 = vtanh.pop %v2218
  %v2228 = vtanh.pop %v2221
  %v2229 = vtanh.pop %v2224
  %2234 = vrot.lane.b32.xlu0 %v2226, 32
  %v2235 = vpop.permute.xlu0 %2234
  %2236 = vrot.lane.b32.xlu0 %v2227, 32
  %v2237 = vpop.permute.xlu0 %2236
  %2238 = vrot.lane.b32.xlu0 %v2228, 32
  %v2239 = vpop.permute.xlu0 %2238
  %2240 = vrot.lane.b32.xlu0 %v2229, 32
  %v2241 = vpop.permute.xlu0 %2240
  %v2246 = vsel %vm357, %v226, %v2235
  %v2247 = vsel %vm357, %v227, %v2237
  %v2248 = vsel %vm357, %v228, %v2239
  %v2249 = vsel %vm357, %v229, %v2241
  %v2250 = vld [vmem:[%s43] sm:$0xff]
  %v2251 = vld [vmem:[%s43 + $0x8] sm:$0xff]
  %v2252 = vld [vmem:[%s43 + $0x10] sm:$0xff]
  %v2253 = vld [vmem:[%s43 + $0x18] sm:$0xff]
  %v2254 = vld [vmem:[%s43 + $0x20] sm:$0xff]
  %v2255 = vld [vmem:[%s43 + $0x28] sm:$0xff]
  %v2256 = vld [vmem:[%s43 + $0x30] sm:$0xff]
  %v2257 = vld [vmem:[%s43 + $0x38] sm:$0xff]
  %v2258 = vld [vmem:[%s43 + $0x40] sm:$0xff]
  %v2259 = vld [vmem:[%s43 + $0x48] sm:$0xff]
  %v2260 = vld [vmem:[%s43 + $0x50] sm:$0xff]
  %v2261 = vld [vmem:[%s43 + $0x58] sm:$0xff]
  %v2262 = vld [vmem:[%s43 + $0x60] sm:$0xff]
  %v2263 = vld [vmem:[%s43 + $0x68] sm:$0xff]
  %v2264 = vld [vmem:[%s43 + $0x70] sm:$0xff]
  %v2265 = vld [vmem:[%s43 + $0x78] sm:$0xff]
  %v2266 = vld [vmem:[%s43 + $0x80] sm:$0xff]
  %v2267 = vld [vmem:[%s43 + $0x88] sm:$0xff]
  %v2268 = vld [vmem:[%s43 + $0x90] sm:$0xff]
  %v2269 = vld [vmem:[%s43 + $0x98] sm:$0xff]
  %v2270 = vld [vmem:[%s43 + $0xa0] sm:$0xff]
  %v2271 = vld [vmem:[%s43 + $0xa8] sm:$0xff]
  %v2272 = vld [vmem:[%s43 + $0xb0] sm:$0xff]
  %v2273 = vld [vmem:[%s43 + $0xb8] sm:$0xff]
  %v2274 = vld [vmem:[%s45] sm:$0xff]
  %v2275 = vld [vmem:[%s45 + $0x8] sm:$0xff]
  %v2276 = vld [vmem:[%s45 + $0x10] sm:$0xff]
  %v2277 = vld [vmem:[%s45 + $0x18] sm:$0xff]
  %v2278 = vld [vmem:[%s45 + $0x20] sm:$0xff]
  %v2279 = vld [vmem:[%s45 + $0x28] sm:$0xff]
  %v2280 = vld [vmem:[%s45 + $0x30] sm:$0xff]
  %v2281 = vld [vmem:[%s45 + $0x38] sm:$0xff]
  %v2282 = vld [vmem:[%s45 + $0x40] sm:$0xff]
  %v2283 = vld [vmem:[%s45 + $0x48] sm:$0xff]
  %v2284 = vld [vmem:[%s45 + $0x50] sm:$0xff]
  %v2285 = vld [vmem:[%s45 + $0x58] sm:$0xff]
  %v2286 = vld [vmem:[%s45 + $0x60] sm:$0xff]
  %v2287 = vld [vmem:[%s45 + $0x68] sm:$0xff]
  %v2288 = vld [vmem:[%s45 + $0x70] sm:$0xff]
  %v2289 = vld [vmem:[%s45 + $0x78] sm:$0xff]
  %v2290 = vld [vmem:[%s45 + $0x80] sm:$0xff]
  %v2291 = vld [vmem:[%s45 + $0x88] sm:$0xff]
  %v2292 = vld [vmem:[%s45 + $0x90] sm:$0xff]
  %v2293 = vld [vmem:[%s45 + $0x98] sm:$0xff]
  %v2294 = vld [vmem:[%s45 + $0xa0] sm:$0xff]
  %v2295 = vld [vmem:[%s45 + $0xa8] sm:$0xff]
  %v2296 = vld [vmem:[%s45 + $0xb0] sm:$0xff]
  %v2297 = vld [vmem:[%s45 + $0xb8] sm:$0xff]
  %v2298 = vld [vmem:[%s47] sm:$0x1]
  %v2299 = vld [vmem:[%s49] sm:$0x1]
  %v2300 = vld [vmem:[%s51] sm:$0xff]
  %v2301 = vld [vmem:[%s51 + $0x8] sm:$0xff]
  %v2302 = vld [vmem:[%s51 + $0x10] sm:$0xff]
  %v2303 = vld [vmem:[%s51 + $0x18] sm:$0xff]
  %v2304 = vld [vmem:[%s51 + $0x20] sm:$0xff]
  %v2305 = vld [vmem:[%s51 + $0x28] sm:$0xff]
  %v2306 = vld [vmem:[%s51 + $0x30] sm:$0xff]
  %v2307 = vld [vmem:[%s51 + $0x38] sm:$0xff]
  %v2308 = vld [vmem:[%s53] sm:$0x1]
  %v2309 = vmul.f32 %v264, %v2246
  %v2310 = vmul.f32 %v269, %v2247
  %v2311 = vmul.f32 %v274, %v2248
  %v2312 = vmul.f32 %v279, %v2249
  %v2313 = vmul.f32 %v287, %v2246
  %v2314 = vmul.f32 %v291, %v2247
  %v2315 = vmul.f32 %v295, %v2248
  %v2316 = vmul.f32 %v299, %v2249
  %v2317 = vmul.f32 %v307, %v2246
  %v2318 = vmul.f32 %v311, %v2247
  %v2319 = vmul.f32 %v315, %v2248
  %v2320 = vmul.f32 %v319, %v2249
  %2325 = vrot.lane.b32.xlu0 %v2313, 64
  %v2326 = vpop.permute.xlu0 %2325
  %2327 = vrot.lane.b32.xlu0 %v2314, 64
  %v2328 = vpop.permute.xlu0 %2327
  %2329 = vrot.lane.b32.xlu0 %v2315, 64
  %v2330 = vpop.permute.xlu0 %2329
  %2331 = vrot.lane.b32.xlu0 %v2316, 64
  %v2332 = vpop.permute.xlu0 %2331
  %v2337 = vsel %vm362, %v2309, %v2326
  %v2338 = vsel %vm362, %v2310, %v2328
  %v2339 = vsel %vm362, %v2311, %v2330
  %v2340 = vsel %vm362, %v2312, %v2332
  %2341 = vmatpush.msra.mxu0 0.0
  %2342 = vmatpush.msra.mxu0 0.0
  %2343 = vmatpush.msra.mxu0 0.0
  %2344 = vmatpush.msra.mxu0 0.0
  %2345 = vmatpush.msra.mxu0 0.0
  %2346 = vmatpush.msra.mxu0 0.0
  %2347 = vmatpush.msra.mxu0 0.0
  %2348 = vmatpush.msra.mxu0 0.0
  %2349 = vmatpush.msra.mxu0 0.0
  %2350 = vmatpush.msra.mxu0 0.0
  %2351 = vmatpush.msra.mxu0 0.0
  %2352 = vmatpush.msra.mxu0 0.0
  %2353 = vmatpush.msra.mxu0 %v2249
  %2354 = vmatpush.msra.mxu0 %v2248
  %2355 = vmatpush.msra.mxu0 %v2247
  %2356 = vmatpush.msra.mxu0 %v2246
  %2357 = vmatmul.f32.gmra.mxu0 %v368
  %v2358 = vpop.f32.mrf.mxu0
  %v2359 = vadd.f32 0.0, %v2358
  %2360 = vmatmul.f32.gmra.mxu0 %v371
  %v2361 = vpop.f32.mrf.mxu0
  %v2362 = vadd.f32 0.0, %v2361
  %2363 = vmatmul.f32.gmra.mxu0 %v374
  %v2364 = vpop.f32.mrf.mxu0
  %v2365 = vadd.f32 0.0, %v2364
  %2366 = vmatmul.f32.gmra.mxu0 %v377
  %v2367 = vpop.f32.mrf.mxu0
  %v2368 = vadd.f32 0.0, %v2367
  %2369 = vmatmul.f32.gmra.mxu0 %v380
  %v2370 = vpop.f32.mrf.mxu0
  %v2371 = vadd.f32 0.0, %v2370
  %2372 = vmatmul.f32.gmra.mxu0 %v383
  %v2373 = vpop.f32.mrf.mxu0
  %v2374 = vadd.f32 0.0, %v2373
  %2375 = vmatmul.f32.gmra.mxu0 %v386
  %v2376 = vpop.f32.mrf.mxu0
  %v2377 = vadd.f32 0.0, %v2376
  %2378 = vmatmul.f32.gmra.mxu0 %v389
  %v2379 = vpop.f32.mrf.mxu0
  %v2380 = vadd.f32 0.0, %v2379
  %2381 = vmatmul.f32.gmra.mxu0 %v392
  %v2382 = vpop.f32.mrf.mxu0
  %v2383 = vadd.f32 0.0, %v2382
  %2384 = vmatmul.f32.gmra.mxu0 %v395
  %v2385 = vpop.f32.mrf.mxu0
  %v2386 = vadd.f32 0.0, %v2385
  %2387 = vmatmul.f32.gmra.mxu0 %v398
  %v2388 = vpop.f32.mrf.mxu0
  %v2389 = vadd.f32 0.0, %v2388
  %2390 = vmatmul.f32.gmra.mxu0 %v401
  %v2391 = vpop.f32.mrf.mxu0
  %v2392 = vadd.f32 0.0, %v2391
  %2393 = vdwg.mxu0
  %v2395 = vsel %vm362, %v2359, 0
  %v2398 = vsel %vm362, %v2362, 0
  %v2401 = vsel %vm362, %v2365, 0
  %v2404 = vsel %vm362, %v2368, 0
  %2406 = vmatpush.msra.mxu0 0.0
  %2407 = vmatpush.msra.mxu0 0.0
  %2408 = vmatpush.msra.mxu0 0.0
  %2409 = vmatpush.msra.mxu0 0.0
  %2410 = vmatpush.msra.mxu0 0.0
  %2411 = vmatpush.msra.mxu0 0.0
  %2412 = vmatpush.msra.mxu0 0.0
  %2413 = vmatpush.msra.mxu0 0.0
  %2414 = vmatpush.msra.mxu0 %v2257
  %2415 = vmatpush.msra.mxu0 %v2256
  %2416 = vmatpush.msra.mxu0 %v2255
  %2417 = vmatpush.msra.mxu0 %v2254
  %2418 = vmatpush.msra.mxu0 %v2253
  %2419 = vmatpush.msra.mxu0 %v2252
  %2420 = vmatpush.msra.mxu0 %v2251
  %2421 = vmatpush.msra.mxu0 %v2250
  %2422 = vmatmul.f32.gmra.mxu0 %v2395
  %v2423 = vpop.f32.mrf.mxu0
  %v2424 = vadd.f32 0.0, %v2423
  %2425 = vmatmul.f32.gmra.mxu0 %v2398
  %v2426 = vpop.f32.mrf.mxu0
  %v2427 = vadd.f32 0.0, %v2426
  %2428 = vmatmul.f32.gmra.mxu0 %v2401
  %v2429 = vpop.f32.mrf.mxu0
  %v2430 = vadd.f32 0.0, %v2429
  %2431 = vmatmul.f32.gmra.mxu0 %v2404
  %v2432 = vpop.f32.mrf.mxu0
  %v2433 = vadd.f32 0.0, %v2432
  %2434 = vdwg.mxu0
  %v2436 = vsel %vm362, %v2317, 0
  %v2439 = vsel %vm362, %v2318, 0
  %v2442 = vsel %vm362, %v2319, 0
  %v2445 = vsel %vm362, %v2320, 0
  %2447 = vmatpush.msra.mxu0 %v2289
  %2448 = vmatpush.msra.mxu0 %v2288
  %2449 = vmatpush.msra.mxu0 %v2287
  %2450 = vmatpush.msra.mxu0 %v2286
  %2451 = vmatpush.msra.mxu0 %v2285
  %2452 = vmatpush.msra.mxu0 %v2284
  %2453 = vmatpush.msra.mxu0 %v2283
  %2454 = vmatpush.msra.mxu0 %v2282
  %2455 = vmatpush.msra.mxu0 %v2281
  %2456 = vmatpush.msra.mxu0 %v2280
  %2457 = vmatpush.msra.mxu0 %v2279
  %2458 = vmatpush.msra.mxu0 %v2278
  %2459 = vmatpush.msra.mxu0 %v2277
  %2460 = vmatpush.msra.mxu0 %v2276
  %2461 = vmatpush.msra.mxu0 %v2275
  %2462 = vmatpush.msra.mxu0 %v2274
  %2463 = vmatmul.f32.gmra.mxu0 %v2337
  %v2464 = vpop.f32.mrf.mxu0
  %v2465 = vadd.f32 %v2424, %v2464
  %2466 = vmatmul.f32.gmra.mxu0 %v2338
  %v2467 = vpop.f32.mrf.mxu0
  %v2468 = vadd.f32 %v2427, %v2467
  %2469 = vmatmul.f32.gmra.mxu0 %v2339
  %v2470 = vpop.f32.mrf.mxu0
  %v2471 = vadd.f32 %v2430, %v2470
  %2472 = vmatmul.f32.gmra.mxu0 %v2340
  %v2473 = vpop.f32.mrf.mxu0
  %v2474 = vadd.f32 %v2433, %v2473
  %2475 = vdwg.mxu0
  %2476 = vmatpush.msra.mxu0 0.0
  %2477 = vmatpush.msra.mxu0 0.0
  %2478 = vmatpush.msra.mxu0 0.0
  %2479 = vmatpush.msra.mxu0 0.0
  %2480 = vmatpush.msra.mxu0 0.0
  %2481 = vmatpush.msra.mxu0 0.0
  %2482 = vmatpush.msra.mxu0 0.0
  %2483 = vmatpush.msra.mxu0 0.0
  %2484 = vmatpush.msra.mxu0 %v2297
  %2485 = vmatpush.msra.mxu0 %v2296
  %2486 = vmatpush.msra.mxu0 %v2295
  %2487 = vmatpush.msra.mxu0 %v2294
  %2488 = vmatpush.msra.mxu0 %v2293
  %2489 = vmatpush.msra.mxu0 %v2292
  %2490 = vmatpush.msra.mxu0 %v2291
  %2491 = vmatpush.msra.mxu0 %v2290
  %2492 = vmatmul.f32.gmra.mxu0 %v2436
  %v2493 = vpop.f32.mrf.mxu0
  %v2494 = vadd.f32 %v2465, %v2493
  %2495 = vmatmul.f32.gmra.mxu0 %v2439
  %v2496 = vpop.f32.mrf.mxu0
  %v2497 = vadd.f32 %v2468, %v2496
  %2498 = vmatmul.f32.gmra.mxu0 %v2442
  %v2499 = vpop.f32.mrf.mxu0
  %v2500 = vadd.f32 %v2471, %v2499
  %2501 = vmatmul.f32.gmra.mxu0 %v2445
  %v2502 = vpop.f32.mrf.mxu0
  %v2503 = vadd.f32 %v2474, %v2502
  %2504 = vdwg.mxu0
  %v2506 = vsel %vm362, %v2371, 0
  %v2509 = vsel %vm362, %v2374, 0
  %v2512 = vsel %vm362, %v2377, 0
  %v2515 = vsel %vm362, %v2380, 0
  %2517 = vmatpush.msra.mxu0 0.0
  %2518 = vmatpush.msra.mxu0 0.0
  %2519 = vmatpush.msra.mxu0 0.0
  %2520 = vmatpush.msra.mxu0 0.0
  %2521 = vmatpush.msra.mxu0 0.0
  %2522 = vmatpush.msra.mxu0 0.0
  %2523 = vmatpush.msra.mxu0 0.0
  %2524 = vmatpush.msra.mxu0 0.0
  %2525 = vmatpush.msra.mxu0 %v2265
  %2526 = vmatpush.msra.mxu0 %v2264
  %2527 = vmatpush.msra.mxu0 %v2263
  %2528 = vmatpush.msra.mxu0 %v2262
  %2529 = vmatpush.msra.mxu0 %v2261
  %2530 = vmatpush.msra.mxu0 %v2260
  %2531 = vmatpush.msra.mxu0 %v2259
  %2532 = vmatpush.msra.mxu0 %v2258
  %2533 = vmatmul.f32.gmra.mxu0 %v2506
  %v2534 = vpop.f32.mrf.mxu0
  %v2535 = vadd.f32 0.0, %v2534
  %2536 = vmatmul.f32.gmra.mxu0 %v2509
  %v2537 = vpop.f32.mrf.mxu0
  %v2538 = vadd.f32 0.0, %v2537
  %2539 = vmatmul.f32.gmra.mxu0 %v2512
  %v2540 = vpop.f32.mrf.mxu0
  %v2541 = vadd.f32 0.0, %v2540
  %2542 = vmatmul.f32.gmra.mxu0 %v2515
  %v2543 = vpop.f32.mrf.mxu0
  %v2544 = vadd.f32 0.0, %v2543
  %2545 = vdwg.mxu0
  %v2546 = vadd.f32 %v2494, %v2535
  %v2547 = vadd.f32 %v2497, %v2538
  %v2548 = vadd.f32 %v2500, %v2541
  %v2549 = vadd.f32 %v2503, %v2544
  %v2551 = vsel %vm362, %v2383, 0
  %v2554 = vsel %vm362, %v2386, 0
  %v2557 = vsel %vm362, %v2389, 0
  %v2560 = vsel %vm362, %v2392, 0
  %2562 = vmatpush.msra.mxu0 0.0
  %2563 = vmatpush.msra.mxu0 0.0
  %2564 = vmatpush.msra.mxu0 0.0
  %2565 = vmatpush.msra.mxu0 0.0
  %2566 = vmatpush.msra.mxu0 0.0
  %2567 = vmatpush.msra.mxu0 0.0
  %2568 = vmatpush.msra.mxu0 0.0
  %2569 = vmatpush.msra.mxu0 0.0
  %2570 = vmatpush.msra.mxu0 %v2273
  %2571 = vmatpush.msra.mxu0 %v2272
  %2572 = vmatpush.msra.mxu0 %v2271
  %2573 = vmatpush.msra.mxu0 %v2270
  %2574 = vmatpush.msra.mxu0 %v2269
  %2575 = vmatpush.msra.mxu0 %v2268
  %2576 = vmatpush.msra.mxu0 %v2267
  %2577 = vmatpush.msra.mxu0 %v2266
  %2578 = vmatmul.f32.gmra.mxu0 %v2551
  %v2579 = vpop.f32.mrf.mxu0
  %v2580 = vadd.f32 0.0, %v2579
  %2581 = vmatmul.f32.gmra.mxu0 %v2554
  %v2582 = vpop.f32.mrf.mxu0
  %v2583 = vadd.f32 0.0, %v2582
  %2584 = vmatmul.f32.gmra.mxu0 %v2557
  %v2585 = vpop.f32.mrf.mxu0
  %v2586 = vadd.f32 0.0, %v2585
  %2587 = vmatmul.f32.gmra.mxu0 %v2560
  %v2588 = vpop.f32.mrf.mxu0
  %v2589 = vadd.f32 0.0, %v2588
  %2590 = vdwg.mxu0
  %v2591 = vadd.f32 %v2546, %v2580
  %v2592 = vadd.f32 %v2547, %v2583
  %v2593 = vadd.f32 %v2548, %v2586
  %v2594 = vadd.f32 %v2549, %v2589
  %v2595 = vmul.f32 %v2591, 0.5
  %v2596 = vmul.f32 %v2592, 0.5
  %v2597 = vmul.f32 %v2593, 0.5
  %v2598 = vmul.f32 %v2594, 0.5
  %v2599 = vmul.f32 %v2591, 0.70710677
  %v2600 = vmul.f32 %v2592, 0.70710677
  %v2601 = vmul.f32 %v2593, 0.70710677
  %v2602 = vmul.f32 %v2594, 0.70710677
  %v2603 = vmul.f32 %v2599, %v2599
  %v2604 = vmin.f32 16.0, %v2603
  %v2605 = vmul.f32 %v2604, 2.1237322e-06
  %v2606 = vadd.f32 %v2605, 0.00028619796
  %v2607 = vmul.f32 %v2604, %v2606
  %v2608 = vadd.f32 %v2607, 0.0036580483
  %v2609 = vmul.f32 %v2604, %v2608
  %v2610 = vadd.f32 %v2609, 0.05243302
  %v2611 = vmul.f32 %v2604, %v2610
  %v2612 = vadd.f32 %v2611, 0.18741608
  %v2613 = vmul.f32 %v2604, %v2612
  %v2614 = vadd.f32 %v2613, 1.1283791
  %v2615 = vmul.f32 %v2599, %v2614
  %v2616 = vmul.f32 %v2604, 3.8918573e-05
  %v2617 = vadd.f32 %v2616, 0.001143296
  %v2618 = vmul.f32 %v2604, %v2617
  %v2619 = vadd.f32 %v2618, 0.014752088
  %v2620 = vmul.f32 %v2604, %v2619
  %v2621 = vadd.f32 %v2620, 0.112945676
  %v2622 = vmul.f32 %v2604, %v2621
  %v2623 = vadd.f32 %v2622, 0.4994258
  %v2624 = vmul.f32 %v2604, %v2623
  %v2625 = vadd.f32 %v2624, 1.0
  %v2626 = vrcp.pop %v2625
  %v2627 = vmul.f32 %v2625, %v2626
  %v2628 = vsub.f32 1.0, %v2627
  %v2629 = vmul.f32 %v2626, %v2628
  %v2630 = vadd.f32 %v2626, %v2629
  %vm2631 = vweird.f32 %v2625
  %vm2632 = vweird.f32 %v2626
  %vm2633 = vmor %vm2631, %vm2632
  %v2634 = vsel %vm2633, %v2626, %v2630
  %v2635 = vand.u32 2147483647, %v2625
  %vm2636 = vcmp.eq.f32.partialorder %v2635, 8.507059e+37
  %v2637 = vand.u32 %v2625, 2147483648
  %v2638 = vor.u32 1.1754944e-38, %v2637
  %v2639 = vsel %vm2636, %v2638, %v2634
  %v2640 = vmul.f32 %v2615, %v2639
  %v2641 = vmin.f32 %v2640, 1.0
  %v2642 = vmax.f32 %v2641, -1.0
  %v2643 = vmul.f32 %v2600, %v2600
  %v2644 = vmin.f32 16.0, %v2643
  %v2645 = vmul.f32 %v2644, 2.1237322e-06
  %v2646 = vadd.f32 %v2645, 0.00028619796
  %v2647 = vmul.f32 %v2644, %v2646
  %v2648 = vadd.f32 %v2647, 0.0036580483
  %v2649 = vmul.f32 %v2644, %v2648
  %v2650 = vadd.f32 %v2649, 0.05243302
  %v2651 = vmul.f32 %v2644, %v2650
  %v2652 = vadd.f32 %v2651, 0.18741608
  %v2653 = vmul.f32 %v2644, %v2652
  %v2654 = vadd.f32 %v2653, 1.1283791
  %v2655 = vmul.f32 %v2600, %v2654
  %v2656 = vmul.f32 %v2644, 3.8918573e-05
  %v2657 = vadd.f32 %v2656, 0.001143296
  %v2658 = vmul.f32 %v2644, %v2657
  %v2659 = vadd.f32 %v2658, 0.014752088
  %v2660 = vmul.f32 %v2644, %v2659
  %v2661 = vadd.f32 %v2660, 0.112945676
  %v2662 = vmul.f32 %v2644, %v2661
  %v2663 = vadd.f32 %v2662, 0.4994258
  %v2664 = vmul.f32 %v2644, %v2663
  %v2665 = vadd.f32 %v2664, 1.0
  %v2666 = vrcp.pop %v2665
  %v2667 = vmul.f32 %v2665, %v2666
  %v2668 = vsub.f32 1.0, %v2667
  %v2669 = vmul.f32 %v2666, %v2668
  %v2670 = vadd.f32 %v2666, %v2669
  %vm2671 = vweird.f32 %v2665
  %vm2672 = vweird.f32 %v2666
  %vm2673 = vmor %vm2671, %vm2672
  %v2674 = vsel %vm2673, %v2666, %v2670
  %v2675 = vand.u32 2147483647, %v2665
  %vm2676 = vcmp.eq.f32.partialorder %v2675, 8.507059e+37
  %v2677 = vand.u32 %v2665, 2147483648
  %v2678 = vor.u32 1.1754944e-38, %v2677
  %v2679 = vsel %vm2676, %v2678, %v2674
  %v2680 = vmul.f32 %v2655, %v2679
  %v2681 = vmin.f32 %v2680, 1.0
  %v2682 = vmax.f32 %v2681, -1.0
  %v2683 = vmul.f32 %v2601, %v2601
  %v2684 = vmin.f32 16.0, %v2683
  %v2685 = vmul.f32 %v2684, 2.1237322e-06
  %v2686 = vadd.f32 %v2685, 0.00028619796
  %v2687 = vmul.f32 %v2684, %v2686
  %v2688 = vadd.f32 %v2687, 0.0036580483
  %v2689 = vmul.f32 %v2684, %v2688
  %v2690 = vadd.f32 %v2689, 0.05243302
  %v2691 = vmul.f32 %v2684, %v2690
  %v2692 = vadd.f32 %v2691, 0.18741608
  %v2693 = vmul.f32 %v2684, %v2692
  %v2694 = vadd.f32 %v2693, 1.1283791
  %v2695 = vmul.f32 %v2601, %v2694
  %v2696 = vmul.f32 %v2684, 3.8918573e-05
  %v2697 = vadd.f32 %v2696, 0.001143296
  %v2698 = vmul.f32 %v2684, %v2697
  %v2699 = vadd.f32 %v2698, 0.014752088
  %v2700 = vmul.f32 %v2684, %v2699
  %v2701 = vadd.f32 %v2700, 0.112945676
  %v2702 = vmul.f32 %v2684, %v2701
  %v2703 = vadd.f32 %v2702, 0.4994258
  %v2704 = vmul.f32 %v2684, %v2703
  %v2705 = vadd.f32 %v2704, 1.0
  %v2706 = vrcp.pop %v2705
  %v2707 = vmul.f32 %v2705, %v2706
  %v2708 = vsub.f32 1.0, %v2707
  %v2709 = vmul.f32 %v2706, %v2708
  %v2710 = vadd.f32 %v2706, %v2709
  %vm2711 = vweird.f32 %v2705
  %vm2712 = vweird.f32 %v2706
  %vm2713 = vmor %vm2711, %vm2712
  %v2714 = vsel %vm2713, %v2706, %v2710
  %v2715 = vand.u32 2147483647, %v2705
  %vm2716 = vcmp.eq.f32.partialorder %v2715, 8.507059e+37
  %v2717 = vand.u32 %v2705, 2147483648
  %v2718 = vor.u32 1.1754944e-38, %v2717
  %v2719 = vsel %vm2716, %v2718, %v2714
  %v2720 = vmul.f32 %v2695, %v2719
  %v2721 = vmin.f32 %v2720, 1.0
  %v2722 = vmax.f32 %v2721, -1.0
  %v2723 = vmul.f32 %v2602, %v2602
  %v2724 = vmin.f32 16.0, %v2723
  %v2725 = vmul.f32 %v2724, 2.1237322e-06
  %v2726 = vadd.f32 %v2725, 0.00028619796
  %v2727 = vmul.f32 %v2724, %v2726
  %v2728 = vadd.f32 %v2727, 0.0036580483
  %v2729 = vmul.f32 %v2724, %v2728
  %v2730 = vadd.f32 %v2729, 0.05243302
  %v2731 = vmul.f32 %v2724, %v2730
  %v2732 = vadd.f32 %v2731, 0.18741608
  %v2733 = vmul.f32 %v2724, %v2732
  %v2734 = vadd.f32 %v2733, 1.1283791
  %v2735 = vmul.f32 %v2602, %v2734
  %v2736 = vmul.f32 %v2724, 3.8918573e-05
  %v2737 = vadd.f32 %v2736, 0.001143296
  %v2738 = vmul.f32 %v2724, %v2737
  %v2739 = vadd.f32 %v2738, 0.014752088
  %v2740 = vmul.f32 %v2724, %v2739
  %v2741 = vadd.f32 %v2740, 0.112945676
  %v2742 = vmul.f32 %v2724, %v2741
  %v2743 = vadd.f32 %v2742, 0.4994258
  %v2744 = vmul.f32 %v2724, %v2743
  %v2745 = vadd.f32 %v2744, 1.0
  %v2746 = vrcp.pop %v2745
  %v2747 = vmul.f32 %v2745, %v2746
  %v2748 = vsub.f32 1.0, %v2747
  %v2749 = vmul.f32 %v2746, %v2748
  %v2750 = vadd.f32 %v2746, %v2749
  %vm2751 = vweird.f32 %v2745
  %vm2752 = vweird.f32 %v2746
  %vm2753 = vmor %vm2751, %vm2752
  %v2754 = vsel %vm2753, %v2746, %v2750
  %v2755 = vand.u32 2147483647, %v2745
  %vm2756 = vcmp.eq.f32.partialorder %v2755, 8.507059e+37
  %v2757 = vand.u32 %v2745, 2147483648
  %v2758 = vor.u32 1.1754944e-38, %v2757
  %v2759 = vsel %vm2756, %v2758, %v2754
  %v2760 = vmul.f32 %v2735, %v2759
  %v2761 = vmin.f32 %v2760, 1.0
  %v2762 = vmax.f32 %v2761, -1.0
  %v2763 = vadd.f32 %v2642, 1.0
  %v2764 = vadd.f32 %v2682, 1.0
  %v2765 = vadd.f32 %v2722, 1.0
  %v2766 = vadd.f32 %v2762, 1.0
  %v2767 = vmul.f32 %v2595, %v2763
  %v2768 = vmul.f32 %v2596, %v2764
  %v2769 = vmul.f32 %v2597, %v2765
  %v2770 = vmul.f32 %v2598, %v2766
  %v2771 = vsel %vm362, %v2767, 0.0
  %2772 = vadd.xlane.f32.xlu0 %v2771
  %v2773 = vpop.xlane.xlu0 %2772
  %v2774 = vsel %vm362, %v2768, 0.0
  %2775 = vadd.xlane.f32.xlu0 %v2774
  %v2776 = vpop.xlane.xlu0 %2775
  %v2777 = vsel %vm362, %v2769, 0.0
  %2778 = vadd.xlane.f32.xlu0 %v2777
  %v2779 = vpop.xlane.xlu0 %2778
  %v2780 = vsel %vm362, %v2770, 0.0
  %2781 = vadd.xlane.f32.xlu0 %v2780
  %v2782 = vpop.xlane.xlu0 %2781
  %v2783 = vrcp.pop 64.0
  %v2784 = vmul.f32 64.0, %v2783
  %v2785 = vsub.f32 1.0, %v2784
  %v2786 = vmul.f32 %v2783, %v2785
  %v2787 = vadd.f32 %v2783, %v2786
  %vm2788 = vweird.f32 %v2783
  %v2789 = vsel %vm2788, %v2783, %v2787
  %v2790 = vmul.f32 %v2773, %v2789
  %v2791 = vmul.f32 %v2776, %v2789
  %v2792 = vmul.f32 %v2779, %v2789
  %v2793 = vmul.f32 %v2782, %v2789
  %v2794 = vsub.f32 %v2767, %v2790
  %v2795 = vsub.f32 %v2768, %v2791
  %v2796 = vsub.f32 %v2769, %v2792
  %v2797 = vsub.f32 %v2770, %v2793
  %v2798 = vmul.f32 %v2794, %v2794
  %v2799 = vmul.f32 %v2795, %v2795
  %v2800 = vmul.f32 %v2796, %v2796
  %v2801 = vmul.f32 %v2797, %v2797
  %v2802 = vsel %vm362, %v2798, 0.0
  %2803 = vadd.xlane.f32.xlu0 %v2802
  %v2804 = vpop.xlane.xlu0 %2803
  %v2805 = vsel %vm362, %v2799, 0.0
  %2806 = vadd.xlane.f32.xlu0 %v2805
  %v2807 = vpop.xlane.xlu0 %2806
  %v2808 = vsel %vm362, %v2800, 0.0
  %2809 = vadd.xlane.f32.xlu0 %v2808
  %v2810 = vpop.xlane.xlu0 %2809
  %v2811 = vsel %vm362, %v2801, 0.0
  %2812 = vadd.xlane.f32.xlu0 %v2811
  %v2813 = vpop.xlane.xlu0 %2812
  %v2814 = vmul.f32 %v2804, %v2789
  %v2815 = vmul.f32 %v2807, %v2789
  %v2816 = vmul.f32 %v2810, %v2789
  %v2817 = vmul.f32 %v2813, %v2789
  %v2818 = vadd.f32 %v2814, 1e-05
  %v2819 = vadd.f32 %v2815, 1e-05
  %v2820 = vadd.f32 %v2816, 1e-05
  %v2821 = vadd.f32 %v2817, 1e-05
  %v2822 = vrsqrt.pop %v2818
  %v2823 = vmul.f32 %v2822, %v2818
  %v2824 = vmul.f32 %v2823, %v2822
  %v2825 = vmul.f32 0.5, %v2824
  %v2826 = vsub.f32 1.5, %v2825
  %v2827 = vmul.f32 %v2822, %v2826
  %vm2828 = vweird.f32 %v2818
  %vm2829 = vweird.f32 %v2822
  %vm2830 = vmor %vm2828, %vm2829
  %v2831 = vsel %vm2830, %v2822, %v2827
  %v2832 = vrsqrt.pop %v2819
  %v2833 = vmul.f32 %v2832, %v2819
  %v2834 = vmul.f32 %v2833, %v2832
  %v2835 = vmul.f32 0.5, %v2834
  %v2836 = vsub.f32 1.5, %v2835
  %v2837 = vmul.f32 %v2832, %v2836
  %vm2838 = vweird.f32 %v2819
  %vm2839 = vweird.f32 %v2832
  %vm2840 = vmor %vm2838, %vm2839
  %v2841 = vsel %vm2840, %v2832, %v2837
  %v2842 = vrsqrt.pop %v2820
  %v2843 = vmul.f32 %v2842, %v2820
  %v2844 = vmul.f32 %v2843, %v2842
  %v2845 = vmul.f32 0.5, %v2844
  %v2846 = vsub.f32 1.5, %v2845
  %v2847 = vmul.f32 %v2842, %v2846
  %vm2848 = vweird.f32 %v2820
  %vm2849 = vweird.f32 %v2842
  %vm2850 = vmor %vm2848, %vm2849
  %v2851 = vsel %vm2850, %v2842, %v2847
  %v2852 = vrsqrt.pop %v2821
  %v2853 = vmul.f32 %v2852, %v2821
  %v2854 = vmul.f32 %v2853, %v2852
  %v2855 = vmul.f32 0.5, %v2854
  %v2856 = vsub.f32 1.5, %v2855
  %v2857 = vmul.f32 %v2852, %v2856
  %vm2858 = vweird.f32 %v2821
  %vm2859 = vweird.f32 %v2852
  %vm2860 = vmor %vm2858, %vm2859
  %v2861 = vsel %vm2860, %v2852, %v2857
  %v2862 = vmul.f32 %v2794, %v2831
  %v2863 = vmul.f32 %v2795, %v2841
  %v2864 = vmul.f32 %v2796, %v2851
  %v2865 = vmul.f32 %v2797, %v2861
  %v2867 = vperm.slane %v2298, 0
  %v2869 = vmul.f32 %v2862, %v2867
  %v2870 = vmul.f32 %v2863, %v2867
  %v2871 = vmul.f32 %v2864, %v2867
  %v2872 = vmul.f32 %v2865, %v2867
  %v2874 = vperm.slane %v2299, 0
  %v2876 = vadd.f32 %v2869, %v2874
  %v2877 = vadd.f32 %v2870, %v2874
  %v2878 = vadd.f32 %v2871, %v2874
  %v2879 = vadd.f32 %v2872, %v2874
  %v2881 = vperm.slane %v2308, 0
  %v2884 = vsel %vm362, %v2876, 0
  %v2887 = vsel %vm362, %v2877, 0
  %v2890 = vsel %vm362, %v2878, 0
  %v2893 = vsel %vm362, %v2879, 0
  %2895 = vmatpush.msra.mxu0 0.0
  %2896 = vmatpush.msra.mxu0 0.0
  %2897 = vmatpush.msra.mxu0 0.0
  %2898 = vmatpush.msra.mxu0 0.0
  %2899 = vmatpush.msra.mxu0 0.0
  %2900 = vmatpush.msra.mxu0 0.0
  %2901 = vmatpush.msra.mxu0 0.0
  %2902 = vmatpush.msra.mxu0 0.0
  %2903 = vmatpush.msra.mxu0 %v2307
  %2904 = vmatpush.msra.mxu0 %v2306
  %2905 = vmatpush.msra.mxu0 %v2305
  %2906 = vmatpush.msra.mxu0 %v2304
  %2907 = vmatpush.msra.mxu0 %v2303
  %2908 = vmatpush.msra.mxu0 %v2302
  %2909 = vmatpush.msra.mxu0 %v2301
  %2910 = vmatpush.msra.mxu0 %v2300
  %2911 = vmatmul.f32.gmra.mxu0 %v2884
  %v2912 = vpop.f32.mrf.mxu0
  %v2913 = vadd.f32 %v2881, %v2912
  %2914 = vmatmul.f32.gmra.mxu0 %v2887
  %v2915 = vpop.f32.mrf.mxu0
  %v2916 = vadd.f32 %v2881, %v2915
  %2917 = vmatmul.f32.gmra.mxu0 %v2890
  %v2918 = vpop.f32.mrf.mxu0
  %v2919 = vadd.f32 %v2881, %v2918
  %2920 = vmatmul.f32.gmra.mxu0 %v2893
  %v2921 = vpop.f32.mrf.mxu0
  %v2922 = vadd.f32 %v2881, %v2921
  %2923 = vdwg.mxu0
  %v2924 = vtanh.pop %v2913
  %v2925 = vtanh.pop %v2916
  %v2926 = vtanh.pop %v2919
  %v2927 = vtanh.pop %v2922
  %v2928 = vld [vmem:[%s55] sm:$0xff]
  %v2929 = vld [vmem:[%s55 + $0x8] sm:$0xff]
  %v2930 = vld [vmem:[%s55 + $0x10] sm:$0xff]
  %v2931 = vld [vmem:[%s55 + $0x18] sm:$0xff]
  %v2932 = vld [vmem:[%s55 + $0x20] sm:$0xff]
  %v2933 = vld [vmem:[%s55 + $0x28] sm:$0xff]
  %v2934 = vld [vmem:[%s55 + $0x30] sm:$0xff]
  %v2935 = vld [vmem:[%s55 + $0x38] sm:$0xff]
  %v2936 = vld [vmem:[%s55 + $0x40] sm:$0xff]
  %v2937 = vld [vmem:[%s55 + $0x48] sm:$0xff]
  %v2938 = vld [vmem:[%s55 + $0x50] sm:$0xff]
  %v2939 = vld [vmem:[%s55 + $0x58] sm:$0xff]
  %v2940 = vld [vmem:[%s57] sm:$0xff]
  %v2941 = vld [vmem:[%s57 + $0x8] sm:$0xff]
  %v2942 = vld [vmem:[%s57 + $0x10] sm:$0xff]
  %v2943 = vld [vmem:[%s57 + $0x18] sm:$0xff]
  %v2944 = vld [vmem:[%s57 + $0x20] sm:$0xff]
  %v2945 = vld [vmem:[%s57 + $0x28] sm:$0xff]
  %v2946 = vld [vmem:[%s57 + $0x30] sm:$0xff]
  %v2947 = vld [vmem:[%s57 + $0x38] sm:$0xff]
  %v2948 = vld [vmem:[%s57 + $0x40] sm:$0xff]
  %v2949 = vld [vmem:[%s57 + $0x48] sm:$0xff]
  %v2950 = vld [vmem:[%s57 + $0x50] sm:$0xff]
  %v2951 = vld [vmem:[%s57 + $0x58] sm:$0xff]
  %v2952 = vld [vmem:[%s59] sm:$0x1]
  %v2953 = vld [vmem:[%s61] sm:$0x1]
  %v2954 = vld [vmem:[%s63] sm:$0xff]
  %v2955 = vld [vmem:[%s63 + $0x8] sm:$0xff]
  %v2956 = vld [vmem:[%s63 + $0x10] sm:$0xff]
  %v2957 = vld [vmem:[%s63 + $0x18] sm:$0xff]
  %v2958 = vld [vmem:[%s65] sm:$0x1]
  %v2959 = vmul.f32 %v264, %v2924
  %v2960 = vmul.f32 %v269, %v2925
  %v2961 = vmul.f32 %v274, %v2926
  %v2962 = vmul.f32 %v279, %v2927
  %v2963 = vmul.f32 %v287, %v2924
  %v2964 = vmul.f32 %v291, %v2925
  %v2965 = vmul.f32 %v295, %v2926
  %v2966 = vmul.f32 %v299, %v2927
  %v2967 = vmul.f32 %v307, %v2924
  %v2968 = vmul.f32 %v311, %v2925
  %v2969 = vmul.f32 %v315, %v2926
  %v2970 = vmul.f32 %v319, %v2927
  %2975 = vrot.lane.b32.xlu0 %v2963, 32
  %v2976 = vpop.permute.xlu0 %2975
  %2977 = vrot.lane.b32.xlu0 %v2964, 32
  %v2978 = vpop.permute.xlu0 %2977
  %2979 = vrot.lane.b32.xlu0 %v2965, 32
  %v2980 = vpop.permute.xlu0 %2979
  %2981 = vrot.lane.b32.xlu0 %v2966, 32
  %v2982 = vpop.permute.xlu0 %2981
  %2991 = vrot.lane.b32.xlu0 %v2967, 64
  %v2992 = vpop.permute.xlu0 %2991
  %2993 = vrot.lane.b32.xlu0 %v2968, 64
  %v2994 = vpop.permute.xlu0 %2993
  %2995 = vrot.lane.b32.xlu0 %v2969, 64
  %v2996 = vpop.permute.xlu0 %2995
  %2997 = vrot.lane.b32.xlu0 %v2970, 64
  %v2998 = vpop.permute.xlu0 %2997
  %v3003 = vsel %vm357, %v2959, %v2976
  %v3004 = vsel %vm357, %v2960, %v2978
  %v3005 = vsel %vm357, %v2961, %v2980
  %v3006 = vsel %vm357, %v2962, %v2982
  %v3007 = vsel %vm362, %v3003, %v2992
  %v3008 = vsel %vm362, %v3004, %v2994
  %v3009 = vsel %vm362, %v3005, %v2996
  %v3010 = vsel %vm362, %v3006, %v2998
  %3011 = vmatpush.msra.mxu0 0.0
  %3012 = vmatpush.msra.mxu0 0.0
  %3013 = vmatpush.msra.mxu0 0.0
  %3014 = vmatpush.msra.mxu0 0.0
  %3015 = vmatpush.msra.mxu0 0.0
  %3016 = vmatpush.msra.mxu0 0.0
  %3017 = vmatpush.msra.mxu0 0.0
  %3018 = vmatpush.msra.mxu0 0.0
  %3019 = vmatpush.msra.mxu0 0.0
  %3020 = vmatpush.msra.mxu0 0.0
  %3021 = vmatpush.msra.mxu0 0.0
  %3022 = vmatpush.msra.mxu0 0.0
  %3023 = vmatpush.msra.mxu0 %v2927
  %3024 = vmatpush.msra.mxu0 %v2926
  %3025 = vmatpush.msra.mxu0 %v2925
  %3026 = vmatpush.msra.mxu0 %v2924
  %3027 = vmatmul.f32.gmra.mxu0 %v368
  %v3028 = vpop.f32.mrf.mxu0
  %v3029 = vadd.f32 0.0, %v3028
  %3030 = vmatmul.f32.gmra.mxu0 %v371
  %v3031 = vpop.f32.mrf.mxu0
  %v3032 = vadd.f32 0.0, %v3031
  %3033 = vmatmul.f32.gmra.mxu0 %v374
  %v3034 = vpop.f32.mrf.mxu0
  %v3035 = vadd.f32 0.0, %v3034
  %3036 = vmatmul.f32.gmra.mxu0 %v377
  %v3037 = vpop.f32.mrf.mxu0
  %v3038 = vadd.f32 0.0, %v3037
  %3039 = vmatmul.f32.gmra.mxu0 %v380
  %v3040 = vpop.f32.mrf.mxu0
  %v3041 = vadd.f32 0.0, %v3040
  %3042 = vmatmul.f32.gmra.mxu0 %v383
  %v3043 = vpop.f32.mrf.mxu0
  %v3044 = vadd.f32 0.0, %v3043
  %3045 = vmatmul.f32.gmra.mxu0 %v386
  %v3046 = vpop.f32.mrf.mxu0
  %v3047 = vadd.f32 0.0, %v3046
  %3048 = vmatmul.f32.gmra.mxu0 %v389
  %v3049 = vpop.f32.mrf.mxu0
  %v3050 = vadd.f32 0.0, %v3049
  %3051 = vmatmul.f32.gmra.mxu0 %v392
  %v3052 = vpop.f32.mrf.mxu0
  %v3053 = vadd.f32 0.0, %v3052
  %3054 = vmatmul.f32.gmra.mxu0 %v395
  %v3055 = vpop.f32.mrf.mxu0
  %v3056 = vadd.f32 0.0, %v3055
  %3057 = vmatmul.f32.gmra.mxu0 %v398
  %v3058 = vpop.f32.mrf.mxu0
  %v3059 = vadd.f32 0.0, %v3058
  %3060 = vmatmul.f32.gmra.mxu0 %v401
  %v3061 = vpop.f32.mrf.mxu0
  %v3062 = vadd.f32 0.0, %v3061
  %3063 = vdwg.mxu0
  %v3065 = vsel %vm357, %v3029, 0
  %v3068 = vsel %vm357, %v3032, 0
  %v3071 = vsel %vm357, %v3035, 0
  %v3074 = vsel %vm357, %v3038, 0
  %3076 = vmatpush.msra.mxu0 0.0
  %3077 = vmatpush.msra.mxu0 0.0
  %3078 = vmatpush.msra.mxu0 0.0
  %3079 = vmatpush.msra.mxu0 0.0
  %3080 = vmatpush.msra.mxu0 0.0
  %3081 = vmatpush.msra.mxu0 0.0
  %3082 = vmatpush.msra.mxu0 0.0
  %3083 = vmatpush.msra.mxu0 0.0
  %3084 = vmatpush.msra.mxu0 0.0
  %3085 = vmatpush.msra.mxu0 0.0
  %3086 = vmatpush.msra.mxu0 0.0
  %3087 = vmatpush.msra.mxu0 0.0
  %3088 = vmatpush.msra.mxu0 %v2931
  %3089 = vmatpush.msra.mxu0 %v2930
  %3090 = vmatpush.msra.mxu0 %v2929
  %3091 = vmatpush.msra.mxu0 %v2928
  %3092 = vmatmul.f32.gmra.mxu0 %v3065
  %v3093 = vpop.f32.mrf.mxu0
  %v3094 = vadd.f32 0.0, %v3093
  %3095 = vmatmul.f32.gmra.mxu0 %v3068
  %v3096 = vpop.f32.mrf.mxu0
  %v3097 = vadd.f32 0.0, %v3096
  %3098 = vmatmul.f32.gmra.mxu0 %v3071
  %v3099 = vpop.f32.mrf.mxu0
  %v3100 = vadd.f32 0.0, %v3099
  %3101 = vmatmul.f32.gmra.mxu0 %v3074
  %v3102 = vpop.f32.mrf.mxu0
  %v3103 = vadd.f32 0.0, %v3102
  %3104 = vdwg.mxu0
  %v3106 = vsel %vm497, %v3007, 0
  %v3109 = vsel %vm497, %v3008, 0
  %v3112 = vsel %vm497, %v3009, 0
  %v3115 = vsel %vm497, %v3010, 0
  %3117 = vmatpush.msra.mxu0 0.0
  %3118 = vmatpush.msra.mxu0 0.0
  %3119 = vmatpush.msra.mxu0 0.0
  %3120 = vmatpush.msra.mxu0 0.0
  %3121 = vmatpush.msra.mxu0 %v2951
  %3122 = vmatpush.msra.mxu0 %v2950
  %3123 = vmatpush.msra.mxu0 %v2949
  %3124 = vmatpush.msra.mxu0 %v2948
  %3125 = vmatpush.msra.mxu0 %v2947
  %3126 = vmatpush.msra.mxu0 %v2946
  %3127 = vmatpush.msra.mxu0 %v2945
  %3128 = vmatpush.msra.mxu0 %v2944
  %3129 = vmatpush.msra.mxu0 %v2943
  %3130 = vmatpush.msra.mxu0 %v2942
  %3131 = vmatpush.msra.mxu0 %v2941
  %3132 = vmatpush.msra.mxu0 %v2940
  %3133 = vmatmul.f32.gmra.mxu0 %v3106
  %v3134 = vpop.f32.mrf.mxu0
  %v3135 = vadd.f32 %v3094, %v3134
  %3136 = vmatmul.f32.gmra.mxu0 %v3109
  %v3137 = vpop.f32.mrf.mxu0
  %v3138 = vadd.f32 %v3097, %v3137
  %3139 = vmatmul.f32.gmra.mxu0 %v3112
  %v3140 = vpop.f32.mrf.mxu0
  %v3141 = vadd.f32 %v3100, %v3140
  %3142 = vmatmul.f32.gmra.mxu0 %v3115
  %v3143 = vpop.f32.mrf.mxu0
  %v3144 = vadd.f32 %v3103, %v3143
  %3145 = vdwg.mxu0
  %v3147 = vsel %vm357, %v3041, 0
  %v3150 = vsel %vm357, %v3044, 0
  %v3153 = vsel %vm357, %v3047, 0
  %v3156 = vsel %vm357, %v3050, 0
  %3158 = vmatpush.msra.mxu0 0.0
  %3159 = vmatpush.msra.mxu0 0.0
  %3160 = vmatpush.msra.mxu0 0.0
  %3161 = vmatpush.msra.mxu0 0.0
  %3162 = vmatpush.msra.mxu0 0.0
  %3163 = vmatpush.msra.mxu0 0.0
  %3164 = vmatpush.msra.mxu0 0.0
  %3165 = vmatpush.msra.mxu0 0.0
  %3166 = vmatpush.msra.mxu0 0.0
  %3167 = vmatpush.msra.mxu0 0.0
  %3168 = vmatpush.msra.mxu0 0.0
  %3169 = vmatpush.msra.mxu0 0.0
  %3170 = vmatpush.msra.mxu0 %v2935
  %3171 = vmatpush.msra.mxu0 %v2934
  %3172 = vmatpush.msra.mxu0 %v2933
  %3173 = vmatpush.msra.mxu0 %v2932
  %3174 = vmatmul.f32.gmra.mxu0 %v3147
  %v3175 = vpop.f32.mrf.mxu0
  %v3176 = vadd.f32 0.0, %v3175
  %3177 = vmatmul.f32.gmra.mxu0 %v3150
  %v3178 = vpop.f32.mrf.mxu0
  %v3179 = vadd.f32 0.0, %v3178
  %3180 = vmatmul.f32.gmra.mxu0 %v3153
  %v3181 = vpop.f32.mrf.mxu0
  %v3182 = vadd.f32 0.0, %v3181
  %3183 = vmatmul.f32.gmra.mxu0 %v3156
  %v3184 = vpop.f32.mrf.mxu0
  %v3185 = vadd.f32 0.0, %v3184
  %3186 = vdwg.mxu0
  %v3187 = vadd.f32 %v3135, %v3176
  %v3188 = vadd.f32 %v3138, %v3179
  %v3189 = vadd.f32 %v3141, %v3182
  %v3190 = vadd.f32 %v3144, %v3185
  %v3192 = vsel %vm357, %v3053, 0
  %v3195 = vsel %vm357, %v3056, 0
  %v3198 = vsel %vm357, %v3059, 0
  %v3201 = vsel %vm357, %v3062, 0
  %3203 = vmatpush.msra.mxu0 0.0
  %3204 = vmatpush.msra.mxu0 0.0
  %3205 = vmatpush.msra.mxu0 0.0
  %3206 = vmatpush.msra.mxu0 0.0
  %3207 = vmatpush.msra.mxu0 0.0
  %3208 = vmatpush.msra.mxu0 0.0
  %3209 = vmatpush.msra.mxu0 0.0
  %3210 = vmatpush.msra.mxu0 0.0
  %3211 = vmatpush.msra.mxu0 0.0
  %3212 = vmatpush.msra.mxu0 0.0
  %3213 = vmatpush.msra.mxu0 0.0
  %3214 = vmatpush.msra.mxu0 0.0
  %3215 = vmatpush.msra.mxu0 %v2939
  %3216 = vmatpush.msra.mxu0 %v2938
  %3217 = vmatpush.msra.mxu0 %v2937
  %3218 = vmatpush.msra.mxu0 %v2936
  %3219 = vmatmul.f32.gmra.mxu0 %v3192
  %v3220 = vpop.f32.mrf.mxu0
  %v3221 = vadd.f32 0.0, %v3220
  %3222 = vmatmul.f32.gmra.mxu0 %v3195
  %v3223 = vpop.f32.mrf.mxu0
  %v3224 = vadd.f32 0.0, %v3223
  %3225 = vmatmul.f32.gmra.mxu0 %v3198
  %v3226 = vpop.f32.mrf.mxu0
  %v3227 = vadd.f32 0.0, %v3226
  %3228 = vmatmul.f32.gmra.mxu0 %v3201
  %v3229 = vpop.f32.mrf.mxu0
  %v3230 = vadd.f32 0.0, %v3229
  %3231 = vdwg.mxu0
  %v3232 = vadd.f32 %v3187, %v3221
  %v3233 = vadd.f32 %v3188, %v3224
  %v3234 = vadd.f32 %v3189, %v3227
  %v3235 = vadd.f32 %v3190, %v3230
  %v3236 = vmul.f32 %v3232, 0.5
  %v3237 = vmul.f32 %v3233, 0.5
  %v3238 = vmul.f32 %v3234, 0.5
  %v3239 = vmul.f32 %v3235, 0.5
  %v3240 = vmul.f32 %v3232, 0.70710677
  %v3241 = vmul.f32 %v3233, 0.70710677
  %v3242 = vmul.f32 %v3234, 0.70710677
  %v3243 = vmul.f32 %v3235, 0.70710677
  %v3244 = vmul.f32 %v3240, %v3240
  %v3245 = vmin.f32 16.0, %v3244
  %v3246 = vmul.f32 %v3245, 2.1237322e-06
  %v3247 = vadd.f32 %v3246, 0.00028619796
  %v3248 = vmul.f32 %v3245, %v3247
  %v3249 = vadd.f32 %v3248, 0.0036580483
  %v3250 = vmul.f32 %v3245, %v3249
  %v3251 = vadd.f32 %v3250, 0.05243302
  %v3252 = vmul.f32 %v3245, %v3251
  %v3253 = vadd.f32 %v3252, 0.18741608
  %v3254 = vmul.f32 %v3245, %v3253
  %v3255 = vadd.f32 %v3254, 1.1283791
  %v3256 = vmul.f32 %v3240, %v3255
  %v3257 = vmul.f32 %v3245, 3.8918573e-05
  %v3258 = vadd.f32 %v3257, 0.001143296
  %v3259 = vmul.f32 %v3245, %v3258
  %v3260 = vadd.f32 %v3259, 0.014752088
  %v3261 = vmul.f32 %v3245, %v3260
  %v3262 = vadd.f32 %v3261, 0.112945676
  %v3263 = vmul.f32 %v3245, %v3262
  %v3264 = vadd.f32 %v3263, 0.4994258
  %v3265 = vmul.f32 %v3245, %v3264
  %v3266 = vadd.f32 %v3265, 1.0
  %v3267 = vrcp.pop %v3266
  %v3268 = vmul.f32 %v3266, %v3267
  %v3269 = vsub.f32 1.0, %v3268
  %v3270 = vmul.f32 %v3267, %v3269
  %v3271 = vadd.f32 %v3267, %v3270
  %vm3272 = vweird.f32 %v3266
  %vm3273 = vweird.f32 %v3267
  %vm3274 = vmor %vm3272, %vm3273
  %v3275 = vsel %vm3274, %v3267, %v3271
  %v3276 = vand.u32 2147483647, %v3266
  %vm3277 = vcmp.eq.f32.partialorder %v3276, 8.507059e+37
  %v3278 = vand.u32 %v3266, 2147483648
  %v3279 = vor.u32 1.1754944e-38, %v3278
  %v3280 = vsel %vm3277, %v3279, %v3275
  %v3281 = vmul.f32 %v3256, %v3280
  %v3282 = vmin.f32 %v3281, 1.0
  %v3283 = vmax.f32 %v3282, -1.0
  %v3284 = vmul.f32 %v3241, %v3241
  %v3285 = vmin.f32 16.0, %v3284
  %v3286 = vmul.f32 %v3285, 2.1237322e-06
  %v3287 = vadd.f32 %v3286, 0.00028619796
  %v3288 = vmul.f32 %v3285, %v3287
  %v3289 = vadd.f32 %v3288, 0.0036580483
  %v3290 = vmul.f32 %v3285, %v3289
  %v3291 = vadd.f32 %v3290, 0.05243302
  %v3292 = vmul.f32 %v3285, %v3291
  %v3293 = vadd.f32 %v3292, 0.18741608
  %v3294 = vmul.f32 %v3285, %v3293
  %v3295 = vadd.f32 %v3294, 1.1283791
  %v3296 = vmul.f32 %v3241, %v3295
  %v3297 = vmul.f32 %v3285, 3.8918573e-05
  %v3298 = vadd.f32 %v3297, 0.001143296
  %v3299 = vmul.f32 %v3285, %v3298
  %v3300 = vadd.f32 %v3299, 0.014752088
  %v3301 = vmul.f32 %v3285, %v3300
  %v3302 = vadd.f32 %v3301, 0.112945676
  %v3303 = vmul.f32 %v3285, %v3302
  %v3304 = vadd.f32 %v3303, 0.4994258
  %v3305 = vmul.f32 %v3285, %v3304
  %v3306 = vadd.f32 %v3305, 1.0
  %v3307 = vrcp.pop %v3306
  %v3308 = vmul.f32 %v3306, %v3307
  %v3309 = vsub.f32 1.0, %v3308
  %v3310 = vmul.f32 %v3307, %v3309
  %v3311 = vadd.f32 %v3307, %v3310
  %vm3312 = vweird.f32 %v3306
  %vm3313 = vweird.f32 %v3307
  %vm3314 = vmor %vm3312, %vm3313
  %v3315 = vsel %vm3314, %v3307, %v3311
  %v3316 = vand.u32 2147483647, %v3306
  %vm3317 = vcmp.eq.f32.partialorder %v3316, 8.507059e+37
  %v3318 = vand.u32 %v3306, 2147483648
  %v3319 = vor.u32 1.1754944e-38, %v3318
  %v3320 = vsel %vm3317, %v3319, %v3315
  %v3321 = vmul.f32 %v3296, %v3320
  %v3322 = vmin.f32 %v3321, 1.0
  %v3323 = vmax.f32 %v3322, -1.0
  %v3324 = vmul.f32 %v3242, %v3242
  %v3325 = vmin.f32 16.0, %v3324
  %v3326 = vmul.f32 %v3325, 2.1237322e-06
  %v3327 = vadd.f32 %v3326, 0.00028619796
  %v3328 = vmul.f32 %v3325, %v3327
  %v3329 = vadd.f32 %v3328, 0.0036580483
  %v3330 = vmul.f32 %v3325, %v3329
  %v3331 = vadd.f32 %v3330, 0.05243302
  %v3332 = vmul.f32 %v3325, %v3331
  %v3333 = vadd.f32 %v3332, 0.18741608
  %v3334 = vmul.f32 %v3325, %v3333
  %v3335 = vadd.f32 %v3334, 1.1283791
  %v3336 = vmul.f32 %v3242, %v3335
  %v3337 = vmul.f32 %v3325, 3.8918573e-05
  %v3338 = vadd.f32 %v3337, 0.001143296
  %v3339 = vmul.f32 %v3325, %v3338
  %v3340 = vadd.f32 %v3339, 0.014752088
  %v3341 = vmul.f32 %v3325, %v3340
  %v3342 = vadd.f32 %v3341, 0.112945676
  %v3343 = vmul.f32 %v3325, %v3342
  %v3344 = vadd.f32 %v3343, 0.4994258
  %v3345 = vmul.f32 %v3325, %v3344
  %v3346 = vadd.f32 %v3345, 1.0
  %v3347 = vrcp.pop %v3346
  %v3348 = vmul.f32 %v3346, %v3347
  %v3349 = vsub.f32 1.0, %v3348
  %v3350 = vmul.f32 %v3347, %v3349
  %v3351 = vadd.f32 %v3347, %v3350
  %vm3352 = vweird.f32 %v3346
  %vm3353 = vweird.f32 %v3347
  %vm3354 = vmor %vm3352, %vm3353
  %v3355 = vsel %vm3354, %v3347, %v3351
  %v3356 = vand.u32 2147483647, %v3346
  %vm3357 = vcmp.eq.f32.partialorder %v3356, 8.507059e+37
  %v3358 = vand.u32 %v3346, 2147483648
  %v3359 = vor.u32 1.1754944e-38, %v3358
  %v3360 = vsel %vm3357, %v3359, %v3355
  %v3361 = vmul.f32 %v3336, %v3360
  %v3362 = vmin.f32 %v3361, 1.0
  %v3363 = vmax.f32 %v3362, -1.0
  %v3364 = vmul.f32 %v3243, %v3243
  %v3365 = vmin.f32 16.0, %v3364
  %v3366 = vmul.f32 %v3365, 2.1237322e-06
  %v3367 = vadd.f32 %v3366, 0.00028619796
  %v3368 = vmul.f32 %v3365, %v3367
  %v3369 = vadd.f32 %v3368, 0.0036580483
  %v3370 = vmul.f32 %v3365, %v3369
  %v3371 = vadd.f32 %v3370, 0.05243302
  %v3372 = vmul.f32 %v3365, %v3371
  %v3373 = vadd.f32 %v3372, 0.18741608
  %v3374 = vmul.f32 %v3365, %v3373
  %v3375 = vadd.f32 %v3374, 1.1283791
  %v3376 = vmul.f32 %v3243, %v3375
  %v3377 = vmul.f32 %v3365, 3.8918573e-05
  %v3378 = vadd.f32 %v3377, 0.001143296
  %v3379 = vmul.f32 %v3365, %v3378
  %v3380 = vadd.f32 %v3379, 0.014752088
  %v3381 = vmul.f32 %v3365, %v3380
  %v3382 = vadd.f32 %v3381, 0.112945676
  %v3383 = vmul.f32 %v3365, %v3382
  %v3384 = vadd.f32 %v3383, 0.4994258
  %v3385 = vmul.f32 %v3365, %v3384
  %v3386 = vadd.f32 %v3385, 1.0
  %v3387 = vrcp.pop %v3386
  %v3388 = vmul.f32 %v3386, %v3387
  %v3389 = vsub.f32 1.0, %v3388
  %v3390 = vmul.f32 %v3387, %v3389
  %v3391 = vadd.f32 %v3387, %v3390
  %vm3392 = vweird.f32 %v3386
  %vm3393 = vweird.f32 %v3387
  %vm3394 = vmor %vm3392, %vm3393
  %v3395 = vsel %vm3394, %v3387, %v3391
  %v3396 = vand.u32 2147483647, %v3386
  %vm3397 = vcmp.eq.f32.partialorder %v3396, 8.507059e+37
  %v3398 = vand.u32 %v3386, 2147483648
  %v3399 = vor.u32 1.1754944e-38, %v3398
  %v3400 = vsel %vm3397, %v3399, %v3395
  %v3401 = vmul.f32 %v3376, %v3400
  %v3402 = vmin.f32 %v3401, 1.0
  %v3403 = vmax.f32 %v3402, -1.0
  %v3404 = vadd.f32 %v3283, 1.0
  %v3405 = vadd.f32 %v3323, 1.0
  %v3406 = vadd.f32 %v3363, 1.0
  %v3407 = vadd.f32 %v3403, 1.0
  %v3408 = vmul.f32 %v3236, %v3404
  %v3409 = vmul.f32 %v3237, %v3405
  %v3410 = vmul.f32 %v3238, %v3406
  %v3411 = vmul.f32 %v3239, %v3407
  %v3412 = vsel %vm357, %v3408, 0.0
  %3413 = vadd.xlane.f32.xlu0 %v3412
  %v3414 = vpop.xlane.xlu0 %3413
  %v3415 = vsel %vm357, %v3409, 0.0
  %3416 = vadd.xlane.f32.xlu0 %v3415
  %v3417 = vpop.xlane.xlu0 %3416
  %v3418 = vsel %vm357, %v3410, 0.0
  %3419 = vadd.xlane.f32.xlu0 %v3418
  %v3420 = vpop.xlane.xlu0 %3419
  %v3421 = vsel %vm357, %v3411, 0.0
  %3422 = vadd.xlane.f32.xlu0 %v3421
  %v3423 = vpop.xlane.xlu0 %3422
  %v3424 = vmul.f32 %v3414, %v823
  %v3425 = vmul.f32 %v3417, %v823
  %v3426 = vmul.f32 %v3420, %v823
  %v3427 = vmul.f32 %v3423, %v823
  %v3428 = vsub.f32 %v3408, %v3424
  %v3429 = vsub.f32 %v3409, %v3425
  %v3430 = vsub.f32 %v3410, %v3426
  %v3431 = vsub.f32 %v3411, %v3427
  %v3432 = vmul.f32 %v3428, %v3428
  %v3433 = vmul.f32 %v3429, %v3429
  %v3434 = vmul.f32 %v3430, %v3430
  %v3435 = vmul.f32 %v3431, %v3431
  %v3436 = vsel %vm357, %v3432, 0.0
  %3437 = vadd.xlane.f32.xlu0 %v3436
  %v3438 = vpop.xlane.xlu0 %3437
  %v3439 = vsel %vm357, %v3433, 0.0
  %3440 = vadd.xlane.f32.xlu0 %v3439
  %v3441 = vpop.xlane.xlu0 %3440
  %v3442 = vsel %vm357, %v3434, 0.0
  %3443 = vadd.xlane.f32.xlu0 %v3442
  %v3444 = vpop.xlane.xlu0 %3443
  %v3445 = vsel %vm357, %v3435, 0.0
  %3446 = vadd.xlane.f32.xlu0 %v3445
  %v3447 = vpop.xlane.xlu0 %3446
  %v3448 = vmul.f32 %v3438, %v823
  %v3449 = vmul.f32 %v3441, %v823
  %v3450 = vmul.f32 %v3444, %v823
  %v3451 = vmul.f32 %v3447, %v823
  %v3452 = vadd.f32 %v3448, 1e-05
  %v3453 = vadd.f32 %v3449, 1e-05
  %v3454 = vadd.f32 %v3450, 1e-05
  %v3455 = vadd.f32 %v3451, 1e-05
  %v3456 = vrsqrt.pop %v3452
  %v3457 = vmul.f32 %v3456, %v3452
  %v3458 = vmul.f32 %v3457, %v3456
  %v3459 = vmul.f32 0.5, %v3458
  %v3460 = vsub.f32 1.5, %v3459
  %v3461 = vmul.f32 %v3456, %v3460
  %vm3462 = vweird.f32 %v3452
  %vm3463 = vweird.f32 %v3456
  %vm3464 = vmor %vm3462, %vm3463
  %v3465 = vsel %vm3464, %v3456, %v3461
  %v3466 = vrsqrt.pop %v3453
  %v3467 = vmul.f32 %v3466, %v3453
  %v3468 = vmul.f32 %v3467, %v3466
  %v3469 = vmul.f32 0.5, %v3468
  %v3470 = vsub.f32 1.5, %v3469
  %v3471 = vmul.f32 %v3466, %v3470
  %vm3472 = vweird.f32 %v3453
  %vm3473 = vweird.f32 %v3466
  %vm3474 = vmor %vm3472, %vm3473
  %v3475 = vsel %vm3474, %v3466, %v3471
  %v3476 = vrsqrt.pop %v3454
  %v3477 = vmul.f32 %v3476, %v3454
  %v3478 = vmul.f32 %v3477, %v3476
  %v3479 = vmul.f32 0.5, %v3478
  %v3480 = vsub.f32 1.5, %v3479
  %v3481 = vmul.f32 %v3476, %v3480
  %vm3482 = vweird.f32 %v3454
  %vm3483 = vweird.f32 %v3476
  %vm3484 = vmor %vm3482, %vm3483
  %v3485 = vsel %vm3484, %v3476, %v3481
  %v3486 = vrsqrt.pop %v3455
  %v3487 = vmul.f32 %v3486, %v3455
  %v3488 = vmul.f32 %v3487, %v3486
  %v3489 = vmul.f32 0.5, %v3488
  %v3490 = vsub.f32 1.5, %v3489
  %v3491 = vmul.f32 %v3486, %v3490
  %vm3492 = vweird.f32 %v3455
  %vm3493 = vweird.f32 %v3486
  %vm3494 = vmor %vm3492, %vm3493
  %v3495 = vsel %vm3494, %v3486, %v3491
  %v3496 = vmul.f32 %v3428, %v3465
  %v3497 = vmul.f32 %v3429, %v3475
  %v3498 = vmul.f32 %v3430, %v3485
  %v3499 = vmul.f32 %v3431, %v3495
  %v3501 = vperm.slane %v2952, 0
  %v3503 = vmul.f32 %v3496, %v3501
  %v3504 = vmul.f32 %v3497, %v3501
  %v3505 = vmul.f32 %v3498, %v3501
  %v3506 = vmul.f32 %v3499, %v3501
  %v3508 = vperm.slane %v2953, 0
  %v3510 = vadd.f32 %v3503, %v3508
  %v3511 = vadd.f32 %v3504, %v3508
  %v3512 = vadd.f32 %v3505, %v3508
  %v3513 = vadd.f32 %v3506, %v3508
  %v3515 = vperm.slane %v2958, 0
  %v3518 = vsel %vm357, %v3510, 0
  %v3521 = vsel %vm357, %v3511, 0
  %v3524 = vsel %vm357, %v3512, 0
  %v3527 = vsel %vm357, %v3513, 0
  %3529 = vmatpush.msra.mxu0 0.0
  %3530 = vmatpush.msra.mxu0 0.0
  %3531 = vmatpush.msra.mxu0 0.0
  %3532 = vmatpush.msra.mxu0 0.0
  %3533 = vmatpush.msra.mxu0 0.0
  %3534 = vmatpush.msra.mxu0 0.0
  %3535 = vmatpush.msra.mxu0 0.0
  %3536 = vmatpush.msra.mxu0 0.0
  %3537 = vmatpush.msra.mxu0 0.0
  %3538 = vmatpush.msra.mxu0 0.0
  %3539 = vmatpush.msra.mxu0 0.0
  %3540 = vmatpush.msra.mxu0 0.0
  %3541 = vmatpush.msra.mxu0 %v2957
  %3542 = vmatpush.msra.mxu0 %v2956
  %3543 = vmatpush.msra.mxu0 %v2955
  %3544 = vmatpush.msra.mxu0 %v2954
  %3545 = vmatmul.f32.gmra.mxu0 %v3518
  %v3546 = vpop.f32.mrf.mxu0
  %v3547 = vadd.f32 %v3515, %v3546
  %3548 = vmatmul.f32.gmra.mxu0 %v3521
  %v3549 = vpop.f32.mrf.mxu0
  %v3550 = vadd.f32 %v3515, %v3549
  %3551 = vmatmul.f32.gmra.mxu0 %v3524
  %v3552 = vpop.f32.mrf.mxu0
  %v3553 = vadd.f32 %v3515, %v3552
  %3554 = vmatmul.f32.gmra.mxu0 %v3527
  %v3555 = vpop.f32.mrf.mxu0
  %v3556 = vadd.f32 %v3515, %v3555
  %3557 = vdwg.mxu0
  %v3558 = vtanh.pop %v3547
  %v3559 = vtanh.pop %v3550
  %v3560 = vtanh.pop %v3553
  %v3561 = vtanh.pop %v3556
  %v3562 = vld [vmem:[%s67] sm:$0xff]
  %v3563 = vld [vmem:[%s67 + $0x8] sm:$0xff]
  %v3564 = vld [vmem:[%s67 + $0x10] sm:$0xff]
  %v3565 = vld [vmem:[%s67 + $0x18] sm:$0xff]
  %v3566 = vld [vmem:[%s67 + $0x20] sm:$0xff]
  %v3567 = vld [vmem:[%s67 + $0x28] sm:$0xff]
  %v3568 = vld [vmem:[%s67 + $0x30] sm:$0xff]
  %v3569 = vld [vmem:[%s67 + $0x38] sm:$0xff]
  %v3570 = vld [vmem:[%s67 + $0x40] sm:$0xff]
  %v3571 = vld [vmem:[%s67 + $0x48] sm:$0xff]
  %v3572 = vld [vmem:[%s67 + $0x50] sm:$0xff]
  %v3573 = vld [vmem:[%s67 + $0x58] sm:$0xff]
  %v3574 = vld [vmem:[%s69] sm:$0xff]
  %v3575 = vld [vmem:[%s69 + $0x8] sm:$0xff]
  %v3576 = vld [vmem:[%s69 + $0x10] sm:$0xff]
  %v3577 = vld [vmem:[%s69 + $0x18] sm:$0xff]
  %v3578 = vld [vmem:[%s69 + $0x20] sm:$0xff]
  %v3579 = vld [vmem:[%s69 + $0x28] sm:$0xff]
  %v3580 = vld [vmem:[%s69 + $0x30] sm:$0xff]
  %v3581 = vld [vmem:[%s69 + $0x38] sm:$0xff]
  %v3582 = vld [vmem:[%s69 + $0x40] sm:$0xff]
  %v3583 = vld [vmem:[%s69 + $0x48] sm:$0xff]
  %v3584 = vld [vmem:[%s69 + $0x50] sm:$0xff]
  %v3585 = vld [vmem:[%s69 + $0x58] sm:$0xff]
  %v3586 = vld [vmem:[%s71] sm:$0x1]
  %v3587 = vld [vmem:[%s73] sm:$0x1]
  %v3588 = vld [vmem:[%s75] sm:$0xff]
  %v3589 = vld [vmem:[%s75 + $0x8] sm:$0xff]
  %v3590 = vld [vmem:[%s75 + $0x10] sm:$0xff]
  %v3591 = vld [vmem:[%s75 + $0x18] sm:$0xff]
  %v3592 = vld [vmem:[%s77] sm:$0x1]
  %v3593 = vmul.f32 %v264, %v3558
  %v3594 = vmul.f32 %v269, %v3559
  %v3595 = vmul.f32 %v274, %v3560
  %v3596 = vmul.f32 %v279, %v3561
  %v3597 = vmul.f32 %v287, %v3558
  %v3598 = vmul.f32 %v291, %v3559
  %v3599 = vmul.f32 %v295, %v3560
  %v3600 = vmul.f32 %v299, %v3561
  %v3601 = vmul.f32 %v307, %v3558
  %v3602 = vmul.f32 %v311, %v3559
  %v3603 = vmul.f32 %v315, %v3560
  %v3604 = vmul.f32 %v319, %v3561
  %3609 = vrot.lane.b32.xlu0 %v3597, 32
  %v3610 = vpop.permute.xlu0 %3609
  %3611 = vrot.lane.b32.xlu0 %v3598, 32
  %v3612 = vpop.permute.xlu0 %3611
  %3613 = vrot.lane.b32.xlu0 %v3599, 32
  %v3614 = vpop.permute.xlu0 %3613
  %3615 = vrot.lane.b32.xlu0 %v3600, 32
  %v3616 = vpop.permute.xlu0 %3615
  %3625 = vrot.lane.b32.xlu0 %v3601, 64
  %v3626 = vpop.permute.xlu0 %3625
  %3627 = vrot.lane.b32.xlu0 %v3602, 64
  %v3628 = vpop.permute.xlu0 %3627
  %3629 = vrot.lane.b32.xlu0 %v3603, 64
  %v3630 = vpop.permute.xlu0 %3629
  %3631 = vrot.lane.b32.xlu0 %v3604, 64
  %v3632 = vpop.permute.xlu0 %3631
  %v3637 = vsel %vm357, %v3593, %v3610
  %v3638 = vsel %vm357, %v3594, %v3612
  %v3639 = vsel %vm357, %v3595, %v3614
  %v3640 = vsel %vm357, %v3596, %v3616
  %v3641 = vsel %vm362, %v3637, %v3626
  %v3642 = vsel %vm362, %v3638, %v3628
  %v3643 = vsel %vm362, %v3639, %v3630
  %v3644 = vsel %vm362, %v3640, %v3632
  %3645 = vmatpush.msra.mxu0 0.0
  %3646 = vmatpush.msra.mxu0 0.0
  %3647 = vmatpush.msra.mxu0 0.0
  %3648 = vmatpush.msra.mxu0 0.0
  %3649 = vmatpush.msra.mxu0 0.0
  %3650 = vmatpush.msra.mxu0 0.0
  %3651 = vmatpush.msra.mxu0 0.0
  %3652 = vmatpush.msra.mxu0 0.0
  %3653 = vmatpush.msra.mxu0 0.0
  %3654 = vmatpush.msra.mxu0 0.0
  %3655 = vmatpush.msra.mxu0 0.0
  %3656 = vmatpush.msra.mxu0 0.0
  %3657 = vmatpush.msra.mxu0 %v3561
  %3658 = vmatpush.msra.mxu0 %v3560
  %3659 = vmatpush.msra.mxu0 %v3559
  %3660 = vmatpush.msra.mxu0 %v3558
  %3661 = vmatmul.f32.gmra.mxu0 %v368
  %v3662 = vpop.f32.mrf.mxu0
  %v3663 = vadd.f32 0.0, %v3662
  %3664 = vmatmul.f32.gmra.mxu0 %v371
  %v3665 = vpop.f32.mrf.mxu0
  %v3666 = vadd.f32 0.0, %v3665
  %3667 = vmatmul.f32.gmra.mxu0 %v374
  %v3668 = vpop.f32.mrf.mxu0
  %v3669 = vadd.f32 0.0, %v3668
  %3670 = vmatmul.f32.gmra.mxu0 %v377
  %v3671 = vpop.f32.mrf.mxu0
  %v3672 = vadd.f32 0.0, %v3671
  %3673 = vmatmul.f32.gmra.mxu0 %v380
  %v3674 = vpop.f32.mrf.mxu0
  %v3675 = vadd.f32 0.0, %v3674
  %3676 = vmatmul.f32.gmra.mxu0 %v383
  %v3677 = vpop.f32.mrf.mxu0
  %v3678 = vadd.f32 0.0, %v3677
  %3679 = vmatmul.f32.gmra.mxu0 %v386
  %v3680 = vpop.f32.mrf.mxu0
  %v3681 = vadd.f32 0.0, %v3680
  %3682 = vmatmul.f32.gmra.mxu0 %v389
  %v3683 = vpop.f32.mrf.mxu0
  %v3684 = vadd.f32 0.0, %v3683
  %3685 = vmatmul.f32.gmra.mxu0 %v392
  %v3686 = vpop.f32.mrf.mxu0
  %v3687 = vadd.f32 0.0, %v3686
  %3688 = vmatmul.f32.gmra.mxu0 %v395
  %v3689 = vpop.f32.mrf.mxu0
  %v3690 = vadd.f32 0.0, %v3689
  %3691 = vmatmul.f32.gmra.mxu0 %v398
  %v3692 = vpop.f32.mrf.mxu0
  %v3693 = vadd.f32 0.0, %v3692
  %3694 = vmatmul.f32.gmra.mxu0 %v401
  %v3695 = vpop.f32.mrf.mxu0
  %v3696 = vadd.f32 0.0, %v3695
  %3697 = vdwg.mxu0
  %v3699 = vsel %vm357, %v3663, 0
  %v3702 = vsel %vm357, %v3666, 0
  %v3705 = vsel %vm357, %v3669, 0
  %v3708 = vsel %vm357, %v3672, 0
  %3710 = vmatpush.msra.mxu0 0.0
  %3711 = vmatpush.msra.mxu0 0.0
  %3712 = vmatpush.msra.mxu0 0.0
  %3713 = vmatpush.msra.mxu0 0.0
  %3714 = vmatpush.msra.mxu0 0.0
  %3715 = vmatpush.msra.mxu0 0.0
  %3716 = vmatpush.msra.mxu0 0.0
  %3717 = vmatpush.msra.mxu0 0.0
  %3718 = vmatpush.msra.mxu0 0.0
  %3719 = vmatpush.msra.mxu0 0.0
  %3720 = vmatpush.msra.mxu0 0.0
  %3721 = vmatpush.msra.mxu0 0.0
  %3722 = vmatpush.msra.mxu0 %v3565
  %3723 = vmatpush.msra.mxu0 %v3564
  %3724 = vmatpush.msra.mxu0 %v3563
  %3725 = vmatpush.msra.mxu0 %v3562
  %3726 = vmatmul.f32.gmra.mxu0 %v3699
  %v3727 = vpop.f32.mrf.mxu0
  %v3728 = vadd.f32 0.0, %v3727
  %3729 = vmatmul.f32.gmra.mxu0 %v3702
  %v3730 = vpop.f32.mrf.mxu0
  %v3731 = vadd.f32 0.0, %v3730
  %3732 = vmatmul.f32.gmra.mxu0 %v3705
  %v3733 = vpop.f32.mrf.mxu0
  %v3734 = vadd.f32 0.0, %v3733
  %3735 = vmatmul.f32.gmra.mxu0 %v3708
  %v3736 = vpop.f32.mrf.mxu0
  %v3737 = vadd.f32 0.0, %v3736
  %3738 = vdwg.mxu0
  %v3740 = vsel %vm497, %v3641, 0
  %v3743 = vsel %vm497, %v3642, 0
  %v3746 = vsel %vm497, %v3643, 0
  %v3749 = vsel %vm497, %v3644, 0
  %3751 = vmatpush.msra.mxu0 0.0
  %3752 = vmatpush.msra.mxu0 0.0
  %3753 = vmatpush.msra.mxu0 0.0
  %3754 = vmatpush.msra.mxu0 0.0
  %3755 = vmatpush.msra.mxu0 %v3585
  %3756 = vmatpush.msra.mxu0 %v3584
  %3757 = vmatpush.msra.mxu0 %v3583
  %3758 = vmatpush.msra.mxu0 %v3582
  %3759 = vmatpush.msra.mxu0 %v3581
  %3760 = vmatpush.msra.mxu0 %v3580
  %3761 = vmatpush.msra.mxu0 %v3579
  %3762 = vmatpush.msra.mxu0 %v3578
  %3763 = vmatpush.msra.mxu0 %v3577
  %3764 = vmatpush.msra.mxu0 %v3576
  %3765 = vmatpush.msra.mxu0 %v3575
  %3766 = vmatpush.msra.mxu0 %v3574
  %3767 = vmatmul.f32.gmra.mxu0 %v3740
  %v3768 = vpop.f32.mrf.mxu0
  %v3769 = vadd.f32 %v3728, %v3768
  %3770 = vmatmul.f32.gmra.mxu0 %v3743
  %v3771 = vpop.f32.mrf.mxu0
  %v3772 = vadd.f32 %v3731, %v3771
  %3773 = vmatmul.f32.gmra.mxu0 %v3746
  %v3774 = vpop.f32.mrf.mxu0
  %v3775 = vadd.f32 %v3734, %v3774
  %3776 = vmatmul.f32.gmra.mxu0 %v3749
  %v3777 = vpop.f32.mrf.mxu0
  %v3778 = vadd.f32 %v3737, %v3777
  %3779 = vdwg.mxu0
  %v3781 = vsel %vm357, %v3675, 0
  %v3784 = vsel %vm357, %v3678, 0
  %v3787 = vsel %vm357, %v3681, 0
  %v3790 = vsel %vm357, %v3684, 0
  %3792 = vmatpush.msra.mxu0 0.0
  %3793 = vmatpush.msra.mxu0 0.0
  %3794 = vmatpush.msra.mxu0 0.0
  %3795 = vmatpush.msra.mxu0 0.0
  %3796 = vmatpush.msra.mxu0 0.0
  %3797 = vmatpush.msra.mxu0 0.0
  %3798 = vmatpush.msra.mxu0 0.0
  %3799 = vmatpush.msra.mxu0 0.0
  %3800 = vmatpush.msra.mxu0 0.0
  %3801 = vmatpush.msra.mxu0 0.0
  %3802 = vmatpush.msra.mxu0 0.0
  %3803 = vmatpush.msra.mxu0 0.0
  %3804 = vmatpush.msra.mxu0 %v3569
  %3805 = vmatpush.msra.mxu0 %v3568
  %3806 = vmatpush.msra.mxu0 %v3567
  %3807 = vmatpush.msra.mxu0 %v3566
  %3808 = vmatmul.f32.gmra.mxu0 %v3781
  %v3809 = vpop.f32.mrf.mxu0
  %v3810 = vadd.f32 0.0, %v3809
  %3811 = vmatmul.f32.gmra.mxu0 %v3784
  %v3812 = vpop.f32.mrf.mxu0
  %v3813 = vadd.f32 0.0, %v3812
  %3814 = vmatmul.f32.gmra.mxu0 %v3787
  %v3815 = vpop.f32.mrf.mxu0
  %v3816 = vadd.f32 0.0, %v3815
  %3817 = vmatmul.f32.gmra.mxu0 %v3790
  %v3818 = vpop.f32.mrf.mxu0
  %v3819 = vadd.f32 0.0, %v3818
  %3820 = vdwg.mxu0
  %v3821 = vadd.f32 %v3769, %v3810
  %v3822 = vadd.f32 %v3772, %v3813
  %v3823 = vadd.f32 %v3775, %v3816
  %v3824 = vadd.f32 %v3778, %v3819
  %v3826 = vsel %vm357, %v3687, 0
  %v3829 = vsel %vm357, %v3690, 0
  %v3832 = vsel %vm357, %v3693, 0
  %v3835 = vsel %vm357, %v3696, 0
  %3837 = vmatpush.msra.mxu0 0.0
  %3838 = vmatpush.msra.mxu0 0.0
  %3839 = vmatpush.msra.mxu0 0.0
  %3840 = vmatpush.msra.mxu0 0.0
  %3841 = vmatpush.msra.mxu0 0.0
  %3842 = vmatpush.msra.mxu0 0.0
  %3843 = vmatpush.msra.mxu0 0.0
  %3844 = vmatpush.msra.mxu0 0.0
  %3845 = vmatpush.msra.mxu0 0.0
  %3846 = vmatpush.msra.mxu0 0.0
  %3847 = vmatpush.msra.mxu0 0.0
  %3848 = vmatpush.msra.mxu0 0.0
  %3849 = vmatpush.msra.mxu0 %v3573
  %3850 = vmatpush.msra.mxu0 %v3572
  %3851 = vmatpush.msra.mxu0 %v3571
  %3852 = vmatpush.msra.mxu0 %v3570
  %3853 = vmatmul.f32.gmra.mxu0 %v3826
  %v3854 = vpop.f32.mrf.mxu0
  %v3855 = vadd.f32 0.0, %v3854
  %3856 = vmatmul.f32.gmra.mxu0 %v3829
  %v3857 = vpop.f32.mrf.mxu0
  %v3858 = vadd.f32 0.0, %v3857
  %3859 = vmatmul.f32.gmra.mxu0 %v3832
  %v3860 = vpop.f32.mrf.mxu0
  %v3861 = vadd.f32 0.0, %v3860
  %3862 = vmatmul.f32.gmra.mxu0 %v3835
  %v3863 = vpop.f32.mrf.mxu0
  %v3864 = vadd.f32 0.0, %v3863
  %3865 = vdwg.mxu0
  %v3866 = vadd.f32 %v3821, %v3855
  %v3867 = vadd.f32 %v3822, %v3858
  %v3868 = vadd.f32 %v3823, %v3861
  %v3869 = vadd.f32 %v3824, %v3864
  %v3870 = vmul.f32 %v3866, 0.5
  %v3871 = vmul.f32 %v3867, 0.5
  %v3872 = vmul.f32 %v3868, 0.5
  %v3873 = vmul.f32 %v3869, 0.5
  %v3874 = vmul.f32 %v3866, 0.70710677
  %v3875 = vmul.f32 %v3867, 0.70710677
  %v3876 = vmul.f32 %v3868, 0.70710677
  %v3877 = vmul.f32 %v3869, 0.70710677
  %v3878 = vmul.f32 %v3874, %v3874
  %v3879 = vmin.f32 16.0, %v3878
  %v3880 = vmul.f32 %v3879, 2.1237322e-06
  %v3881 = vadd.f32 %v3880, 0.00028619796
  %v3882 = vmul.f32 %v3879, %v3881
  %v3883 = vadd.f32 %v3882, 0.0036580483
  %v3884 = vmul.f32 %v3879, %v3883
  %v3885 = vadd.f32 %v3884, 0.05243302
  %v3886 = vmul.f32 %v3879, %v3885
  %v3887 = vadd.f32 %v3886, 0.18741608
  %v3888 = vmul.f32 %v3879, %v3887
  %v3889 = vadd.f32 %v3888, 1.1283791
  %v3890 = vmul.f32 %v3874, %v3889
  %v3891 = vmul.f32 %v3879, 3.8918573e-05
  %v3892 = vadd.f32 %v3891, 0.001143296
  %v3893 = vmul.f32 %v3879, %v3892
  %v3894 = vadd.f32 %v3893, 0.014752088
  %v3895 = vmul.f32 %v3879, %v3894
  %v3896 = vadd.f32 %v3895, 0.112945676
  %v3897 = vmul.f32 %v3879, %v3896
  %v3898 = vadd.f32 %v3897, 0.4994258
  %v3899 = vmul.f32 %v3879, %v3898
  %v3900 = vadd.f32 %v3899, 1.0
  %v3901 = vrcp.pop %v3900
  %v3902 = vmul.f32 %v3900, %v3901
  %v3903 = vsub.f32 1.0, %v3902
  %v3904 = vmul.f32 %v3901, %v3903
  %v3905 = vadd.f32 %v3901, %v3904
  %vm3906 = vweird.f32 %v3900
  %vm3907 = vweird.f32 %v3901
  %vm3908 = vmor %vm3906, %vm3907
  %v3909 = vsel %vm3908, %v3901, %v3905
  %v3910 = vand.u32 2147483647, %v3900
  %vm3911 = vcmp.eq.f32.partialorder %v3910, 8.507059e+37
  %v3912 = vand.u32 %v3900, 2147483648
  %v3913 = vor.u32 1.1754944e-38, %v3912
  %v3914 = vsel %vm3911, %v3913, %v3909
  %v3915 = vmul.f32 %v3890, %v3914
  %v3916 = vmin.f32 %v3915, 1.0
  %v3917 = vmax.f32 %v3916, -1.0
  %v3918 = vmul.f32 %v3875, %v3875
  %v3919 = vmin.f32 16.0, %v3918
  %v3920 = vmul.f32 %v3919, 2.1237322e-06
  %v3921 = vadd.f32 %v3920, 0.00028619796
  %v3922 = vmul.f32 %v3919, %v3921
  %v3923 = vadd.f32 %v3922, 0.0036580483
  %v3924 = vmul.f32 %v3919, %v3923
  %v3925 = vadd.f32 %v3924, 0.05243302
  %v3926 = vmul.f32 %v3919, %v3925
  %v3927 = vadd.f32 %v3926, 0.18741608
  %v3928 = vmul.f32 %v3919, %v3927
  %v3929 = vadd.f32 %v3928, 1.1283791
  %v3930 = vmul.f32 %v3875, %v3929
  %v3931 = vmul.f32 %v3919, 3.8918573e-05
  %v3932 = vadd.f32 %v3931, 0.001143296
  %v3933 = vmul.f32 %v3919, %v3932
  %v3934 = vadd.f32 %v3933, 0.014752088
  %v3935 = vmul.f32 %v3919, %v3934
  %v3936 = vadd.f32 %v3935, 0.112945676
  %v3937 = vmul.f32 %v3919, %v3936
  %v3938 = vadd.f32 %v3937, 0.4994258
  %v3939 = vmul.f32 %v3919, %v3938
  %v3940 = vadd.f32 %v3939, 1.0
  %v3941 = vrcp.pop %v3940
  %v3942 = vmul.f32 %v3940, %v3941
  %v3943 = vsub.f32 1.0, %v3942
  %v3944 = vmul.f32 %v3941, %v3943
  %v3945 = vadd.f32 %v3941, %v3944
  %vm3946 = vweird.f32 %v3940
  %vm3947 = vweird.f32 %v3941
  %vm3948 = vmor %vm3946, %vm3947
  %v3949 = vsel %vm3948, %v3941, %v3945
  %v3950 = vand.u32 2147483647, %v3940
  %vm3951 = vcmp.eq.f32.partialorder %v3950, 8.507059e+37
  %v3952 = vand.u32 %v3940, 2147483648
  %v3953 = vor.u32 1.1754944e-38, %v3952
  %v3954 = vsel %vm3951, %v3953, %v3949
  %v3955 = vmul.f32 %v3930, %v3954
  %v3956 = vmin.f32 %v3955, 1.0
  %v3957 = vmax.f32 %v3956, -1.0
  %v3958 = vmul.f32 %v3876, %v3876
  %v3959 = vmin.f32 16.0, %v3958
  %v3960 = vmul.f32 %v3959, 2.1237322e-06
  %v3961 = vadd.f32 %v3960, 0.00028619796
  %v3962 = vmul.f32 %v3959, %v3961
  %v3963 = vadd.f32 %v3962, 0.0036580483
  %v3964 = vmul.f32 %v3959, %v3963
  %v3965 = vadd.f32 %v3964, 0.05243302
  %v3966 = vmul.f32 %v3959, %v3965
  %v3967 = vadd.f32 %v3966, 0.18741608
  %v3968 = vmul.f32 %v3959, %v3967
  %v3969 = vadd.f32 %v3968, 1.1283791
  %v3970 = vmul.f32 %v3876, %v3969
  %v3971 = vmul.f32 %v3959, 3.8918573e-05
  %v3972 = vadd.f32 %v3971, 0.001143296
  %v3973 = vmul.f32 %v3959, %v3972
  %v3974 = vadd.f32 %v3973, 0.014752088
  %v3975 = vmul.f32 %v3959, %v3974
  %v3976 = vadd.f32 %v3975, 0.112945676
  %v3977 = vmul.f32 %v3959, %v3976
  %v3978 = vadd.f32 %v3977, 0.4994258
  %v3979 = vmul.f32 %v3959, %v3978
  %v3980 = vadd.f32 %v3979, 1.0
  %v3981 = vrcp.pop %v3980
  %v3982 = vmul.f32 %v3980, %v3981
  %v3983 = vsub.f32 1.0, %v3982
  %v3984 = vmul.f32 %v3981, %v3983
  %v3985 = vadd.f32 %v3981, %v3984
  %vm3986 = vweird.f32 %v3980
  %vm3987 = vweird.f32 %v3981
  %vm3988 = vmor %vm3986, %vm3987
  %v3989 = vsel %vm3988, %v3981, %v3985
  %v3990 = vand.u32 2147483647, %v3980
  %vm3991 = vcmp.eq.f32.partialorder %v3990, 8.507059e+37
  %v3992 = vand.u32 %v3980, 2147483648
  %v3993 = vor.u32 1.1754944e-38, %v3992
  %v3994 = vsel %vm3991, %v3993, %v3989
  %v3995 = vmul.f32 %v3970, %v3994
  %v3996 = vmin.f32 %v3995, 1.0
  %v3997 = vmax.f32 %v3996, -1.0
  %v3998 = vmul.f32 %v3877, %v3877
  %v3999 = vmin.f32 16.0, %v3998
  %v4000 = vmul.f32 %v3999, 2.1237322e-06
  %v4001 = vadd.f32 %v4000, 0.00028619796
  %v4002 = vmul.f32 %v3999, %v4001
  %v4003 = vadd.f32 %v4002, 0.0036580483
  %v4004 = vmul.f32 %v3999, %v4003
  %v4005 = vadd.f32 %v4004, 0.05243302
  %v4006 = vmul.f32 %v3999, %v4005
  %v4007 = vadd.f32 %v4006, 0.18741608
  %v4008 = vmul.f32 %v3999, %v4007
  %v4009 = vadd.f32 %v4008, 1.1283791
  %v4010 = vmul.f32 %v3877, %v4009
  %v4011 = vmul.f32 %v3999, 3.8918573e-05
  %v4012 = vadd.f32 %v4011, 0.001143296
  %v4013 = vmul.f32 %v3999, %v4012
  %v4014 = vadd.f32 %v4013, 0.014752088
  %v4015 = vmul.f32 %v3999, %v4014
  %v4016 = vadd.f32 %v4015, 0.112945676
  %v4017 = vmul.f32 %v3999, %v4016
  %v4018 = vadd.f32 %v4017, 0.4994258
  %v4019 = vmul.f32 %v3999, %v4018
  %v4020 = vadd.f32 %v4019, 1.0
  %v4021 = vrcp.pop %v4020
  %v4022 = vmul.f32 %v4020, %v4021
  %v4023 = vsub.f32 1.0, %v4022
  %v4024 = vmul.f32 %v4021, %v4023
  %v4025 = vadd.f32 %v4021, %v4024
  %vm4026 = vweird.f32 %v4020
  %vm4027 = vweird.f32 %v4021
  %vm4028 = vmor %vm4026, %vm4027
  %v4029 = vsel %vm4028, %v4021, %v4025
  %v4030 = vand.u32 2147483647, %v4020
  %vm4031 = vcmp.eq.f32.partialorder %v4030, 8.507059e+37
  %v4032 = vand.u32 %v4020, 2147483648
  %v4033 = vor.u32 1.1754944e-38, %v4032
  %v4034 = vsel %vm4031, %v4033, %v4029
  %v4035 = vmul.f32 %v4010, %v4034
  %v4036 = vmin.f32 %v4035, 1.0
  %v4037 = vmax.f32 %v4036, -1.0
  %v4038 = vadd.f32 %v3917, 1.0
  %v4039 = vadd.f32 %v3957, 1.0
  %v4040 = vadd.f32 %v3997, 1.0
  %v4041 = vadd.f32 %v4037, 1.0
  %v4042 = vmul.f32 %v3870, %v4038
  %v4043 = vmul.f32 %v3871, %v4039
  %v4044 = vmul.f32 %v3872, %v4040
  %v4045 = vmul.f32 %v3873, %v4041
  %v4046 = vsel %vm357, %v4042, 0.0
  %4047 = vadd.xlane.f32.xlu0 %v4046
  %v4048 = vpop.xlane.xlu0 %4047
  %v4049 = vsel %vm357, %v4043, 0.0
  %4050 = vadd.xlane.f32.xlu0 %v4049
  %v4051 = vpop.xlane.xlu0 %4050
  %v4052 = vsel %vm357, %v4044, 0.0
  %4053 = vadd.xlane.f32.xlu0 %v4052
  %v4054 = vpop.xlane.xlu0 %4053
  %v4055 = vsel %vm357, %v4045, 0.0
  %4056 = vadd.xlane.f32.xlu0 %v4055
  %v4057 = vpop.xlane.xlu0 %4056
  %v4058 = vmul.f32 %v4048, %v823
  %v4059 = vmul.f32 %v4051, %v823
  %v4060 = vmul.f32 %v4054, %v823
  %v4061 = vmul.f32 %v4057, %v823
  %v4062 = vsub.f32 %v4042, %v4058
  %v4063 = vsub.f32 %v4043, %v4059
  %v4064 = vsub.f32 %v4044, %v4060
  %v4065 = vsub.f32 %v4045, %v4061
  %v4066 = vmul.f32 %v4062, %v4062
  %v4067 = vmul.f32 %v4063, %v4063
  %v4068 = vmul.f32 %v4064, %v4064
  %v4069 = vmul.f32 %v4065, %v4065
  %v4070 = vsel %vm357, %v4066, 0.0
  %4071 = vadd.xlane.f32.xlu0 %v4070
  %v4072 = vpop.xlane.xlu0 %4071
  %v4073 = vsel %vm357, %v4067, 0.0
  %4074 = vadd.xlane.f32.xlu0 %v4073
  %v4075 = vpop.xlane.xlu0 %4074
  %v4076 = vsel %vm357, %v4068, 0.0
  %4077 = vadd.xlane.f32.xlu0 %v4076
  %v4078 = vpop.xlane.xlu0 %4077
  %v4079 = vsel %vm357, %v4069, 0.0
  %4080 = vadd.xlane.f32.xlu0 %v4079
  %v4081 = vpop.xlane.xlu0 %4080
  %v4082 = vmul.f32 %v4072, %v823
  %v4083 = vmul.f32 %v4075, %v823
  %v4084 = vmul.f32 %v4078, %v823
  %v4085 = vmul.f32 %v4081, %v823
  %v4086 = vadd.f32 %v4082, 1e-05
  %v4087 = vadd.f32 %v4083, 1e-05
  %v4088 = vadd.f32 %v4084, 1e-05
  %v4089 = vadd.f32 %v4085, 1e-05
  %v4090 = vrsqrt.pop %v4086
  %v4091 = vmul.f32 %v4090, %v4086
  %v4092 = vmul.f32 %v4091, %v4090
  %v4093 = vmul.f32 0.5, %v4092
  %v4094 = vsub.f32 1.5, %v4093
  %v4095 = vmul.f32 %v4090, %v4094
  %vm4096 = vweird.f32 %v4086
  %vm4097 = vweird.f32 %v4090
  %vm4098 = vmor %vm4096, %vm4097
  %v4099 = vsel %vm4098, %v4090, %v4095
  %v4100 = vrsqrt.pop %v4087
  %v4101 = vmul.f32 %v4100, %v4087
  %v4102 = vmul.f32 %v4101, %v4100
  %v4103 = vmul.f32 0.5, %v4102
  %v4104 = vsub.f32 1.5, %v4103
  %v4105 = vmul.f32 %v4100, %v4104
  %vm4106 = vweird.f32 %v4087
  %vm4107 = vweird.f32 %v4100
  %vm4108 = vmor %vm4106, %vm4107
  %v4109 = vsel %vm4108, %v4100, %v4105
  %v4110 = vrsqrt.pop %v4088
  %v4111 = vmul.f32 %v4110, %v4088
  %v4112 = vmul.f32 %v4111, %v4110
  %v4113 = vmul.f32 0.5, %v4112
  %v4114 = vsub.f32 1.5, %v4113
  %v4115 = vmul.f32 %v4110, %v4114
  %vm4116 = vweird.f32 %v4088
  %vm4117 = vweird.f32 %v4110
  %vm4118 = vmor %vm4116, %vm4117
  %v4119 = vsel %vm4118, %v4110, %v4115
  %v4120 = vrsqrt.pop %v4089
  %v4121 = vmul.f32 %v4120, %v4089
  %v4122 = vmul.f32 %v4121, %v4120
  %v4123 = vmul.f32 0.5, %v4122
  %v4124 = vsub.f32 1.5, %v4123
  %v4125 = vmul.f32 %v4120, %v4124
  %vm4126 = vweird.f32 %v4089
  %vm4127 = vweird.f32 %v4120
  %vm4128 = vmor %vm4126, %vm4127
  %v4129 = vsel %vm4128, %v4120, %v4125
  %v4130 = vmul.f32 %v4062, %v4099
  %v4131 = vmul.f32 %v4063, %v4109
  %v4132 = vmul.f32 %v4064, %v4119
  %v4133 = vmul.f32 %v4065, %v4129
  %v4135 = vperm.slane %v3586, 0
  %v4137 = vmul.f32 %v4130, %v4135
  %v4138 = vmul.f32 %v4131, %v4135
  %v4139 = vmul.f32 %v4132, %v4135
  %v4140 = vmul.f32 %v4133, %v4135
  %v4142 = vperm.slane %v3587, 0
  %v4144 = vadd.f32 %v4137, %v4142
  %v4145 = vadd.f32 %v4138, %v4142
  %v4146 = vadd.f32 %v4139, %v4142
  %v4147 = vadd.f32 %v4140, %v4142
  %v4149 = vperm.slane %v3592, 0
  %v4152 = vsel %vm357, %v4144, 0
  %v4155 = vsel %vm357, %v4145, 0
  %v4158 = vsel %vm357, %v4146, 0
  %v4161 = vsel %vm357, %v4147, 0
  %4163 = vmatpush.msra.mxu0 0.0
  %4164 = vmatpush.msra.mxu0 0.0
  %4165 = vmatpush.msra.mxu0 0.0
  %4166 = vmatpush.msra.mxu0 0.0
  %4167 = vmatpush.msra.mxu0 0.0
  %4168 = vmatpush.msra.mxu0 0.0
  %4169 = vmatpush.msra.mxu0 0.0
  %4170 = vmatpush.msra.mxu0 0.0
  %4171 = vmatpush.msra.mxu0 0.0
  %4172 = vmatpush.msra.mxu0 0.0
  %4173 = vmatpush.msra.mxu0 0.0
  %4174 = vmatpush.msra.mxu0 0.0
  %4175 = vmatpush.msra.mxu0 %v3591
  %4176 = vmatpush.msra.mxu0 %v3590
  %4177 = vmatpush.msra.mxu0 %v3589
  %4178 = vmatpush.msra.mxu0 %v3588
  %4179 = vmatmul.f32.gmra.mxu0 %v4152
  %v4180 = vpop.f32.mrf.mxu0
  %v4181 = vadd.f32 %v4149, %v4180
  %4182 = vmatmul.f32.gmra.mxu0 %v4155
  %v4183 = vpop.f32.mrf.mxu0
  %v4184 = vadd.f32 %v4149, %v4183
  %4185 = vmatmul.f32.gmra.mxu0 %v4158
  %v4186 = vpop.f32.mrf.mxu0
  %v4187 = vadd.f32 %v4149, %v4186
  %4188 = vmatmul.f32.gmra.mxu0 %v4161
  %v4189 = vpop.f32.mrf.mxu0
  %v4190 = vadd.f32 %v4149, %v4189
  %4191 = vdwg.mxu0
  %v4192 = vtanh.pop %v4181
  %v4193 = vtanh.pop %v4184
  %v4194 = vtanh.pop %v4187
  %v4195 = vtanh.pop %v4190
  %v4196 = vld [vmem:[%s79] sm:$0xff]
  %v4197 = vld [vmem:[%s79 + $0x8] sm:$0xff]
  %v4198 = vld [vmem:[%s79 + $0x10] sm:$0xff]
  %v4199 = vld [vmem:[%s79 + $0x18] sm:$0xff]
  %v4200 = vld [vmem:[%s79 + $0x20] sm:$0xff]
  %v4201 = vld [vmem:[%s79 + $0x28] sm:$0xff]
  %v4202 = vld [vmem:[%s79 + $0x30] sm:$0xff]
  %v4203 = vld [vmem:[%s79 + $0x38] sm:$0xff]
  %v4204 = vld [vmem:[%s79 + $0x40] sm:$0xff]
  %v4205 = vld [vmem:[%s79 + $0x48] sm:$0xff]
  %v4206 = vld [vmem:[%s79 + $0x50] sm:$0xff]
  %v4207 = vld [vmem:[%s79 + $0x58] sm:$0xff]
  %v4208 = vld [vmem:[%s81] sm:$0xff]
  %v4209 = vld [vmem:[%s81 + $0x8] sm:$0xff]
  %v4210 = vld [vmem:[%s81 + $0x10] sm:$0xff]
  %v4211 = vld [vmem:[%s81 + $0x18] sm:$0xff]
  %v4212 = vld [vmem:[%s81 + $0x20] sm:$0xff]
  %v4213 = vld [vmem:[%s81 + $0x28] sm:$0xff]
  %v4214 = vld [vmem:[%s81 + $0x30] sm:$0xff]
  %v4215 = vld [vmem:[%s81 + $0x38] sm:$0xff]
  %v4216 = vld [vmem:[%s81 + $0x40] sm:$0xff]
  %v4217 = vld [vmem:[%s81 + $0x48] sm:$0xff]
  %v4218 = vld [vmem:[%s81 + $0x50] sm:$0xff]
  %v4219 = vld [vmem:[%s81 + $0x58] sm:$0xff]
  %v4220 = vld [vmem:[%s83] sm:$0x1]
  %v4221 = vld [vmem:[%s85] sm:$0x1]
  %v4222 = vld [vmem:[%s87] sm:$0xff]
  %v4223 = vld [vmem:[%s87 + $0x8] sm:$0xff]
  %v4224 = vld [vmem:[%s87 + $0x10] sm:$0xff]
  %v4225 = vld [vmem:[%s87 + $0x18] sm:$0xff]
  %v4226 = vld [vmem:[%s89] sm:$0x1]
  %v4227 = vmul.f32 %v264, %v4192
  %v4228 = vmul.f32 %v269, %v4193
  %v4229 = vmul.f32 %v274, %v4194
  %v4230 = vmul.f32 %v279, %v4195
  %v4231 = vmul.f32 %v287, %v4192
  %v4232 = vmul.f32 %v291, %v4193
  %v4233 = vmul.f32 %v295, %v4194
  %v4234 = vmul.f32 %v299, %v4195
  %v4235 = vmul.f32 %v307, %v4192
  %v4236 = vmul.f32 %v311, %v4193
  %v4237 = vmul.f32 %v315, %v4194
  %v4238 = vmul.f32 %v319, %v4195
  %4243 = vrot.lane.b32.xlu0 %v4231, 32
  %v4244 = vpop.permute.xlu0 %4243
  %4245 = vrot.lane.b32.xlu0 %v4232, 32
  %v4246 = vpop.permute.xlu0 %4245
  %4247 = vrot.lane.b32.xlu0 %v4233, 32
  %v4248 = vpop.permute.xlu0 %4247
  %4249 = vrot.lane.b32.xlu0 %v4234, 32
  %v4250 = vpop.permute.xlu0 %4249
  %4259 = vrot.lane.b32.xlu0 %v4235, 64
  %v4260 = vpop.permute.xlu0 %4259
  %4261 = vrot.lane.b32.xlu0 %v4236, 64
  %v4262 = vpop.permute.xlu0 %4261
  %4263 = vrot.lane.b32.xlu0 %v4237, 64
  %v4264 = vpop.permute.xlu0 %4263
  %4265 = vrot.lane.b32.xlu0 %v4238, 64
  %v4266 = vpop.permute.xlu0 %4265
  %v4271 = vsel %vm357, %v4227, %v4244
  %v4272 = vsel %vm357, %v4228, %v4246
  %v4273 = vsel %vm357, %v4229, %v4248
  %v4274 = vsel %vm357, %v4230, %v4250
  %v4275 = vsel %vm362, %v4271, %v4260
  %v4276 = vsel %vm362, %v4272, %v4262
  %v4277 = vsel %vm362, %v4273, %v4264
  %v4278 = vsel %vm362, %v4274, %v4266
  %4279 = vmatpush.msra.mxu0 0.0
  %4280 = vmatpush.msra.mxu0 0.0
  %4281 = vmatpush.msra.mxu0 0.0
  %4282 = vmatpush.msra.mxu0 0.0
  %4283 = vmatpush.msra.mxu0 0.0
  %4284 = vmatpush.msra.mxu0 0.0
  %4285 = vmatpush.msra.mxu0 0.0
  %4286 = vmatpush.msra.mxu0 0.0
  %4287 = vmatpush.msra.mxu0 0.0
  %4288 = vmatpush.msra.mxu0 0.0
  %4289 = vmatpush.msra.mxu0 0.0
  %4290 = vmatpush.msra.mxu0 0.0
  %4291 = vmatpush.msra.mxu0 %v4195
  %4292 = vmatpush.msra.mxu0 %v4194
  %4293 = vmatpush.msra.mxu0 %v4193
  %4294 = vmatpush.msra.mxu0 %v4192
  %4295 = vmatmul.f32.gmra.mxu0 %v368
  %v4296 = vpop.f32.mrf.mxu0
  %v4297 = vadd.f32 0.0, %v4296
  %4298 = vmatmul.f32.gmra.mxu0 %v371
  %v4299 = vpop.f32.mrf.mxu0
  %v4300 = vadd.f32 0.0, %v4299
  %4301 = vmatmul.f32.gmra.mxu0 %v374
  %v4302 = vpop.f32.mrf.mxu0
  %v4303 = vadd.f32 0.0, %v4302
  %4304 = vmatmul.f32.gmra.mxu0 %v377
  %v4305 = vpop.f32.mrf.mxu0
  %v4306 = vadd.f32 0.0, %v4305
  %4307 = vmatmul.f32.gmra.mxu0 %v380
  %v4308 = vpop.f32.mrf.mxu0
  %v4309 = vadd.f32 0.0, %v4308
  %4310 = vmatmul.f32.gmra.mxu0 %v383
  %v4311 = vpop.f32.mrf.mxu0
  %v4312 = vadd.f32 0.0, %v4311
  %4313 = vmatmul.f32.gmra.mxu0 %v386
  %v4314 = vpop.f32.mrf.mxu0
  %v4315 = vadd.f32 0.0, %v4314
  %4316 = vmatmul.f32.gmra.mxu0 %v389
  %v4317 = vpop.f32.mrf.mxu0
  %v4318 = vadd.f32 0.0, %v4317
  %4319 = vmatmul.f32.gmra.mxu0 %v392
  %v4320 = vpop.f32.mrf.mxu0
  %v4321 = vadd.f32 0.0, %v4320
  %4322 = vmatmul.f32.gmra.mxu0 %v395
  %v4323 = vpop.f32.mrf.mxu0
  %v4324 = vadd.f32 0.0, %v4323
  %4325 = vmatmul.f32.gmra.mxu0 %v398
  %v4326 = vpop.f32.mrf.mxu0
  %v4327 = vadd.f32 0.0, %v4326
  %4328 = vmatmul.f32.gmra.mxu0 %v401
  %v4329 = vpop.f32.mrf.mxu0
  %v4330 = vadd.f32 0.0, %v4329
  %4331 = vdwg.mxu0
  %v4333 = vsel %vm357, %v4297, 0
  %v4336 = vsel %vm357, %v4300, 0
  %v4339 = vsel %vm357, %v4303, 0
  %v4342 = vsel %vm357, %v4306, 0
  %4344 = vmatpush.msra.mxu0 0.0
  %4345 = vmatpush.msra.mxu0 0.0
  %4346 = vmatpush.msra.mxu0 0.0
  %4347 = vmatpush.msra.mxu0 0.0
  %4348 = vmatpush.msra.mxu0 0.0
  %4349 = vmatpush.msra.mxu0 0.0
  %4350 = vmatpush.msra.mxu0 0.0
  %4351 = vmatpush.msra.mxu0 0.0
  %4352 = vmatpush.msra.mxu0 0.0
  %4353 = vmatpush.msra.mxu0 0.0
  %4354 = vmatpush.msra.mxu0 0.0
  %4355 = vmatpush.msra.mxu0 0.0
  %4356 = vmatpush.msra.mxu0 %v4199
  %4357 = vmatpush.msra.mxu0 %v4198
  %4358 = vmatpush.msra.mxu0 %v4197
  %4359 = vmatpush.msra.mxu0 %v4196
  %4360 = vmatmul.f32.gmra.mxu0 %v4333
  %v4361 = vpop.f32.mrf.mxu0
  %v4362 = vadd.f32 0.0, %v4361
  %4363 = vmatmul.f32.gmra.mxu0 %v4336
  %v4364 = vpop.f32.mrf.mxu0
  %v4365 = vadd.f32 0.0, %v4364
  %4366 = vmatmul.f32.gmra.mxu0 %v4339
  %v4367 = vpop.f32.mrf.mxu0
  %v4368 = vadd.f32 0.0, %v4367
  %4369 = vmatmul.f32.gmra.mxu0 %v4342
  %v4370 = vpop.f32.mrf.mxu0
  %v4371 = vadd.f32 0.0, %v4370
  %4372 = vdwg.mxu0
  %v4374 = vsel %vm497, %v4275, 0
  %v4377 = vsel %vm497, %v4276, 0
  %v4380 = vsel %vm497, %v4277, 0
  %v4383 = vsel %vm497, %v4278, 0
  %4385 = vmatpush.msra.mxu0 0.0
  %4386 = vmatpush.msra.mxu0 0.0
  %4387 = vmatpush.msra.mxu0 0.0
  %4388 = vmatpush.msra.mxu0 0.0
  %4389 = vmatpush.msra.mxu0 %v4219
  %4390 = vmatpush.msra.mxu0 %v4218
  %4391 = vmatpush.msra.mxu0 %v4217
  %4392 = vmatpush.msra.mxu0 %v4216
  %4393 = vmatpush.msra.mxu0 %v4215
  %4394 = vmatpush.msra.mxu0 %v4214
  %4395 = vmatpush.msra.mxu0 %v4213
  %4396 = vmatpush.msra.mxu0 %v4212
  %4397 = vmatpush.msra.mxu0 %v4211
  %4398 = vmatpush.msra.mxu0 %v4210
  %4399 = vmatpush.msra.mxu0 %v4209
  %4400 = vmatpush.msra.mxu0 %v4208
  %4401 = vmatmul.f32.gmra.mxu0 %v4374
  %v4402 = vpop.f32.mrf.mxu0
  %v4403 = vadd.f32 %v4362, %v4402
  %4404 = vmatmul.f32.gmra.mxu0 %v4377
  %v4405 = vpop.f32.mrf.mxu0
  %v4406 = vadd.f32 %v4365, %v4405
  %4407 = vmatmul.f32.gmra.mxu0 %v4380
  %v4408 = vpop.f32.mrf.mxu0
  %v4409 = vadd.f32 %v4368, %v4408
  %4410 = vmatmul.f32.gmra.mxu0 %v4383
  %v4411 = vpop.f32.mrf.mxu0
  %v4412 = vadd.f32 %v4371, %v4411
  %4413 = vdwg.mxu0
  %v4415 = vsel %vm357, %v4309, 0
  %v4418 = vsel %vm357, %v4312, 0
  %v4421 = vsel %vm357, %v4315, 0
  %v4424 = vsel %vm357, %v4318, 0
  %4426 = vmatpush.msra.mxu0 0.0
  %4427 = vmatpush.msra.mxu0 0.0
  %4428 = vmatpush.msra.mxu0 0.0
  %4429 = vmatpush.msra.mxu0 0.0
  %4430 = vmatpush.msra.mxu0 0.0
  %4431 = vmatpush.msra.mxu0 0.0
  %4432 = vmatpush.msra.mxu0 0.0
  %4433 = vmatpush.msra.mxu0 0.0
  %4434 = vmatpush.msra.mxu0 0.0
  %4435 = vmatpush.msra.mxu0 0.0
  %4436 = vmatpush.msra.mxu0 0.0
  %4437 = vmatpush.msra.mxu0 0.0
  %4438 = vmatpush.msra.mxu0 %v4203
  %4439 = vmatpush.msra.mxu0 %v4202
  %4440 = vmatpush.msra.mxu0 %v4201
  %4441 = vmatpush.msra.mxu0 %v4200
  %4442 = vmatmul.f32.gmra.mxu0 %v4415
  %v4443 = vpop.f32.mrf.mxu0
  %v4444 = vadd.f32 0.0, %v4443
  %4445 = vmatmul.f32.gmra.mxu0 %v4418
  %v4446 = vpop.f32.mrf.mxu0
  %v4447 = vadd.f32 0.0, %v4446
  %4448 = vmatmul.f32.gmra.mxu0 %v4421
  %v4449 = vpop.f32.mrf.mxu0
  %v4450 = vadd.f32 0.0, %v4449
  %4451 = vmatmul.f32.gmra.mxu0 %v4424
  %v4452 = vpop.f32.mrf.mxu0
  %v4453 = vadd.f32 0.0, %v4452
  %4454 = vdwg.mxu0
  %v4455 = vadd.f32 %v4403, %v4444
  %v4456 = vadd.f32 %v4406, %v4447
  %v4457 = vadd.f32 %v4409, %v4450
  %v4458 = vadd.f32 %v4412, %v4453
  %v4460 = vsel %vm357, %v4321, 0
  %v4463 = vsel %vm357, %v4324, 0
  %v4466 = vsel %vm357, %v4327, 0
  %v4469 = vsel %vm357, %v4330, 0
  %4471 = vmatpush.msra.mxu0 0.0
  %4472 = vmatpush.msra.mxu0 0.0
  %4473 = vmatpush.msra.mxu0 0.0
  %4474 = vmatpush.msra.mxu0 0.0
  %4475 = vmatpush.msra.mxu0 0.0
  %4476 = vmatpush.msra.mxu0 0.0
  %4477 = vmatpush.msra.mxu0 0.0
  %4478 = vmatpush.msra.mxu0 0.0
  %4479 = vmatpush.msra.mxu0 0.0
  %4480 = vmatpush.msra.mxu0 0.0
  %4481 = vmatpush.msra.mxu0 0.0
  %4482 = vmatpush.msra.mxu0 0.0
  %4483 = vmatpush.msra.mxu0 %v4207
  %4484 = vmatpush.msra.mxu0 %v4206
  %4485 = vmatpush.msra.mxu0 %v4205
  %4486 = vmatpush.msra.mxu0 %v4204
  %4487 = vmatmul.f32.gmra.mxu0 %v4460
  %v4488 = vpop.f32.mrf.mxu0
  %v4489 = vadd.f32 0.0, %v4488
  %4490 = vmatmul.f32.gmra.mxu0 %v4463
  %v4491 = vpop.f32.mrf.mxu0
  %v4492 = vadd.f32 0.0, %v4491
  %4493 = vmatmul.f32.gmra.mxu0 %v4466
  %v4494 = vpop.f32.mrf.mxu0
  %v4495 = vadd.f32 0.0, %v4494
  %4496 = vmatmul.f32.gmra.mxu0 %v4469
  %v4497 = vpop.f32.mrf.mxu0
  %v4498 = vadd.f32 0.0, %v4497
  %4499 = vdwg.mxu0
  %v4500 = vadd.f32 %v4455, %v4489
  %v4501 = vadd.f32 %v4456, %v4492
  %v4502 = vadd.f32 %v4457, %v4495
  %v4503 = vadd.f32 %v4458, %v4498
  %v4504 = vmul.f32 %v4500, 0.5
  %v4505 = vmul.f32 %v4501, 0.5
  %v4506 = vmul.f32 %v4502, 0.5
  %v4507 = vmul.f32 %v4503, 0.5
  %v4508 = vmul.f32 %v4500, 0.70710677
  %v4509 = vmul.f32 %v4501, 0.70710677
  %v4510 = vmul.f32 %v4502, 0.70710677
  %v4511 = vmul.f32 %v4503, 0.70710677
  %v4512 = vmul.f32 %v4508, %v4508
  %v4513 = vmin.f32 16.0, %v4512
  %v4514 = vmul.f32 %v4513, 2.1237322e-06
  %v4515 = vadd.f32 %v4514, 0.00028619796
  %v4516 = vmul.f32 %v4513, %v4515
  %v4517 = vadd.f32 %v4516, 0.0036580483
  %v4518 = vmul.f32 %v4513, %v4517
  %v4519 = vadd.f32 %v4518, 0.05243302
  %v4520 = vmul.f32 %v4513, %v4519
  %v4521 = vadd.f32 %v4520, 0.18741608
  %v4522 = vmul.f32 %v4513, %v4521
  %v4523 = vadd.f32 %v4522, 1.1283791
  %v4524 = vmul.f32 %v4508, %v4523
  %v4525 = vmul.f32 %v4513, 3.8918573e-05
  %v4526 = vadd.f32 %v4525, 0.001143296
  %v4527 = vmul.f32 %v4513, %v4526
  %v4528 = vadd.f32 %v4527, 0.014752088
  %v4529 = vmul.f32 %v4513, %v4528
  %v4530 = vadd.f32 %v4529, 0.112945676
  %v4531 = vmul.f32 %v4513, %v4530
  %v4532 = vadd.f32 %v4531, 0.4994258
  %v4533 = vmul.f32 %v4513, %v4532
  %v4534 = vadd.f32 %v4533, 1.0
  %v4535 = vrcp.pop %v4534
  %v4536 = vmul.f32 %v4534, %v4535
  %v4537 = vsub.f32 1.0, %v4536
  %v4538 = vmul.f32 %v4535, %v4537
  %v4539 = vadd.f32 %v4535, %v4538
  %vm4540 = vweird.f32 %v4534
  %vm4541 = vweird.f32 %v4535
  %vm4542 = vmor %vm4540, %vm4541
  %v4543 = vsel %vm4542, %v4535, %v4539
  %v4544 = vand.u32 2147483647, %v4534
  %vm4545 = vcmp.eq.f32.partialorder %v4544, 8.507059e+37
  %v4546 = vand.u32 %v4534, 2147483648
  %v4547 = vor.u32 1.1754944e-38, %v4546
  %v4548 = vsel %vm4545, %v4547, %v4543
  %v4549 = vmul.f32 %v4524, %v4548
  %v4550 = vmin.f32 %v4549, 1.0
  %v4551 = vmax.f32 %v4550, -1.0
  %v4552 = vmul.f32 %v4509, %v4509
  %v4553 = vmin.f32 16.0, %v4552
  %v4554 = vmul.f32 %v4553, 2.1237322e-06
  %v4555 = vadd.f32 %v4554, 0.00028619796
  %v4556 = vmul.f32 %v4553, %v4555
  %v4557 = vadd.f32 %v4556, 0.0036580483
  %v4558 = vmul.f32 %v4553, %v4557
  %v4559 = vadd.f32 %v4558, 0.05243302
  %v4560 = vmul.f32 %v4553, %v4559
  %v4561 = vadd.f32 %v4560, 0.18741608
  %v4562 = vmul.f32 %v4553, %v4561
  %v4563 = vadd.f32 %v4562, 1.1283791
  %v4564 = vmul.f32 %v4509, %v4563
  %v4565 = vmul.f32 %v4553, 3.8918573e-05
  %v4566 = vadd.f32 %v4565, 0.001143296
  %v4567 = vmul.f32 %v4553, %v4566
  %v4568 = vadd.f32 %v4567, 0.014752088
  %v4569 = vmul.f32 %v4553, %v4568
  %v4570 = vadd.f32 %v4569, 0.112945676
  %v4571 = vmul.f32 %v4553, %v4570
  %v4572 = vadd.f32 %v4571, 0.4994258
  %v4573 = vmul.f32 %v4553, %v4572
  %v4574 = vadd.f32 %v4573, 1.0
  %v4575 = vrcp.pop %v4574
  %v4576 = vmul.f32 %v4574, %v4575
  %v4577 = vsub.f32 1.0, %v4576
  %v4578 = vmul.f32 %v4575, %v4577
  %v4579 = vadd.f32 %v4575, %v4578
  %vm4580 = vweird.f32 %v4574
  %vm4581 = vweird.f32 %v4575
  %vm4582 = vmor %vm4580, %vm4581
  %v4583 = vsel %vm4582, %v4575, %v4579
  %v4584 = vand.u32 2147483647, %v4574
  %vm4585 = vcmp.eq.f32.partialorder %v4584, 8.507059e+37
  %v4586 = vand.u32 %v4574, 2147483648
  %v4587 = vor.u32 1.1754944e-38, %v4586
  %v4588 = vsel %vm4585, %v4587, %v4583
  %v4589 = vmul.f32 %v4564, %v4588
  %v4590 = vmin.f32 %v4589, 1.0
  %v4591 = vmax.f32 %v4590, -1.0
  %v4592 = vmul.f32 %v4510, %v4510
  %v4593 = vmin.f32 16.0, %v4592
  %v4594 = vmul.f32 %v4593, 2.1237322e-06
  %v4595 = vadd.f32 %v4594, 0.00028619796
  %v4596 = vmul.f32 %v4593, %v4595
  %v4597 = vadd.f32 %v4596, 0.0036580483
  %v4598 = vmul.f32 %v4593, %v4597
  %v4599 = vadd.f32 %v4598, 0.05243302
  %v4600 = vmul.f32 %v4593, %v4599
  %v4601 = vadd.f32 %v4600, 0.18741608
  %v4602 = vmul.f32 %v4593, %v4601
  %v4603 = vadd.f32 %v4602, 1.1283791
  %v4604 = vmul.f32 %v4510, %v4603
  %v4605 = vmul.f32 %v4593, 3.8918573e-05
  %v4606 = vadd.f32 %v4605, 0.001143296
  %v4607 = vmul.f32 %v4593, %v4606
  %v4608 = vadd.f32 %v4607, 0.014752088
  %v4609 = vmul.f32 %v4593, %v4608
  %v4610 = vadd.f32 %v4609, 0.112945676
  %v4611 = vmul.f32 %v4593, %v4610
  %v4612 = vadd.f32 %v4611, 0.4994258
  %v4613 = vmul.f32 %v4593, %v4612
  %v4614 = vadd.f32 %v4613, 1.0
  %v4615 = vrcp.pop %v4614
  %v4616 = vmul.f32 %v4614, %v4615
  %v4617 = vsub.f32 1.0, %v4616
  %v4618 = vmul.f32 %v4615, %v4617
  %v4619 = vadd.f32 %v4615, %v4618
  %vm4620 = vweird.f32 %v4614
  %vm4621 = vweird.f32 %v4615
  %vm4622 = vmor %vm4620, %vm4621
  %v4623 = vsel %vm4622, %v4615, %v4619
  %v4624 = vand.u32 2147483647, %v4614
  %vm4625 = vcmp.eq.f32.partialorder %v4624, 8.507059e+37
  %v4626 = vand.u32 %v4614, 2147483648
  %v4627 = vor.u32 1.1754944e-38, %v4626
  %v4628 = vsel %vm4625, %v4627, %v4623
  %v4629 = vmul.f32 %v4604, %v4628
  %v4630 = vmin.f32 %v4629, 1.0
  %v4631 = vmax.f32 %v4630, -1.0
  %v4632 = vmul.f32 %v4511, %v4511
  %v4633 = vmin.f32 16.0, %v4632
  %v4634 = vmul.f32 %v4633, 2.1237322e-06
  %v4635 = vadd.f32 %v4634, 0.00028619796
  %v4636 = vmul.f32 %v4633, %v4635
  %v4637 = vadd.f32 %v4636, 0.0036580483
  %v4638 = vmul.f32 %v4633, %v4637
  %v4639 = vadd.f32 %v4638, 0.05243302
  %v4640 = vmul.f32 %v4633, %v4639
  %v4641 = vadd.f32 %v4640, 0.18741608
  %v4642 = vmul.f32 %v4633, %v4641
  %v4643 = vadd.f32 %v4642, 1.1283791
  %v4644 = vmul.f32 %v4511, %v4643
  %v4645 = vmul.f32 %v4633, 3.8918573e-05
  %v4646 = vadd.f32 %v4645, 0.001143296
  %v4647 = vmul.f32 %v4633, %v4646
  %v4648 = vadd.f32 %v4647, 0.014752088
  %v4649 = vmul.f32 %v4633, %v4648
  %v4650 = vadd.f32 %v4649, 0.112945676
  %v4651 = vmul.f32 %v4633, %v4650
  %v4652 = vadd.f32 %v4651, 0.4994258
  %v4653 = vmul.f32 %v4633, %v4652
  %v4654 = vadd.f32 %v4653, 1.0
  %v4655 = vrcp.pop %v4654
  %v4656 = vmul.f32 %v4654, %v4655
  %v4657 = vsub.f32 1.0, %v4656
  %v4658 = vmul.f32 %v4655, %v4657
  %v4659 = vadd.f32 %v4655, %v4658
  %vm4660 = vweird.f32 %v4654
  %vm4661 = vweird.f32 %v4655
  %vm4662 = vmor %vm4660, %vm4661
  %v4663 = vsel %vm4662, %v4655, %v4659
  %v4664 = vand.u32 2147483647, %v4654
  %vm4665 = vcmp.eq.f32.partialorder %v4664, 8.507059e+37
  %v4666 = vand.u32 %v4654, 2147483648
  %v4667 = vor.u32 1.1754944e-38, %v4666
  %v4668 = vsel %vm4665, %v4667, %v4663
  %v4669 = vmul.f32 %v4644, %v4668
  %v4670 = vmin.f32 %v4669, 1.0
  %v4671 = vmax.f32 %v4670, -1.0
  %v4672 = vadd.f32 %v4551, 1.0
  %v4673 = vadd.f32 %v4591, 1.0
  %v4674 = vadd.f32 %v4631, 1.0
  %v4675 = vadd.f32 %v4671, 1.0
  %v4676 = vmul.f32 %v4504, %v4672
  %v4677 = vmul.f32 %v4505, %v4673
  %v4678 = vmul.f32 %v4506, %v4674
  %v4679 = vmul.f32 %v4507, %v4675
  %v4680 = vsel %vm357, %v4676, 0.0
  %4681 = vadd.xlane.f32.xlu0 %v4680
  %v4682 = vpop.xlane.xlu0 %4681
  %v4683 = vsel %vm357, %v4677, 0.0
  %4684 = vadd.xlane.f32.xlu0 %v4683
  %v4685 = vpop.xlane.xlu0 %4684
  %v4686 = vsel %vm357, %v4678, 0.0
  %4687 = vadd.xlane.f32.xlu0 %v4686
  %v4688 = vpop.xlane.xlu0 %4687
  %v4689 = vsel %vm357, %v4679, 0.0
  %4690 = vadd.xlane.f32.xlu0 %v4689
  %v4691 = vpop.xlane.xlu0 %4690
  %v4692 = vmul.f32 %v4682, %v823
  %v4693 = vmul.f32 %v4685, %v823
  %v4694 = vmul.f32 %v4688, %v823
  %v4695 = vmul.f32 %v4691, %v823
  %v4696 = vsub.f32 %v4676, %v4692
  %v4697 = vsub.f32 %v4677, %v4693
  %v4698 = vsub.f32 %v4678, %v4694
  %v4699 = vsub.f32 %v4679, %v4695
  %v4700 = vmul.f32 %v4696, %v4696
  %v4701 = vmul.f32 %v4697, %v4697
  %v4702 = vmul.f32 %v4698, %v4698
  %v4703 = vmul.f32 %v4699, %v4699
  %v4704 = vsel %vm357, %v4700, 0.0
  %4705 = vadd.xlane.f32.xlu0 %v4704
  %v4706 = vpop.xlane.xlu0 %4705
  %v4707 = vsel %vm357, %v4701, 0.0
  %4708 = vadd.xlane.f32.xlu0 %v4707
  %v4709 = vpop.xlane.xlu0 %4708
  %v4710 = vsel %vm357, %v4702, 0.0
  %4711 = vadd.xlane.f32.xlu0 %v4710
  %v4712 = vpop.xlane.xlu0 %4711
  %v4713 = vsel %vm357, %v4703, 0.0
  %4714 = vadd.xlane.f32.xlu0 %v4713
  %v4715 = vpop.xlane.xlu0 %4714
  %v4716 = vmul.f32 %v4706, %v823
  %v4717 = vmul.f32 %v4709, %v823
  %v4718 = vmul.f32 %v4712, %v823
  %v4719 = vmul.f32 %v4715, %v823
  %v4720 = vadd.f32 %v4716, 1e-05
  %v4721 = vadd.f32 %v4717, 1e-05
  %v4722 = vadd.f32 %v4718, 1e-05
  %v4723 = vadd.f32 %v4719, 1e-05
  %v4724 = vrsqrt.pop %v4720
  %v4725 = vmul.f32 %v4724, %v4720
  %v4726 = vmul.f32 %v4725, %v4724
  %v4727 = vmul.f32 0.5, %v4726
  %v4728 = vsub.f32 1.5, %v4727
  %v4729 = vmul.f32 %v4724, %v4728
  %vm4730 = vweird.f32 %v4720
  %vm4731 = vweird.f32 %v4724
  %vm4732 = vmor %vm4730, %vm4731
  %v4733 = vsel %vm4732, %v4724, %v4729
  %v4734 = vrsqrt.pop %v4721
  %v4735 = vmul.f32 %v4734, %v4721
  %v4736 = vmul.f32 %v4735, %v4734
  %v4737 = vmul.f32 0.5, %v4736
  %v4738 = vsub.f32 1.5, %v4737
  %v4739 = vmul.f32 %v4734, %v4738
  %vm4740 = vweird.f32 %v4721
  %vm4741 = vweird.f32 %v4734
  %vm4742 = vmor %vm4740, %vm4741
  %v4743 = vsel %vm4742, %v4734, %v4739
  %v4744 = vrsqrt.pop %v4722
  %v4745 = vmul.f32 %v4744, %v4722
  %v4746 = vmul.f32 %v4745, %v4744
  %v4747 = vmul.f32 0.5, %v4746
  %v4748 = vsub.f32 1.5, %v4747
  %v4749 = vmul.f32 %v4744, %v4748
  %vm4750 = vweird.f32 %v4722
  %vm4751 = vweird.f32 %v4744
  %vm4752 = vmor %vm4750, %vm4751
  %v4753 = vsel %vm4752, %v4744, %v4749
  %v4754 = vrsqrt.pop %v4723
  %v4755 = vmul.f32 %v4754, %v4723
  %v4756 = vmul.f32 %v4755, %v4754
  %v4757 = vmul.f32 0.5, %v4756
  %v4758 = vsub.f32 1.5, %v4757
  %v4759 = vmul.f32 %v4754, %v4758
  %vm4760 = vweird.f32 %v4723
  %vm4761 = vweird.f32 %v4754
  %vm4762 = vmor %vm4760, %vm4761
  %v4763 = vsel %vm4762, %v4754, %v4759
  %v4764 = vmul.f32 %v4696, %v4733
  %v4765 = vmul.f32 %v4697, %v4743
  %v4766 = vmul.f32 %v4698, %v4753
  %v4767 = vmul.f32 %v4699, %v4763
  %v4769 = vperm.slane %v4220, 0
  %v4771 = vmul.f32 %v4764, %v4769
  %v4772 = vmul.f32 %v4765, %v4769
  %v4773 = vmul.f32 %v4766, %v4769
  %v4774 = vmul.f32 %v4767, %v4769
  %v4776 = vperm.slane %v4221, 0
  %v4778 = vadd.f32 %v4771, %v4776
  %v4779 = vadd.f32 %v4772, %v4776
  %v4780 = vadd.f32 %v4773, %v4776
  %v4781 = vadd.f32 %v4774, %v4776
  %v4783 = vperm.slane %v4226, 0
  %v4786 = vsel %vm357, %v4778, 0
  %v4789 = vsel %vm357, %v4779, 0
  %v4792 = vsel %vm357, %v4780, 0
  %v4795 = vsel %vm357, %v4781, 0
  %4797 = vmatpush.msra.mxu0 0.0
  %4798 = vmatpush.msra.mxu0 0.0
  %4799 = vmatpush.msra.mxu0 0.0
  %4800 = vmatpush.msra.mxu0 0.0
  %4801 = vmatpush.msra.mxu0 0.0
  %4802 = vmatpush.msra.mxu0 0.0
  %4803 = vmatpush.msra.mxu0 0.0
  %4804 = vmatpush.msra.mxu0 0.0
  %4805 = vmatpush.msra.mxu0 0.0
  %4806 = vmatpush.msra.mxu0 0.0
  %4807 = vmatpush.msra.mxu0 0.0
  %4808 = vmatpush.msra.mxu0 0.0
  %4809 = vmatpush.msra.mxu0 %v4225
  %4810 = vmatpush.msra.mxu0 %v4224
  %4811 = vmatpush.msra.mxu0 %v4223
  %4812 = vmatpush.msra.mxu0 %v4222
  %4813 = vmatmul.f32.gmra.mxu0 %v4786
  %v4814 = vpop.f32.mrf.mxu0
  %v4815 = vadd.f32 %v4783, %v4814
  %4816 = vmatmul.f32.gmra.mxu0 %v4789
  %v4817 = vpop.f32.mrf.mxu0
  %v4818 = vadd.f32 %v4783, %v4817
  %4819 = vmatmul.f32.gmra.mxu0 %v4792
  %v4820 = vpop.f32.mrf.mxu0
  %v4821 = vadd.f32 %v4783, %v4820
  %4822 = vmatmul.f32.gmra.mxu0 %v4795
  %v4823 = vpop.f32.mrf.mxu0
  %v4824 = vadd.f32 %v4783, %v4823
  %4825 = vdwg.mxu0
  %v4826 = vtanh.pop %v4815
  %v4827 = vtanh.pop %v4818
  %v4828 = vtanh.pop %v4821
  %v4829 = vtanh.pop %v4824
  %4834 = vrot.lane.b32.xlu0 %v4826, 32
  %v4835 = vpop.permute.xlu0 %4834
  %4836 = vrot.lane.b32.xlu0 %v4827, 32
  %v4837 = vpop.permute.xlu0 %4836
  %4838 = vrot.lane.b32.xlu0 %v4828, 32
  %v4839 = vpop.permute.xlu0 %4838
  %4840 = vrot.lane.b32.xlu0 %v4829, 32
  %v4841 = vpop.permute.xlu0 %4840
  %v4846 = vsel %vm357, %v2924, %v4835
  %v4847 = vsel %vm357, %v2925, %v4837
  %v4848 = vsel %vm357, %v2926, %v4839
  %v4849 = vsel %vm357, %v2927, %v4841
  %v4850 = vld [vmem:[%s91] sm:$0xff]
  %v4851 = vld [vmem:[%s91 + $0x8] sm:$0xff]
  %v4852 = vld [vmem:[%s91 + $0x10] sm:$0xff]
  %v4853 = vld [vmem:[%s91 + $0x18] sm:$0xff]
  %v4854 = vld [vmem:[%s91 + $0x20] sm:$0xff]
  %v4855 = vld [vmem:[%s91 + $0x28] sm:$0xff]
  %v4856 = vld [vmem:[%s91 + $0x30] sm:$0xff]
  %v4857 = vld [vmem:[%s91 + $0x38] sm:$0xff]
  %v4858 = vld [vmem:[%s91 + $0x40] sm:$0xff]
  %v4859 = vld [vmem:[%s91 + $0x48] sm:$0xff]
  %v4860 = vld [vmem:[%s91 + $0x50] sm:$0xff]
  %v4861 = vld [vmem:[%s91 + $0x58] sm:$0xff]
  %v4862 = vld [vmem:[%s91 + $0x60] sm:$0xff]
  %v4863 = vld [vmem:[%s91 + $0x68] sm:$0xff]
  %v4864 = vld [vmem:[%s91 + $0x70] sm:$0xff]
  %v4865 = vld [vmem:[%s91 + $0x78] sm:$0xff]
  %v4866 = vld [vmem:[%s91 + $0x80] sm:$0xff]
  %v4867 = vld [vmem:[%s91 + $0x88] sm:$0xff]
  %v4868 = vld [vmem:[%s91 + $0x90] sm:$0xff]
  %v4869 = vld [vmem:[%s91 + $0x98] sm:$0xff]
  %v4870 = vld [vmem:[%s91 + $0xa0] sm:$0xff]
  %v4871 = vld [vmem:[%s91 + $0xa8] sm:$0xff]
  %v4872 = vld [vmem:[%s91 + $0xb0] sm:$0xff]
  %v4873 = vld [vmem:[%s91 + $0xb8] sm:$0xff]
  %v4874 = vld [vmem:[%s93] sm:$0xff]
  %v4875 = vld [vmem:[%s93 + $0x8] sm:$0xff]
  %v4876 = vld [vmem:[%s93 + $0x10] sm:$0xff]
  %v4877 = vld [vmem:[%s93 + $0x18] sm:$0xff]
  %v4878 = vld [vmem:[%s93 + $0x20] sm:$0xff]
  %v4879 = vld [vmem:[%s93 + $0x28] sm:$0xff]
  %v4880 = vld [vmem:[%s93 + $0x30] sm:$0xff]
  %v4881 = vld [vmem:[%s93 + $0x38] sm:$0xff]
  %v4882 = vld [vmem:[%s93 + $0x40] sm:$0xff]
  %v4883 = vld [vmem:[%s93 + $0x48] sm:$0xff]
  %v4884 = vld [vmem:[%s93 + $0x50] sm:$0xff]
  %v4885 = vld [vmem:[%s93 + $0x58] sm:$0xff]
  %v4886 = vld [vmem:[%s93 + $0x60] sm:$0xff]
  %v4887 = vld [vmem:[%s93 + $0x68] sm:$0xff]
  %v4888 = vld [vmem:[%s93 + $0x70] sm:$0xff]
  %v4889 = vld [vmem:[%s93 + $0x78] sm:$0xff]
  %v4890 = vld [vmem:[%s93 + $0x80] sm:$0xff]
  %v4891 = vld [vmem:[%s93 + $0x88] sm:$0xff]
  %v4892 = vld [vmem:[%s93 + $0x90] sm:$0xff]
  %v4893 = vld [vmem:[%s93 + $0x98] sm:$0xff]
  %v4894 = vld [vmem:[%s93 + $0xa0] sm:$0xff]
  %v4895 = vld [vmem:[%s93 + $0xa8] sm:$0xff]
  %v4896 = vld [vmem:[%s93 + $0xb0] sm:$0xff]
  %v4897 = vld [vmem:[%s93 + $0xb8] sm:$0xff]
  %v4898 = vld [vmem:[%s95] sm:$0x1]
  %v4899 = vld [vmem:[%s97] sm:$0x1]
  %v4900 = vld [vmem:[%s99] sm:$0xff]
  %v4901 = vld [vmem:[%s99 + $0x8] sm:$0xff]
  %v4902 = vld [vmem:[%s99 + $0x10] sm:$0xff]
  %v4903 = vld [vmem:[%s99 + $0x18] sm:$0xff]
  %v4904 = vld [vmem:[%s99 + $0x20] sm:$0xff]
  %v4905 = vld [vmem:[%s99 + $0x28] sm:$0xff]
  %v4906 = vld [vmem:[%s99 + $0x30] sm:$0xff]
  %v4907 = vld [vmem:[%s99 + $0x38] sm:$0xff]
  %v4908 = vld [vmem:[%s101] sm:$0x1]
  %v4909 = vmul.f32 %v264, %v4846
  %v4910 = vmul.f32 %v269, %v4847
  %v4911 = vmul.f32 %v274, %v4848
  %v4912 = vmul.f32 %v279, %v4849
  %v4913 = vmul.f32 %v287, %v4846
  %v4914 = vmul.f32 %v291, %v4847
  %v4915 = vmul.f32 %v295, %v4848
  %v4916 = vmul.f32 %v299, %v4849
  %v4917 = vmul.f32 %v307, %v4846
  %v4918 = vmul.f32 %v311, %v4847
  %v4919 = vmul.f32 %v315, %v4848
  %v4920 = vmul.f32 %v319, %v4849
  %4925 = vrot.lane.b32.xlu0 %v4913, 64
  %v4926 = vpop.permute.xlu0 %4925
  %4927 = vrot.lane.b32.xlu0 %v4914, 64
  %v4928 = vpop.permute.xlu0 %4927
  %4929 = vrot.lane.b32.xlu0 %v4915, 64
  %v4930 = vpop.permute.xlu0 %4929
  %4931 = vrot.lane.b32.xlu0 %v4916, 64
  %v4932 = vpop.permute.xlu0 %4931
  %v4937 = vsel %vm362, %v4909, %v4926
  %v4938 = vsel %vm362, %v4910, %v4928
  %v4939 = vsel %vm362, %v4911, %v4930
  %v4940 = vsel %vm362, %v4912, %v4932
  %4941 = vmatpush.msra.mxu0 0.0
  %4942 = vmatpush.msra.mxu0 0.0
  %4943 = vmatpush.msra.mxu0 0.0
  %4944 = vmatpush.msra.mxu0 0.0
  %4945 = vmatpush.msra.mxu0 0.0
  %4946 = vmatpush.msra.mxu0 0.0
  %4947 = vmatpush.msra.mxu0 0.0
  %4948 = vmatpush.msra.mxu0 0.0
  %4949 = vmatpush.msra.mxu0 0.0
  %4950 = vmatpush.msra.mxu0 0.0
  %4951 = vmatpush.msra.mxu0 0.0
  %4952 = vmatpush.msra.mxu0 0.0
  %4953 = vmatpush.msra.mxu0 %v4849
  %4954 = vmatpush.msra.mxu0 %v4848
  %4955 = vmatpush.msra.mxu0 %v4847
  %4956 = vmatpush.msra.mxu0 %v4846
  %4957 = vmatmul.f32.gmra.mxu0 %v368
  %v4958 = vpop.f32.mrf.mxu0
  %v4959 = vadd.f32 0.0, %v4958
  %4960 = vmatmul.f32.gmra.mxu0 %v371
  %v4961 = vpop.f32.mrf.mxu0
  %v4962 = vadd.f32 0.0, %v4961
  %4963 = vmatmul.f32.gmra.mxu0 %v374
  %v4964 = vpop.f32.mrf.mxu0
  %v4965 = vadd.f32 0.0, %v4964
  %4966 = vmatmul.f32.gmra.mxu0 %v377
  %v4967 = vpop.f32.mrf.mxu0
  %v4968 = vadd.f32 0.0, %v4967
  %4969 = vmatmul.f32.gmra.mxu0 %v380
  %v4970 = vpop.f32.mrf.mxu0
  %v4971 = vadd.f32 0.0, %v4970
  %4972 = vmatmul.f32.gmra.mxu0 %v383
  %v4973 = vpop.f32.mrf.mxu0
  %v4974 = vadd.f32 0.0, %v4973
  %4975 = vmatmul.f32.gmra.mxu0 %v386
  %v4976 = vpop.f32.mrf.mxu0
  %v4977 = vadd.f32 0.0, %v4976
  %4978 = vmatmul.f32.gmra.mxu0 %v389
  %v4979 = vpop.f32.mrf.mxu0
  %v4980 = vadd.f32 0.0, %v4979
  %4981 = vmatmul.f32.gmra.mxu0 %v392
  %v4982 = vpop.f32.mrf.mxu0
  %v4983 = vadd.f32 0.0, %v4982
  %4984 = vmatmul.f32.gmra.mxu0 %v395
  %v4985 = vpop.f32.mrf.mxu0
  %v4986 = vadd.f32 0.0, %v4985
  %4987 = vmatmul.f32.gmra.mxu0 %v398
  %v4988 = vpop.f32.mrf.mxu0
  %v4989 = vadd.f32 0.0, %v4988
  %4990 = vmatmul.f32.gmra.mxu0 %v401
  %v4991 = vpop.f32.mrf.mxu0
  %v4992 = vadd.f32 0.0, %v4991
  %4993 = vdwg.mxu0
  %v4995 = vsel %vm362, %v4959, 0
  %v4998 = vsel %vm362, %v4962, 0
  %v5001 = vsel %vm362, %v4965, 0
  %v5004 = vsel %vm362, %v4968, 0
  %5006 = vmatpush.msra.mxu0 0.0
  %5007 = vmatpush.msra.mxu0 0.0
  %5008 = vmatpush.msra.mxu0 0.0
  %5009 = vmatpush.msra.mxu0 0.0
  %5010 = vmatpush.msra.mxu0 0.0
  %5011 = vmatpush.msra.mxu0 0.0
  %5012 = vmatpush.msra.mxu0 0.0
  %5013 = vmatpush.msra.mxu0 0.0
  %5014 = vmatpush.msra.mxu0 %v4857
  %5015 = vmatpush.msra.mxu0 %v4856
  %5016 = vmatpush.msra.mxu0 %v4855
  %5017 = vmatpush.msra.mxu0 %v4854
  %5018 = vmatpush.msra.mxu0 %v4853
  %5019 = vmatpush.msra.mxu0 %v4852
  %5020 = vmatpush.msra.mxu0 %v4851
  %5021 = vmatpush.msra.mxu0 %v4850
  %5022 = vmatmul.f32.gmra.mxu0 %v4995
  %v5023 = vpop.f32.mrf.mxu0
  %v5024 = vadd.f32 0.0, %v5023
  %5025 = vmatmul.f32.gmra.mxu0 %v4998
  %v5026 = vpop.f32.mrf.mxu0
  %v5027 = vadd.f32 0.0, %v5026
  %5028 = vmatmul.f32.gmra.mxu0 %v5001
  %v5029 = vpop.f32.mrf.mxu0
  %v5030 = vadd.f32 0.0, %v5029
  %5031 = vmatmul.f32.gmra.mxu0 %v5004
  %v5032 = vpop.f32.mrf.mxu0
  %v5033 = vadd.f32 0.0, %v5032
  %5034 = vdwg.mxu0
  %v5036 = vsel %vm362, %v4917, 0
  %v5039 = vsel %vm362, %v4918, 0
  %v5042 = vsel %vm362, %v4919, 0
  %v5045 = vsel %vm362, %v4920, 0
  %5047 = vmatpush.msra.mxu0 %v4889
  %5048 = vmatpush.msra.mxu0 %v4888
  %5049 = vmatpush.msra.mxu0 %v4887
  %5050 = vmatpush.msra.mxu0 %v4886
  %5051 = vmatpush.msra.mxu0 %v4885
  %5052 = vmatpush.msra.mxu0 %v4884
  %5053 = vmatpush.msra.mxu0 %v4883
  %5054 = vmatpush.msra.mxu0 %v4882
  %5055 = vmatpush.msra.mxu0 %v4881
  %5056 = vmatpush.msra.mxu0 %v4880
  %5057 = vmatpush.msra.mxu0 %v4879
  %5058 = vmatpush.msra.mxu0 %v4878
  %5059 = vmatpush.msra.mxu0 %v4877
  %5060 = vmatpush.msra.mxu0 %v4876
  %5061 = vmatpush.msra.mxu0 %v4875
  %5062 = vmatpush.msra.mxu0 %v4874
  %5063 = vmatmul.f32.gmra.mxu0 %v4937
  %v5064 = vpop.f32.mrf.mxu0
  %v5065 = vadd.f32 %v5024, %v5064
  %5066 = vmatmul.f32.gmra.mxu0 %v4938
  %v5067 = vpop.f32.mrf.mxu0
  %v5068 = vadd.f32 %v5027, %v5067
  %5069 = vmatmul.f32.gmra.mxu0 %v4939
  %v5070 = vpop.f32.mrf.mxu0
  %v5071 = vadd.f32 %v5030, %v5070
  %5072 = vmatmul.f32.gmra.mxu0 %v4940
  %v5073 = vpop.f32.mrf.mxu0
  %v5074 = vadd.f32 %v5033, %v5073
  %5075 = vdwg.mxu0
  %5076 = vmatpush.msra.mxu0 0.0
  %5077 = vmatpush.msra.mxu0 0.0
  %5078 = vmatpush.msra.mxu0 0.0
  %5079 = vmatpush.msra.mxu0 0.0
  %5080 = vmatpush.msra.mxu0 0.0
  %5081 = vmatpush.msra.mxu0 0.0
  %5082 = vmatpush.msra.mxu0 0.0
  %5083 = vmatpush.msra.mxu0 0.0
  %5084 = vmatpush.msra.mxu0 %v4897
  %5085 = vmatpush.msra.mxu0 %v4896
  %5086 = vmatpush.msra.mxu0 %v4895
  %5087 = vmatpush.msra.mxu0 %v4894
  %5088 = vmatpush.msra.mxu0 %v4893
  %5089 = vmatpush.msra.mxu0 %v4892
  %5090 = vmatpush.msra.mxu0 %v4891
  %5091 = vmatpush.msra.mxu0 %v4890
  %5092 = vmatmul.f32.gmra.mxu0 %v5036
  %v5093 = vpop.f32.mrf.mxu0
  %v5094 = vadd.f32 %v5065, %v5093
  %5095 = vmatmul.f32.gmra.mxu0 %v5039
  %v5096 = vpop.f32.mrf.mxu0
  %v5097 = vadd.f32 %v5068, %v5096
  %5098 = vmatmul.f32.gmra.mxu0 %v5042
  %v5099 = vpop.f32.mrf.mxu0
  %v5100 = vadd.f32 %v5071, %v5099
  %5101 = vmatmul.f32.gmra.mxu0 %v5045
  %v5102 = vpop.f32.mrf.mxu0
  %v5103 = vadd.f32 %v5074, %v5102
  %5104 = vdwg.mxu0
  %v5106 = vsel %vm362, %v4971, 0
  %v5109 = vsel %vm362, %v4974, 0
  %v5112 = vsel %vm362, %v4977, 0
  %v5115 = vsel %vm362, %v4980, 0
  %5117 = vmatpush.msra.mxu0 0.0
  %5118 = vmatpush.msra.mxu0 0.0
  %5119 = vmatpush.msra.mxu0 0.0
  %5120 = vmatpush.msra.mxu0 0.0
  %5121 = vmatpush.msra.mxu0 0.0
  %5122 = vmatpush.msra.mxu0 0.0
  %5123 = vmatpush.msra.mxu0 0.0
  %5124 = vmatpush.msra.mxu0 0.0
  %5125 = vmatpush.msra.mxu0 %v4865
  %5126 = vmatpush.msra.mxu0 %v4864
  %5127 = vmatpush.msra.mxu0 %v4863
  %5128 = vmatpush.msra.mxu0 %v4862
  %5129 = vmatpush.msra.mxu0 %v4861
  %5130 = vmatpush.msra.mxu0 %v4860
  %5131 = vmatpush.msra.mxu0 %v4859
  %5132 = vmatpush.msra.mxu0 %v4858
  %5133 = vmatmul.f32.gmra.mxu0 %v5106
  %v5134 = vpop.f32.mrf.mxu0
  %v5135 = vadd.f32 0.0, %v5134
  %5136 = vmatmul.f32.gmra.mxu0 %v5109
  %v5137 = vpop.f32.mrf.mxu0
  %v5138 = vadd.f32 0.0, %v5137
  %5139 = vmatmul.f32.gmra.mxu0 %v5112
  %v5140 = vpop.f32.mrf.mxu0
  %v5141 = vadd.f32 0.0, %v5140
  %5142 = vmatmul.f32.gmra.mxu0 %v5115
  %v5143 = vpop.f32.mrf.mxu0
  %v5144 = vadd.f32 0.0, %v5143
  %5145 = vdwg.mxu0
  %v5146 = vadd.f32 %v5094, %v5135
  %v5147 = vadd.f32 %v5097, %v5138
  %v5148 = vadd.f32 %v5100, %v5141
  %v5149 = vadd.f32 %v5103, %v5144
  %v5151 = vsel %vm362, %v4983, 0
  %v5154 = vsel %vm362, %v4986, 0
  %v5157 = vsel %vm362, %v4989, 0
  %v5160 = vsel %vm362, %v4992, 0
  %5162 = vmatpush.msra.mxu0 0.0
  %5163 = vmatpush.msra.mxu0 0.0
  %5164 = vmatpush.msra.mxu0 0.0
  %5165 = vmatpush.msra.mxu0 0.0
  %5166 = vmatpush.msra.mxu0 0.0
  %5167 = vmatpush.msra.mxu0 0.0
  %5168 = vmatpush.msra.mxu0 0.0
  %5169 = vmatpush.msra.mxu0 0.0
  %5170 = vmatpush.msra.mxu0 %v4873
  %5171 = vmatpush.msra.mxu0 %v4872
  %5172 = vmatpush.msra.mxu0 %v4871
  %5173 = vmatpush.msra.mxu0 %v4870
  %5174 = vmatpush.msra.mxu0 %v4869
  %5175 = vmatpush.msra.mxu0 %v4868
  %5176 = vmatpush.msra.mxu0 %v4867
  %5177 = vmatpush.msra.mxu0 %v4866
  %5178 = vmatmul.f32.gmra.mxu0 %v5151
  %v5179 = vpop.f32.mrf.mxu0
  %v5180 = vadd.f32 0.0, %v5179
  %5181 = vmatmul.f32.gmra.mxu0 %v5154
  %v5182 = vpop.f32.mrf.mxu0
  %v5183 = vadd.f32 0.0, %v5182
  %5184 = vmatmul.f32.gmra.mxu0 %v5157
  %v5185 = vpop.f32.mrf.mxu0
  %v5186 = vadd.f32 0.0, %v5185
  %5187 = vmatmul.f32.gmra.mxu0 %v5160
  %v5188 = vpop.f32.mrf.mxu0
  %v5189 = vadd.f32 0.0, %v5188
  %5190 = vdwg.mxu0
  %v5191 = vadd.f32 %v5146, %v5180
  %v5192 = vadd.f32 %v5147, %v5183
  %v5193 = vadd.f32 %v5148, %v5186
  %v5194 = vadd.f32 %v5149, %v5189
  %v5195 = vmul.f32 %v5191, 0.5
  %v5196 = vmul.f32 %v5192, 0.5
  %v5197 = vmul.f32 %v5193, 0.5
  %v5198 = vmul.f32 %v5194, 0.5
  %v5199 = vmul.f32 %v5191, 0.70710677
  %v5200 = vmul.f32 %v5192, 0.70710677
  %v5201 = vmul.f32 %v5193, 0.70710677
  %v5202 = vmul.f32 %v5194, 0.70710677
  %v5203 = vmul.f32 %v5199, %v5199
  %v5204 = vmin.f32 16.0, %v5203
  %v5205 = vmul.f32 %v5204, 2.1237322e-06
  %v5206 = vadd.f32 %v5205, 0.00028619796
  %v5207 = vmul.f32 %v5204, %v5206
  %v5208 = vadd.f32 %v5207, 0.0036580483
  %v5209 = vmul.f32 %v5204, %v5208
  %v5210 = vadd.f32 %v5209, 0.05243302
  %v5211 = vmul.f32 %v5204, %v5210
  %v5212 = vadd.f32 %v5211, 0.18741608
  %v5213 = vmul.f32 %v5204, %v5212
  %v5214 = vadd.f32 %v5213, 1.1283791
  %v5215 = vmul.f32 %v5199, %v5214
  %v5216 = vmul.f32 %v5204, 3.8918573e-05
  %v5217 = vadd.f32 %v5216, 0.001143296
  %v5218 = vmul.f32 %v5204, %v5217
  %v5219 = vadd.f32 %v5218, 0.014752088
  %v5220 = vmul.f32 %v5204, %v5219
  %v5221 = vadd.f32 %v5220, 0.112945676
  %v5222 = vmul.f32 %v5204, %v5221
  %v5223 = vadd.f32 %v5222, 0.4994258
  %v5224 = vmul.f32 %v5204, %v5223
  %v5225 = vadd.f32 %v5224, 1.0
  %v5226 = vrcp.pop %v5225
  %v5227 = vmul.f32 %v5225, %v5226
  %v5228 = vsub.f32 1.0, %v5227
  %v5229 = vmul.f32 %v5226, %v5228
  %v5230 = vadd.f32 %v5226, %v5229
  %vm5231 = vweird.f32 %v5225
  %vm5232 = vweird.f32 %v5226
  %vm5233 = vmor %vm5231, %vm5232
  %v5234 = vsel %vm5233, %v5226, %v5230
  %v5235 = vand.u32 2147483647, %v5225
  %vm5236 = vcmp.eq.f32.partialorder %v5235, 8.507059e+37
  %v5237 = vand.u32 %v5225, 2147483648
  %v5238 = vor.u32 1.1754944e-38, %v5237
  %v5239 = vsel %vm5236, %v5238, %v5234
  %v5240 = vmul.f32 %v5215, %v5239
  %v5241 = vmin.f32 %v5240, 1.0
  %v5242 = vmax.f32 %v5241, -1.0
  %v5243 = vmul.f32 %v5200, %v5200
  %v5244 = vmin.f32 16.0, %v5243
  %v5245 = vmul.f32 %v5244, 2.1237322e-06
  %v5246 = vadd.f32 %v5245, 0.00028619796
  %v5247 = vmul.f32 %v5244, %v5246
  %v5248 = vadd.f32 %v5247, 0.0036580483
  %v5249 = vmul.f32 %v5244, %v5248
  %v5250 = vadd.f32 %v5249, 0.05243302
  %v5251 = vmul.f32 %v5244, %v5250
  %v5252 = vadd.f32 %v5251, 0.18741608
  %v5253 = vmul.f32 %v5244, %v5252
  %v5254 = vadd.f32 %v5253, 1.1283791
  %v5255 = vmul.f32 %v5200, %v5254
  %v5256 = vmul.f32 %v5244, 3.8918573e-05
  %v5257 = vadd.f32 %v5256, 0.001143296
  %v5258 = vmul.f32 %v5244, %v5257
  %v5259 = vadd.f32 %v5258, 0.014752088
  %v5260 = vmul.f32 %v5244, %v5259
  %v5261 = vadd.f32 %v5260, 0.112945676
  %v5262 = vmul.f32 %v5244, %v5261
  %v5263 = vadd.f32 %v5262, 0.4994258
  %v5264 = vmul.f32 %v5244, %v5263
  %v5265 = vadd.f32 %v5264, 1.0
  %v5266 = vrcp.pop %v5265
  %v5267 = vmul.f32 %v5265, %v5266
  %v5268 = vsub.f32 1.0, %v5267
  %v5269 = vmul.f32 %v5266, %v5268
  %v5270 = vadd.f32 %v5266, %v5269
  %vm5271 = vweird.f32 %v5265
  %vm5272 = vweird.f32 %v5266
  %vm5273 = vmor %vm5271, %vm5272
  %v5274 = vsel %vm5273, %v5266, %v5270
  %v5275 = vand.u32 2147483647, %v5265
  %vm5276 = vcmp.eq.f32.partialorder %v5275, 8.507059e+37
  %v5277 = vand.u32 %v5265, 2147483648
  %v5278 = vor.u32 1.1754944e-38, %v5277
  %v5279 = vsel %vm5276, %v5278, %v5274
  %v5280 = vmul.f32 %v5255, %v5279
  %v5281 = vmin.f32 %v5280, 1.0
  %v5282 = vmax.f32 %v5281, -1.0
  %v5283 = vmul.f32 %v5201, %v5201
  %v5284 = vmin.f32 16.0, %v5283
  %v5285 = vmul.f32 %v5284, 2.1237322e-06
  %v5286 = vadd.f32 %v5285, 0.00028619796
  %v5287 = vmul.f32 %v5284, %v5286
  %v5288 = vadd.f32 %v5287, 0.0036580483
  %v5289 = vmul.f32 %v5284, %v5288
  %v5290 = vadd.f32 %v5289, 0.05243302
  %v5291 = vmul.f32 %v5284, %v5290
  %v5292 = vadd.f32 %v5291, 0.18741608
  %v5293 = vmul.f32 %v5284, %v5292
  %v5294 = vadd.f32 %v5293, 1.1283791
  %v5295 = vmul.f32 %v5201, %v5294
  %v5296 = vmul.f32 %v5284, 3.8918573e-05
  %v5297 = vadd.f32 %v5296, 0.001143296
  %v5298 = vmul.f32 %v5284, %v5297
  %v5299 = vadd.f32 %v5298, 0.014752088
  %v5300 = vmul.f32 %v5284, %v5299
  %v5301 = vadd.f32 %v5300, 0.112945676
  %v5302 = vmul.f32 %v5284, %v5301
  %v5303 = vadd.f32 %v5302, 0.4994258
  %v5304 = vmul.f32 %v5284, %v5303
  %v5305 = vadd.f32 %v5304, 1.0
  %v5306 = vrcp.pop %v5305
  %v5307 = vmul.f32 %v5305, %v5306
  %v5308 = vsub.f32 1.0, %v5307
  %v5309 = vmul.f32 %v5306, %v5308
  %v5310 = vadd.f32 %v5306, %v5309
  %vm5311 = vweird.f32 %v5305
  %vm5312 = vweird.f32 %v5306
  %vm5313 = vmor %vm5311, %vm5312
  %v5314 = vsel %vm5313, %v5306, %v5310
  %v5315 = vand.u32 2147483647, %v5305
  %vm5316 = vcmp.eq.f32.partialorder %v5315, 8.507059e+37
  %v5317 = vand.u32 %v5305, 2147483648
  %v5318 = vor.u32 1.1754944e-38, %v5317
  %v5319 = vsel %vm5316, %v5318, %v5314
  %v5320 = vmul.f32 %v5295, %v5319
  %v5321 = vmin.f32 %v5320, 1.0
  %v5322 = vmax.f32 %v5321, -1.0
  %v5323 = vmul.f32 %v5202, %v5202
  %v5324 = vmin.f32 16.0, %v5323
  %v5325 = vmul.f32 %v5324, 2.1237322e-06
  %v5326 = vadd.f32 %v5325, 0.00028619796
  %v5327 = vmul.f32 %v5324, %v5326
  %v5328 = vadd.f32 %v5327, 0.0036580483
  %v5329 = vmul.f32 %v5324, %v5328
  %v5330 = vadd.f32 %v5329, 0.05243302
  %v5331 = vmul.f32 %v5324, %v5330
  %v5332 = vadd.f32 %v5331, 0.18741608
  %v5333 = vmul.f32 %v5324, %v5332
  %v5334 = vadd.f32 %v5333, 1.1283791
  %v5335 = vmul.f32 %v5202, %v5334
  %v5336 = vmul.f32 %v5324, 3.8918573e-05
  %v5337 = vadd.f32 %v5336, 0.001143296
  %v5338 = vmul.f32 %v5324, %v5337
  %v5339 = vadd.f32 %v5338, 0.014752088
  %v5340 = vmul.f32 %v5324, %v5339
  %v5341 = vadd.f32 %v5340, 0.112945676
  %v5342 = vmul.f32 %v5324, %v5341
  %v5343 = vadd.f32 %v5342, 0.4994258
  %v5344 = vmul.f32 %v5324, %v5343
  %v5345 = vadd.f32 %v5344, 1.0
  %v5346 = vrcp.pop %v5345
  %v5347 = vmul.f32 %v5345, %v5346
  %v5348 = vsub.f32 1.0, %v5347
  %v5349 = vmul.f32 %v5346, %v5348
  %v5350 = vadd.f32 %v5346, %v5349
  %vm5351 = vweird.f32 %v5345
  %vm5352 = vweird.f32 %v5346
  %vm5353 = vmor %vm5351, %vm5352
  %v5354 = vsel %vm5353, %v5346, %v5350
  %v5355 = vand.u32 2147483647, %v5345
  %vm5356 = vcmp.eq.f32.partialorder %v5355, 8.507059e+37
  %v5357 = vand.u32 %v5345, 2147483648
  %v5358 = vor.u32 1.1754944e-38, %v5357
  %v5359 = vsel %vm5356, %v5358, %v5354
  %v5360 = vmul.f32 %v5335, %v5359
  %v5361 = vmin.f32 %v5360, 1.0
  %v5362 = vmax.f32 %v5361, -1.0
  %v5363 = vadd.f32 %v5242, 1.0
  %v5364 = vadd.f32 %v5282, 1.0
  %v5365 = vadd.f32 %v5322, 1.0
  %v5366 = vadd.f32 %v5362, 1.0
  %v5367 = vmul.f32 %v5195, %v5363
  %v5368 = vmul.f32 %v5196, %v5364
  %v5369 = vmul.f32 %v5197, %v5365
  %v5370 = vmul.f32 %v5198, %v5366
  %v5371 = vsel %vm362, %v5367, 0.0
  %5372 = vadd.xlane.f32.xlu0 %v5371
  %v5373 = vpop.xlane.xlu0 %5372
  %v5374 = vsel %vm362, %v5368, 0.0
  %5375 = vadd.xlane.f32.xlu0 %v5374
  %v5376 = vpop.xlane.xlu0 %5375
  %v5377 = vsel %vm362, %v5369, 0.0
  %5378 = vadd.xlane.f32.xlu0 %v5377
  %v5379 = vpop.xlane.xlu0 %5378
  %v5380 = vsel %vm362, %v5370, 0.0
  %5381 = vadd.xlane.f32.xlu0 %v5380
  %v5382 = vpop.xlane.xlu0 %5381
  %v5383 = vmul.f32 %v5373, %v2789
  %v5384 = vmul.f32 %v5376, %v2789
  %v5385 = vmul.f32 %v5379, %v2789
  %v5386 = vmul.f32 %v5382, %v2789
  %v5387 = vsub.f32 %v5367, %v5383
  %v5388 = vsub.f32 %v5368, %v5384
  %v5389 = vsub.f32 %v5369, %v5385
  %v5390 = vsub.f32 %v5370, %v5386
  %v5391 = vmul.f32 %v5387, %v5387
  %v5392 = vmul.f32 %v5388, %v5388
  %v5393 = vmul.f32 %v5389, %v5389
  %v5394 = vmul.f32 %v5390, %v5390
  %v5395 = vsel %vm362, %v5391, 0.0
  %5396 = vadd.xlane.f32.xlu0 %v5395
  %v5397 = vpop.xlane.xlu0 %5396
  %v5398 = vsel %vm362, %v5392, 0.0
  %5399 = vadd.xlane.f32.xlu0 %v5398
  %v5400 = vpop.xlane.xlu0 %5399
  %v5401 = vsel %vm362, %v5393, 0.0
  %5402 = vadd.xlane.f32.xlu0 %v5401
  %v5403 = vpop.xlane.xlu0 %5402
  %v5404 = vsel %vm362, %v5394, 0.0
  %5405 = vadd.xlane.f32.xlu0 %v5404
  %v5406 = vpop.xlane.xlu0 %5405
  %v5407 = vmul.f32 %v5397, %v2789
  %v5408 = vmul.f32 %v5400, %v2789
  %v5409 = vmul.f32 %v5403, %v2789
  %v5410 = vmul.f32 %v5406, %v2789
  %v5411 = vadd.f32 %v5407, 1e-05
  %v5412 = vadd.f32 %v5408, 1e-05
  %v5413 = vadd.f32 %v5409, 1e-05
  %v5414 = vadd.f32 %v5410, 1e-05
  %v5415 = vrsqrt.pop %v5411
  %v5416 = vmul.f32 %v5415, %v5411
  %v5417 = vmul.f32 %v5416, %v5415
  %v5418 = vmul.f32 0.5, %v5417
  %v5419 = vsub.f32 1.5, %v5418
  %v5420 = vmul.f32 %v5415, %v5419
  %vm5421 = vweird.f32 %v5411
  %vm5422 = vweird.f32 %v5415
  %vm5423 = vmor %vm5421, %vm5422
  %v5424 = vsel %vm5423, %v5415, %v5420
  %v5425 = vrsqrt.pop %v5412
  %v5426 = vmul.f32 %v5425, %v5412
  %v5427 = vmul.f32 %v5426, %v5425
  %v5428 = vmul.f32 0.5, %v5427
  %v5429 = vsub.f32 1.5, %v5428
  %v5430 = vmul.f32 %v5425, %v5429
  %vm5431 = vweird.f32 %v5412
  %vm5432 = vweird.f32 %v5425
  %vm5433 = vmor %vm5431, %vm5432
  %v5434 = vsel %vm5433, %v5425, %v5430
  %v5435 = vrsqrt.pop %v5413
  %v5436 = vmul.f32 %v5435, %v5413
  %v5437 = vmul.f32 %v5436, %v5435
  %v5438 = vmul.f32 0.5, %v5437
  %v5439 = vsub.f32 1.5, %v5438
  %v5440 = vmul.f32 %v5435, %v5439
  %vm5441 = vweird.f32 %v5413
  %vm5442 = vweird.f32 %v5435
  %vm5443 = vmor %vm5441, %vm5442
  %v5444 = vsel %vm5443, %v5435, %v5440
  %v5445 = vrsqrt.pop %v5414
  %v5446 = vmul.f32 %v5445, %v5414
  %v5447 = vmul.f32 %v5446, %v5445
  %v5448 = vmul.f32 0.5, %v5447
  %v5449 = vsub.f32 1.5, %v5448
  %v5450 = vmul.f32 %v5445, %v5449
  %vm5451 = vweird.f32 %v5414
  %vm5452 = vweird.f32 %v5445
  %vm5453 = vmor %vm5451, %vm5452
  %v5454 = vsel %vm5453, %v5445, %v5450
  %v5455 = vmul.f32 %v5387, %v5424
  %v5456 = vmul.f32 %v5388, %v5434
  %v5457 = vmul.f32 %v5389, %v5444
  %v5458 = vmul.f32 %v5390, %v5454
  %v5460 = vperm.slane %v4898, 0
  %v5462 = vmul.f32 %v5455, %v5460
  %v5463 = vmul.f32 %v5456, %v5460
  %v5464 = vmul.f32 %v5457, %v5460
  %v5465 = vmul.f32 %v5458, %v5460
  %v5467 = vperm.slane %v4899, 0
  %v5469 = vadd.f32 %v5462, %v5467
  %v5470 = vadd.f32 %v5463, %v5467
  %v5471 = vadd.f32 %v5464, %v5467
  %v5472 = vadd.f32 %v5465, %v5467
  %v5474 = vperm.slane %v4908, 0
  %v5477 = vsel %vm362, %v5469, 0
  %v5480 = vsel %vm362, %v5470, 0
  %v5483 = vsel %vm362, %v5471, 0
  %v5486 = vsel %vm362, %v5472, 0
  %5488 = vmatpush.msra.mxu0 0.0
  %5489 = vmatpush.msra.mxu0 0.0
  %5490 = vmatpush.msra.mxu0 0.0
  %5491 = vmatpush.msra.mxu0 0.0
  %5492 = vmatpush.msra.mxu0 0.0
  %5493 = vmatpush.msra.mxu0 0.0
  %5494 = vmatpush.msra.mxu0 0.0
  %5495 = vmatpush.msra.mxu0 0.0
  %5496 = vmatpush.msra.mxu0 %v4907
  %5497 = vmatpush.msra.mxu0 %v4906
  %5498 = vmatpush.msra.mxu0 %v4905
  %5499 = vmatpush.msra.mxu0 %v4904
  %5500 = vmatpush.msra.mxu0 %v4903
  %5501 = vmatpush.msra.mxu0 %v4902
  %5502 = vmatpush.msra.mxu0 %v4901
  %5503 = vmatpush.msra.mxu0 %v4900
  %5504 = vmatmul.f32.gmra.mxu0 %v5477
  %v5505 = vpop.f32.mrf.mxu0
  %v5506 = vadd.f32 %v5474, %v5505
  %5507 = vmatmul.f32.gmra.mxu0 %v5480
  %v5508 = vpop.f32.mrf.mxu0
  %v5509 = vadd.f32 %v5474, %v5508
  %5510 = vmatmul.f32.gmra.mxu0 %v5483
  %v5511 = vpop.f32.mrf.mxu0
  %v5512 = vadd.f32 %v5474, %v5511
  %5513 = vmatmul.f32.gmra.mxu0 %v5486
  %v5514 = vpop.f32.mrf.mxu0
  %v5515 = vadd.f32 %v5474, %v5514
  %5516 = vdwg.mxu0
  %v5517 = vtanh.pop %v5506
  %v5518 = vtanh.pop %v5509
  %v5519 = vtanh.pop %v5512
  %v5520 = vtanh.pop %v5515
  %5521 = vst.msk [vmem:[%s103] sm:$0xff] %vm357, %v5517
  %5522 = vst.msk [vmem:[%s103 + $0x8] sm:$0xff] %vm357, %v5518
  %5523 = vst.msk [vmem:[%s103 + $0x10] sm:$0xff] %vm357, %v5519
  %5524 = vst.msk [vmem:[%s103 + $0x18] sm:$0xff] %vm357, %v5520
  // Predicated region
  $region206: #{encoder_forward.1} parent=0 // pred_check
    _
  $region207: #{encoder_forward.1} parent=0 // pred_check_branch
    %5526 = sbr.rel (0) target = $region209
  $region208: #{encoder_forward.1} parent=0 // pred_region
    _
  $region209: #{encoder_forward.1} parent=0 // pred_fallthru
    _
  // Predicated region
  $region210: #{encoder_forward.1} parent=0 // pred_check
    _
  $region211: #{encoder_forward.1} parent=0 // pred_check_branch
    %5528 = sbr.rel (0) target = $region213
  $region212: #{encoder_forward.1} parent=0 // pred_region
    _
  $region213: #{encoder_forward.1} parent=0 // pred_fallthru
    _

</llo_original>
